<compile_context>
chip_gen: v6e
topology: v6e:2x2x1
jax: 0.10.0
libtpu: 0.0.40
codegen_flags: <defaults>
</compile_context>

<pallas_src>
import math

import jax
import jax.numpy as jnp
from jax import lax
from jax.experimental import pallas as pl
from jax.experimental.pallas import tpu as pltpu

_INV_SQRT2 = 1.0 / math.sqrt(2.0)
_INV_SQRT_2PI = 1.0 / math.sqrt(2.0 * math.pi)


# ----------------------------------------------------------------------------
# In-kernel building blocks (pure jnp, traced inside the fused kernel)
# ----------------------------------------------------------------------------
def _pn_linear(m, s, w, w_sq, b, mean_dtype):
    """PN Linear: mean @ W + b ; std = sqrt(clip(std^2 @ W^2, 1e-7)).

    Mean matmul may run in `mean_dtype` (bf16 on v6e/v7x at large K); the
    variance matmul stays f32 to avoid bf16 underflow of small variances.
    """
    m_out = jnp.dot(m.astype(mean_dtype), w.astype(mean_dtype),
                    preferred_element_type=jnp.float32) + b
    v_out = jnp.dot(s * s, w_sq, preferred_element_type=jnp.float32)
    return m_out, jnp.sqrt(jnp.clip(v_out, 1e-7, None))


def _mean_linear(m, w, b, mean_dtype):
    """Mean-only linear (used where the std output is provably dead)."""
    return jnp.dot(m.astype(mean_dtype), w.astype(mean_dtype),
                   preferred_element_type=jnp.float32) + b


def _srelu(m, s, approx_phi):
    """Gaussian moment-matched ReLU (elementwise, f32)."""
    # Reference: stdin = (stdin + 1e-6).clamp(min=1e-6); s >= 0 always, so the
    # clamp is a no-op and is dropped.
    sc = s + 1e-6
    z = m / sc                                   # exact divide (numeric parity)
    if approx_phi:
        # EUP-resident Phi approximation: Phi(z) ~ sigmoid(1.702 z).
        phis = jax.nn.sigmoid(1.702 * z)
    else:
        phis = 0.5 * (1.0 + lax.erf(z * _INV_SQRT2))
    dens = jnp.exp(-0.5 * z * z) * _INV_SQRT_2PI
    m_out = m * phis + sc * dens
    var = (m * m + sc * sc) * phis + m * sc * dens - m_out * m_out + 1e-6
    return m_out, jnp.sqrt(jnp.clip(var, 1e-6, None))


# ----------------------------------------------------------------------------
# Fused whole-network kernel (one grid step == Bt point clouds)
# ----------------------------------------------------------------------------
def _make_fused_kernel(num_layers, mean_mxu_dtype, approx_phi):
    def kernel(*refs):
        unc_ref, mean_ref = refs[0], refs[1]
        blk_refs = refs[2:2 + 3 * num_layers]
        w_out_ref = refs[2 + 3 * num_layers]
        b_out_ref = refs[3 + 3 * num_layers]
        out_ref = refs[4 + 3 * num_layers]

        bt, n, cin = mean_ref.shape
        # Flatten Bt clouds into one (Bt*N, C) row block for all matmuls.
        m = mean_ref[...].reshape(bt * n, cin)
        # stdin = ones * softplus(_unc), built in-kernel from the SMEM scalar.
        s = jnp.full((bt * n, cin), unc_ref[0, 0], dtype=jnp.float32)

        # --- num_layers x (LinearOperatorGP stand-in -> sReLU -> Linear) ---
        for i in range(num_layers):
            wop_pack, b_pack, wl_pack = blk_refs[3 * i:3 * i + 3]
            wop, wop_sq = wop_pack[0], wop_pack[1]
            bop, bl = b_pack[0], b_pack[1]
            wl, wl_sq = wl_pack[0], wl_pack[1]

            # LinearOperatorGP stand-in (PN propagation, coords-independent).
            m, s = _pn_linear(m, s, wop, wop_sq, bop, mean_mxu_dtype)
            # sReLU
            m, s = _srelu(m, s, approx_phi)
            # PN Linear(chout, chout). After the LAST block, std only feeds
            # the head's discarded std output -> mean-only matmul.
            if i < num_layers - 1:
                m, s = _pn_linear(m, s, wl, wl_sq, bl, mean_mxu_dtype)
            else:
                m = _mean_linear(m, wl, bl, mean_mxu_dtype)

        # --- IntegralGP stand-in: integrate feature field over each cloud ---
        # TODO(synk): real IntegralGP may also use std for its posterior mean;
        # the stand-in does not, so the std path above it is dead code.
        k = m.shape[-1]
        m_int = jnp.sum(m.reshape(bt, n, k), axis=1) * (1.0 / n)      # (Bt, K)

        # --- final PN Linear(k, num_targets): mean only (std is discarded) ---
        m_out = _mean_linear(m_int, w_out_ref[...], b_out_ref[...],
                             mean_mxu_dtype)                          # (Bt, T)
        out_ref[...] = m_out.reshape(1, bt, m_out.shape[-1])

    return kernel


def _full_spec(arr):
    nd = arr.ndim
    return pl.BlockSpec(arr.shape, lambda b, _nd=nd: (0,) * _nd)


# ----------------------------------------------------------------------------
# Parameter init (deterministic, PyTorch nn.Linear-style uniform)
# ----------------------------------------------------------------------------
def _linear_params(key, fan_in, fan_out):
    kw, kb = jax.random.split(key)
    bound = 1.0 / math.sqrt(fan_in)
    w = jax.random.uniform(kw, (fan_in, fan_out), jnp.float32, -bound, bound)
    b = jax.random.uniform(kb, (1, fan_out), jnp.float32, -bound, bound)
    return w, b


def init_params(key, channels_in, k, num_targets, num_layers):
    blocks = []
    dims_in = [channels_in] + [k] * (num_layers - 1)
    keys = jax.random.split(key, num_layers + 1)
    for i, cin in enumerate(dims_in):
        kop, kl = jax.random.split(keys[i])
        wop, bop = _linear_params(kop, cin, k)
        wl, bl = _linear_params(kl, k, k)
        blocks.append({"wop": wop, "bop": bop, "wl": wl, "bl": bl})
    w_out, b_out = _linear_params(keys[-1], k, num_targets)
    return {"unc": jnp.float32(-2.0), "blocks": blocks,
            "w_out": w_out, "b_out": b_out}


# ----------------------------------------------------------------------------
# Full PNCNN forward (single fused pallas_call)
# ----------------------------------------------------------------------------
def pncnn_forward(params, coords, vals, *, bt=32,
                  mean_mxu_dtype=jnp.float32, approx_phi=False,
                  vmem_limit_bytes=40 * 1024 * 1024):
    # Tuning notes:
    #   * bt (clouds per grid step): ~32-48 is safe on v7x (64 MiB VMEM);
    #     v5e/v6e (128 MiB) can go to ~96-128.  Only enable bf16 mean matmuls
    #     once K >= 128 and Bt*N >= ~512.
    del coords  # TODO(synk): only consumed by the missing GP-operator kernel.
    B, N, cin = vals.shape
    num_layers = len(params["blocks"])
    K = params["w_out"].shape[0]
    T = params["w_out"].shape[1]

    # softplus(_unc) as a (1,1) SMEM scalar (no (B,N,Cin) std array in HBM).
    unc = jnp.reshape(jax.nn.softplus(params["unc"]), (1, 1)).astype(jnp.float32)
    mean = vals.astype(jnp.float32)

    bt_eff = min(bt, B)
    num_blocks = -(-B // bt_eff)
    B_pad = num_blocks * bt_eff
    if B_pad != B:
        mean = jnp.pad(mean, ((0, B_pad - B), (0, 0), (0, 0)))

    # Grid-invariant weights.  W**2 computed once here; each weight is stacked
    # with its square, biases of a block are stacked, to cut input streams.
    weight_args = []
    for blk in params["blocks"]:
        weight_args.append(jnp.stack([blk["wop"], blk["wop"] ** 2]))  # (2,ci,K)
        weight_args.append(jnp.stack([blk["bop"], blk["bl"]]))        # (2,1,K)
        weight_args.append(jnp.stack([blk["wl"], blk["wl"] ** 2]))    # (2,K,K)
    weight_args += [params["w_out"], params["b_out"]]

    act_spec = pl.BlockSpec((bt_eff, N, cin), lambda b: (b, 0, 0))
    in_specs = ([pl.BlockSpec(memory_space=pltpu.MemorySpace.SMEM), act_spec]
                + [_full_spec(w) for w in weight_args])
    out_spec = pl.BlockSpec((1, bt_eff, T), lambda b: (b, 0, 0))

    # Advisory cost estimate for XLA scheduling around the fused call.
    flops = 0
    dims_in = [cin] + [K] * (num_layers - 1)
    for i, ci in enumerate(dims_in):
        flops += 2 * N * ci * K * 2                                    # GP op
        flops += 2 * N * K * K * (2 if i < num_layers - 1 else 1)      # Linear
    flops += 2 * K * T                                                 # head
    flops *= B_pad
    transcendentals = int(B_pad * num_layers * 2 * N * K)              # erf+exp
    bytes_accessed = int(4 * (B_pad * N * cin
                              + sum(int(w.size) for w in weight_args)
                              + B_pad * T))

    out = pl.pallas_call(
        _make_fused_kernel(num_layers, mean_mxu_dtype, approx_phi),
        out_shape=jax.ShapeDtypeStruct((num_blocks, bt_eff, T), jnp.float32),
        grid=(num_blocks,),
        in_specs=in_specs,
        out_specs=out_spec,
        compiler_params=pltpu.CompilerParams(
            dimension_semantics=("parallel",),       # shard steps across TCs
            vmem_limit_bytes=vmem_limit_bytes),
        cost_estimate=pl.CostEstimate(flops=int(flops),
                                      transcendentals=transcendentals,
                                      bytes_accessed=bytes_accessed),
    )(unc, mean, *weight_args)
    return out.reshape(B_pad, T)[:B]


if __name__ == "__main__":
    B, N, D = 2, 64, 2            # 2 point clouds of 64 points in 2-D
    CIN, K, T, NUM_LAYERS = 4, 32, 10, 3

    key = jax.random.PRNGKey(0)
    kc, kv, kp = jax.random.split(key, 3)
    coords = jax.random.normal(kc, (B, N, D), jnp.float32)
    vals = jax.random.normal(kv, (B, N, CIN), jnp.float32)
    params = init_params(kp, CIN, K, T, NUM_LAYERS)

    fwd = jax.jit(pncnn_forward)
    preds = fwd(params, coords, vals)
    preds = jax.block_until_ready(preds)
    assert preds.shape == (B, T) and preds.dtype == jnp.float32
    assert bool(jnp.all(jnp.isfinite(preds)))
    print("KERNEL_OK")
</pallas_src>

<mosaic_0001>
module attributes {stable_mosaic.version = 11 : i64} {
  func.func @kernel(%arg0: i32, %arg1: memref<1x1xf32, #tpu.memory_space<smem>>, %arg2: memref<2x64x4xf32, #tpu.memory_space<vmem>>, %arg3: memref<2x4x32xf32, #tpu.memory_space<vmem>>, %arg4: memref<2x1x32xf32, #tpu.memory_space<vmem>>, %arg5: memref<2x32x32xf32, #tpu.memory_space<vmem>>, %arg6: memref<2x32x32xf32, #tpu.memory_space<vmem>>, %arg7: memref<2x1x32xf32, #tpu.memory_space<vmem>>, %arg8: memref<2x32x32xf32, #tpu.memory_space<vmem>>, %arg9: memref<2x32x32xf32, #tpu.memory_space<vmem>>, %arg10: memref<2x1x32xf32, #tpu.memory_space<vmem>>, %arg11: memref<2x32x32xf32, #tpu.memory_space<vmem>>, %arg12: memref<32x10xf32, #tpu.memory_space<vmem>>, %arg13: memref<1x10xf32, #tpu.memory_space<vmem>>, %arg14: memref<1x2x10xf32, #tpu.memory_space<vmem>>) attributes {dimension_semantics = [#tpu.dimension_semantics<parallel>], iteration_bounds = array<i64: 1>, scalar_prefetch = 0 : i64, scratch_operands = 0 : i64, tpu.core_type = #tpu.core_type<tc>, window_params = [{transform_indices = @transform_0, window_bounds = array<i64: 1, 1>}, {transform_indices = @transform_1, window_bounds = array<i64: 2, 64, 4>}, {pipeline_mode = #tpu.pipeline_mode<synchronous>, transform_indices = @transform_2, window_bounds = array<i64: 2, 4, 32>}, {pipeline_mode = #tpu.pipeline_mode<synchronous>, transform_indices = @transform_3, window_bounds = array<i64: 2, 1, 32>}, {pipeline_mode = #tpu.pipeline_mode<synchronous>, transform_indices = @transform_4, window_bounds = array<i64: 2, 32, 32>}, {pipeline_mode = #tpu.pipeline_mode<synchronous>, transform_indices = @transform_5, window_bounds = array<i64: 2, 32, 32>}, {pipeline_mode = #tpu.pipeline_mode<synchronous>, transform_indices = @transform_6, window_bounds = array<i64: 2, 1, 32>}, {pipeline_mode = #tpu.pipeline_mode<synchronous>, transform_indices = @transform_7, window_bounds = array<i64: 2, 32, 32>}, {pipeline_mode = #tpu.pipeline_mode<synchronous>, transform_indices = @transform_8, window_bounds = array<i64: 2, 32, 32>}, {pipeline_mode = #tpu.pipeline_mode<synchronous>, transform_indices = @transform_9, window_bounds = array<i64: 2, 1, 32>}, {pipeline_mode = #tpu.pipeline_mode<synchronous>, transform_indices = @transform_10, window_bounds = array<i64: 2, 32, 32>}, {pipeline_mode = #tpu.pipeline_mode<synchronous>, transform_indices = @transform_11, window_bounds = array<i64: 32, 10>}, {pipeline_mode = #tpu.pipeline_mode<synchronous>, transform_indices = @transform_12, window_bounds = array<i64: 1, 10>}, {transform_indices = @transform_13, window_bounds = array<i64: 1, 2, 10>}]} {
    %c0 = arith.constant 0 : index
    %c0_0 = arith.constant 0 : index
    %c0_1 = arith.constant 0 : index
    %0 = vector.load %arg2[%c0, %c0_0, %c0_1] : memref<2x64x4xf32, #tpu.memory_space<vmem>>, vector<2x64x4xf32>
    %1 = vector.shape_cast %0 : vector<2x64x4xf32> to vector<128x4xf32>
    %c0_2 = arith.constant 0 : index
    %c0_3 = arith.constant 0 : index
    %2 = memref.load %arg1[%c0_2, %c0_3] : memref<1x1xf32, #tpu.memory_space<smem>>
    %3 = vector.broadcast %2 : f32 to vector<128x4xf32>
    %c0_4 = arith.constant 0 : index
    %c0_5 = arith.constant 0 : index
    %c0_6 = arith.constant 0 : index
    %4 = vector.load %arg3[%c0_4, %c0_5, %c0_6] : memref<2x4x32xf32, #tpu.memory_space<vmem>>, vector<1x4x32xf32>
    %5 = vector.shape_cast %4 : vector<1x4x32xf32> to vector<4x32xf32>
    %c1 = arith.constant 1 : index
    %c0_7 = arith.constant 0 : index
    %c0_8 = arith.constant 0 : index
    %6 = vector.load %arg3[%c1, %c0_7, %c0_8] : memref<2x4x32xf32, #tpu.memory_space<vmem>>, vector<1x4x32xf32>
    %7 = vector.shape_cast %6 : vector<1x4x32xf32> to vector<4x32xf32>
    %c0_9 = arith.constant 0 : index
    %c0_10 = arith.constant 0 : index
    %c0_11 = arith.constant 0 : index
    %8 = vector.load %arg4[%c0_9, %c0_10, %c0_11] : memref<2x1x32xf32, #tpu.memory_space<vmem>>, vector<1x1x32xf32>
    %9 = vector.shape_cast %8 : vector<1x1x32xf32> to vector<1x32xf32>
    %c1_12 = arith.constant 1 : index
    %c0_13 = arith.constant 0 : index
    %c0_14 = arith.constant 0 : index
    %10 = vector.load %arg4[%c1_12, %c0_13, %c0_14] : memref<2x1x32xf32, #tpu.memory_space<vmem>>, vector<1x1x32xf32>
    %11 = vector.shape_cast %10 : vector<1x1x32xf32> to vector<1x32xf32>
    %c0_15 = arith.constant 0 : index
    %c0_16 = arith.constant 0 : index
    %c0_17 = arith.constant 0 : index
    %12 = vector.load %arg5[%c0_15, %c0_16, %c0_17] : memref<2x32x32xf32, #tpu.memory_space<vmem>>, vector<1x32x32xf32>
    %13 = vector.shape_cast %12 : vector<1x32x32xf32> to vector<32x32xf32>
    %c1_18 = arith.constant 1 : index
    %c0_19 = arith.constant 0 : index
    %c0_20 = arith.constant 0 : index
    %14 = vector.load %arg5[%c1_18, %c0_19, %c0_20] : memref<2x32x32xf32, #tpu.memory_space<vmem>>, vector<1x32x32xf32>
    %15 = vector.shape_cast %14 : vector<1x32x32xf32> to vector<32x32xf32>
    %cst = arith.constant dense<0.000000e+00> : vector<128x32xf32>
    %16 = tpu.matmul %1, %5, %cst {dimension_numbers = #tpu.dot_dimension_numbers<[1], [0], [0], [1], [0, 0, 1, 1], [], []>} : vector<128x4xf32>, vector<4x32xf32>, vector<128x32xf32> -> vector<128x32xf32>
    %17 = vector.broadcast %9 : vector<1x32xf32> to vector<128x32xf32>
    %18 = arith.addf %16, %17 : vector<128x32xf32>
    %19 = arith.mulf %3, %3 : vector<128x4xf32>
    %cst_21 = arith.constant dense<0.000000e+00> : vector<128x32xf32>
    %20 = tpu.matmul %19, %7, %cst_21 {dimension_numbers = #tpu.dot_dimension_numbers<[1], [0], [0], [1], [0, 0, 1, 1], [], []>} : vector<128x4xf32>, vector<4x32xf32>, vector<128x32xf32> -> vector<128x32xf32>
    %cst_22 = arith.constant 1.000000e-07 : f32
    %21 = vector.broadcast %cst_22 : f32 to vector<128x32xf32>
    %22 = arith.maximumf %21, %20 : vector<128x32xf32>
    %23 = math.sqrt %22 : vector<128x32xf32>
    %cst_23 = arith.constant 9.99999997E-7 : f32
    %24 = vector.broadcast %cst_23 : f32 to vector<128x32xf32>
    %25 = arith.addf %23, %24 : vector<128x32xf32>
    %26 = arith.divf %18, %25 : vector<128x32xf32>
    %cst_24 = arith.constant 0.707106769 : f32
    %27 = vector.broadcast %cst_24 : f32 to vector<128x32xf32>
    %28 = arith.mulf %26, %27 : vector<128x32xf32>
    %29 = math.erf %28 : vector<128x32xf32>
    %cst_25 = arith.constant 1.000000e+00 : f32
    %30 = vector.broadcast %cst_25 : f32 to vector<128x32xf32>
    %31 = arith.addf %30, %29 : vector<128x32xf32>
    %cst_26 = arith.constant 5.000000e-01 : f32
    %32 = vector.broadcast %cst_26 : f32 to vector<128x32xf32>
    %33 = arith.mulf %32, %31 : vector<128x32xf32>
    %cst_27 = arith.constant -5.000000e-01 : f32
    %34 = vector.broadcast %cst_27 : f32 to vector<128x32xf32>
    %35 = arith.mulf %34, %26 : vector<128x32xf32>
    %36 = arith.mulf %35, %26 : vector<128x32xf32>
    %37 = math.exp %36 : vector<128x32xf32>
    %cst_28 = arith.constant 0.398942292 : f32
    %38 = vector.broadcast %cst_28 : f32 to vector<128x32xf32>
    %39 = arith.mulf %37, %38 : vector<128x32xf32>
    %40 = arith.mulf %18, %33 : vector<128x32xf32>
    %41 = arith.mulf %25, %39 : vector<128x32xf32>
    %42 = arith.addf %40, %41 : vector<128x32xf32>
    %43 = arith.mulf %18, %18 : vector<128x32xf32>
    %44 = arith.mulf %25, %25 : vector<128x32xf32>
    %45 = arith.addf %43, %44 : vector<128x32xf32>
    %46 = arith.mulf %45, %33 : vector<128x32xf32>
    %47 = arith.mulf %18, %25 : vector<128x32xf32>
    %48 = arith.mulf %47, %39 : vector<128x32xf32>
    %49 = arith.addf %46, %48 : vector<128x32xf32>
    %50 = arith.mulf %42, %42 : vector<128x32xf32>
    %51 = arith.subf %49, %50 : vector<128x32xf32>
    %cst_29 = arith.constant 9.99999997E-7 : f32
    %52 = vector.broadcast %cst_29 : f32 to vector<128x32xf32>
    %53 = arith.addf %51, %52 : vector<128x32xf32>
    %cst_30 = arith.constant 9.99999997E-7 : f32
    %54 = vector.broadcast %cst_30 : f32 to vector<128x32xf32>
    %55 = arith.maximumf %54, %53 : vector<128x32xf32>
    %56 = math.sqrt %55 : vector<128x32xf32>
    %cst_31 = arith.constant dense<0.000000e+00> : vector<128x32xf32>
    %57 = tpu.matmul %42, %13, %cst_31 {dimension_numbers = #tpu.dot_dimension_numbers<[1], [0], [0], [1], [0, 0, 1, 1], [], []>} : vector<128x32xf32>, vector<32x32xf32>, vector<128x32xf32> -> vector<128x32xf32>
    %58 = vector.broadcast %11 : vector<1x32xf32> to vector<128x32xf32>
    %59 = arith.addf %57, %58 : vector<128x32xf32>
    %60 = arith.mulf %56, %56 : vector<128x32xf32>
    %cst_32 = arith.constant dense<0.000000e+00> : vector<128x32xf32>
    %61 = tpu.matmul %60, %15, %cst_32 {dimension_numbers = #tpu.dot_dimension_numbers<[1], [0], [0], [1], [0, 0, 1, 1], [], []>} : vector<128x32xf32>, vector<32x32xf32>, vector<128x32xf32> -> vector<128x32xf32>
    %cst_33 = arith.constant 1.000000e-07 : f32
    %62 = vector.broadcast %cst_33 : f32 to vector<128x32xf32>
    %63 = arith.maximumf %62, %61 : vector<128x32xf32>
    %64 = math.sqrt %63 : vector<128x32xf32>
    %c0_34 = arith.constant 0 : index
    %c0_35 = arith.constant 0 : index
    %c0_36 = arith.constant 0 : index
    %65 = vector.load %arg6[%c0_34, %c0_35, %c0_36] : memref<2x32x32xf32, #tpu.memory_space<vmem>>, vector<1x32x32xf32>
    %66 = vector.shape_cast %65 : vector<1x32x32xf32> to vector<32x32xf32>
    %c1_37 = arith.constant 1 : index
    %c0_38 = arith.constant 0 : index
    %c0_39 = arith.constant 0 : index
    %67 = vector.load %arg6[%c1_37, %c0_38, %c0_39] : memref<2x32x32xf32, #tpu.memory_space<vmem>>, vector<1x32x32xf32>
    %68 = vector.shape_cast %67 : vector<1x32x32xf32> to vector<32x32xf32>
    %c0_40 = arith.constant 0 : index
    %c0_41 = arith.constant 0 : index
    %c0_42 = arith.constant 0 : index
    %69 = vector.load %arg7[%c0_40, %c0_41, %c0_42] : memref<2x1x32xf32, #tpu.memory_space<vmem>>, vector<1x1x32xf32>
    %70 = vector.shape_cast %69 : vector<1x1x32xf32> to vector<1x32xf32>
    %c1_43 = arith.constant 1 : index
    %c0_44 = arith.constant 0 : index
    %c0_45 = arith.constant 0 : index
    %71 = vector.load %arg7[%c1_43, %c0_44, %c0_45] : memref<2x1x32xf32, #tpu.memory_space<vmem>>, vector<1x1x32xf32>
    %72 = vector.shape_cast %71 : vector<1x1x32xf32> to vector<1x32xf32>
    %c0_46 = arith.constant 0 : index
    %c0_47 = arith.constant 0 : index
    %c0_48 = arith.constant 0 : index
    %73 = vector.load %arg8[%c0_46, %c0_47, %c0_48] : memref<2x32x32xf32, #tpu.memory_space<vmem>>, vector<1x32x32xf32>
    %74 = vector.shape_cast %73 : vector<1x32x32xf32> to vector<32x32xf32>
    %c1_49 = arith.constant 1 : index
    %c0_50 = arith.constant 0 : index
    %c0_51 = arith.constant 0 : index
    %75 = vector.load %arg8[%c1_49, %c0_50, %c0_51] : memref<2x32x32xf32, #tpu.memory_space<vmem>>, vector<1x32x32xf32>
    %76 = vector.shape_cast %75 : vector<1x32x32xf32> to vector<32x32xf32>
    %cst_52 = arith.constant dense<0.000000e+00> : vector<128x32xf32>
    %77 = tpu.matmul %59, %66, %cst_52 {dimension_numbers = #tpu.dot_dimension_numbers<[1], [0], [0], [1], [0, 0, 1, 1], [], []>} : vector<128x32xf32>, vector<32x32xf32>, vector<128x32xf32> -> vector<128x32xf32>
    %78 = vector.broadcast %70 : vector<1x32xf32> to vector<128x32xf32>
    %79 = arith.addf %77, %78 : vector<128x32xf32>
    %80 = arith.mulf %64, %64 : vector<128x32xf32>
    %cst_53 = arith.constant dense<0.000000e+00> : vector<128x32xf32>
    %81 = tpu.matmul %80, %68, %cst_53 {dimension_numbers = #tpu.dot_dimension_numbers<[1], [0], [0], [1], [0, 0, 1, 1], [], []>} : vector<128x32xf32>, vector<32x32xf32>, vector<128x32xf32> -> vector<128x32xf32>
    %cst_54 = arith.constant 1.000000e-07 : f32
    %82 = vector.broadcast %cst_54 : f32 to vector<128x32xf32>
    %83 = arith.maximumf %82, %81 : vector<128x32xf32>
    %84 = math.sqrt %83 : vector<128x32xf32>
    %cst_55 = arith.constant 9.99999997E-7 : f32
    %85 = vector.broadcast %cst_55 : f32 to vector<128x32xf32>
    %86 = arith.addf %84, %85 : vector<128x32xf32>
    %87 = arith.divf %79, %86 : vector<128x32xf32>
    %cst_56 = arith.constant 0.707106769 : f32
    %88 = vector.broadcast %cst_56 : f32 to vector<128x32xf32>
    %89 = arith.mulf %87, %88 : vector<128x32xf32>
    %90 = math.erf %89 : vector<128x32xf32>
    %cst_57 = arith.constant 1.000000e+00 : f32
    %91 = vector.broadcast %cst_57 : f32 to vector<128x32xf32>
    %92 = arith.addf %91, %90 : vector<128x32xf32>
    %cst_58 = arith.constant 5.000000e-01 : f32
    %93 = vector.broadcast %cst_58 : f32 to vector<128x32xf32>
    %94 = arith.mulf %93, %92 : vector<128x32xf32>
    %cst_59 = arith.constant -5.000000e-01 : f32
    %95 = vector.broadcast %cst_59 : f32 to vector<128x32xf32>
    %96 = arith.mulf %95, %87 : vector<128x32xf32>
    %97 = arith.mulf %96, %87 : vector<128x32xf32>
    %98 = math.exp %97 : vector<128x32xf32>
    %cst_60 = arith.constant 0.398942292 : f32
    %99 = vector.broadcast %cst_60 : f32 to vector<128x32xf32>
    %100 = arith.mulf %98, %99 : vector<128x32xf32>
    %101 = arith.mulf %79, %94 : vector<128x32xf32>
    %102 = arith.mulf %86, %100 : vector<128x32xf32>
    %103 = arith.addf %101, %102 : vector<128x32xf32>
    %104 = arith.mulf %79, %79 : vector<128x32xf32>
    %105 = arith.mulf %86, %86 : vector<128x32xf32>
    %106 = arith.addf %104, %105 : vector<128x32xf32>
    %107 = arith.mulf %106, %94 : vector<128x32xf32>
    %108 = arith.mulf %79, %86 : vector<128x32xf32>
    %109 = arith.mulf %108, %100 : vector<128x32xf32>
    %110 = arith.addf %107, %109 : vector<128x32xf32>
    %111 = arith.mulf %103, %103 : vector<128x32xf32>
    %112 = arith.subf %110, %111 : vector<128x32xf32>
    %cst_61 = arith.constant 9.99999997E-7 : f32
    %113 = vector.broadcast %cst_61 : f32 to vector<128x32xf32>
    %114 = arith.addf %112, %113 : vector<128x32xf32>
    %cst_62 = arith.constant 9.99999997E-7 : f32
    %115 = vector.broadcast %cst_62 : f32 to vector<128x32xf32>
    %116 = arith.maximumf %115, %114 : vector<128x32xf32>
    %117 = math.sqrt %116 : vector<128x32xf32>
    %cst_63 = arith.constant dense<0.000000e+00> : vector<128x32xf32>
    %118 = tpu.matmul %103, %74, %cst_63 {dimension_numbers = #tpu.dot_dimension_numbers<[1], [0], [0], [1], [0, 0, 1, 1], [], []>} : vector<128x32xf32>, vector<32x32xf32>, vector<128x32xf32> -> vector<128x32xf32>
    %119 = vector.broadcast %72 : vector<1x32xf32> to vector<128x32xf32>
    %120 = arith.addf %118, %119 : vector<128x32xf32>
    %121 = arith.mulf %117, %117 : vector<128x32xf32>
    %cst_64 = arith.constant dense<0.000000e+00> : vector<128x32xf32>
    %122 = tpu.matmul %121, %76, %cst_64 {dimension_numbers = #tpu.dot_dimension_numbers<[1], [0], [0], [1], [0, 0, 1, 1], [], []>} : vector<128x32xf32>, vector<32x32xf32>, vector<128x32xf32> -> vector<128x32xf32>
    %cst_65 = arith.constant 1.000000e-07 : f32
    %123 = vector.broadcast %cst_65 : f32 to vector<128x32xf32>
    %124 = arith.maximumf %123, %122 : vector<128x32xf32>
    %125 = math.sqrt %124 : vector<128x32xf32>
    %c0_66 = arith.constant 0 : index
    %c0_67 = arith.constant 0 : index
    %c0_68 = arith.constant 0 : index
    %126 = vector.load %arg9[%c0_66, %c0_67, %c0_68] : memref<2x32x32xf32, #tpu.memory_space<vmem>>, vector<1x32x32xf32>
    %127 = vector.shape_cast %126 : vector<1x32x32xf32> to vector<32x32xf32>
    %c1_69 = arith.constant 1 : index
    %c0_70 = arith.constant 0 : index
    %c0_71 = arith.constant 0 : index
    %128 = vector.load %arg9[%c1_69, %c0_70, %c0_71] : memref<2x32x32xf32, #tpu.memory_space<vmem>>, vector<1x32x32xf32>
    %129 = vector.shape_cast %128 : vector<1x32x32xf32> to vector<32x32xf32>
    %c0_72 = arith.constant 0 : index
    %c0_73 = arith.constant 0 : index
    %c0_74 = arith.constant 0 : index
    %130 = vector.load %arg10[%c0_72, %c0_73, %c0_74] : memref<2x1x32xf32, #tpu.memory_space<vmem>>, vector<1x1x32xf32>
    %131 = vector.shape_cast %130 : vector<1x1x32xf32> to vector<1x32xf32>
    %c1_75 = arith.constant 1 : index
    %c0_76 = arith.constant 0 : index
    %c0_77 = arith.constant 0 : index
    %132 = vector.load %arg10[%c1_75, %c0_76, %c0_77] : memref<2x1x32xf32, #tpu.memory_space<vmem>>, vector<1x1x32xf32>
    %133 = vector.shape_cast %132 : vector<1x1x32xf32> to vector<1x32xf32>
    %c0_78 = arith.constant 0 : index
    %c0_79 = arith.constant 0 : index
    %c0_80 = arith.constant 0 : index
    %134 = vector.load %arg11[%c0_78, %c0_79, %c0_80] : memref<2x32x32xf32, #tpu.memory_space<vmem>>, vector<1x32x32xf32>
    %135 = vector.shape_cast %134 : vector<1x32x32xf32> to vector<32x32xf32>
    %cst_81 = arith.constant dense<0.000000e+00> : vector<128x32xf32>
    %136 = tpu.matmul %120, %127, %cst_81 {dimension_numbers = #tpu.dot_dimension_numbers<[1], [0], [0], [1], [0, 0, 1, 1], [], []>} : vector<128x32xf32>, vector<32x32xf32>, vector<128x32xf32> -> vector<128x32xf32>
    %137 = vector.broadcast %131 : vector<1x32xf32> to vector<128x32xf32>
    %138 = arith.addf %136, %137 : vector<128x32xf32>
    %139 = arith.mulf %125, %125 : vector<128x32xf32>
    %cst_82 = arith.constant dense<0.000000e+00> : vector<128x32xf32>
    %140 = tpu.matmul %139, %129, %cst_82 {dimension_numbers = #tpu.dot_dimension_numbers<[1], [0], [0], [1], [0, 0, 1, 1], [], []>} : vector<128x32xf32>, vector<32x32xf32>, vector<128x32xf32> -> vector<128x32xf32>
    %cst_83 = arith.constant 1.000000e-07 : f32
    %141 = vector.broadcast %cst_83 : f32 to vector<128x32xf32>
    %142 = arith.maximumf %141, %140 : vector<128x32xf32>
    %143 = math.sqrt %142 : vector<128x32xf32>
    %cst_84 = arith.constant 9.99999997E-7 : f32
    %144 = vector.broadcast %cst_84 : f32 to vector<128x32xf32>
    %145 = arith.addf %143, %144 : vector<128x32xf32>
    %146 = arith.divf %138, %145 : vector<128x32xf32>
    %cst_85 = arith.constant 0.707106769 : f32
    %147 = vector.broadcast %cst_85 : f32 to vector<128x32xf32>
    %148 = arith.mulf %146, %147 : vector<128x32xf32>
    %149 = math.erf %148 : vector<128x32xf32>
    %cst_86 = arith.constant 1.000000e+00 : f32
    %150 = vector.broadcast %cst_86 : f32 to vector<128x32xf32>
    %151 = arith.addf %150, %149 : vector<128x32xf32>
    %cst_87 = arith.constant 5.000000e-01 : f32
    %152 = vector.broadcast %cst_87 : f32 to vector<128x32xf32>
    %153 = arith.mulf %152, %151 : vector<128x32xf32>
    %cst_88 = arith.constant -5.000000e-01 : f32
    %154 = vector.broadcast %cst_88 : f32 to vector<128x32xf32>
    %155 = arith.mulf %154, %146 : vector<128x32xf32>
    %156 = arith.mulf %155, %146 : vector<128x32xf32>
    %157 = math.exp %156 : vector<128x32xf32>
    %cst_89 = arith.constant 0.398942292 : f32
    %158 = vector.broadcast %cst_89 : f32 to vector<128x32xf32>
    %159 = arith.mulf %157, %158 : vector<128x32xf32>
    %160 = arith.mulf %138, %153 : vector<128x32xf32>
    %161 = arith.mulf %145, %159 : vector<128x32xf32>
    %162 = arith.addf %160, %161 : vector<128x32xf32>
    %cst_90 = arith.constant dense<0.000000e+00> : vector<128x32xf32>
    %163 = tpu.matmul %162, %135, %cst_90 {dimension_numbers = #tpu.dot_dimension_numbers<[1], [0], [0], [1], [0, 0, 1, 1], [], []>} : vector<128x32xf32>, vector<32x32xf32>, vector<128x32xf32> -> vector<128x32xf32>
    %164 = vector.broadcast %133 : vector<1x32xf32> to vector<128x32xf32>
    %165 = arith.addf %163, %164 : vector<128x32xf32>
    %166 = vector.shape_cast %165 : vector<128x32xf32> to vector<2x64x32xf32>
    %cst_91 = arith.constant dense<0.000000e+00> : vector<2x32xf32>
    %167 = vector.multi_reduction <add>, %166, %cst_91 [1] : vector<2x64x32xf32> to vector<2x32xf32>
    %cst_92 = arith.constant 1.562500e-02 : f32
    %168 = vector.broadcast %cst_92 : f32 to vector<2x32xf32>
    %169 = arith.mulf %167, %168 : vector<2x32xf32>
    %c0_93 = arith.constant 0 : index
    %c0_94 = arith.constant 0 : index
    %170 = vector.load %arg12[%c0_93, %c0_94] : memref<32x10xf32, #tpu.memory_space<vmem>>, vector<32x10xf32>
    %c0_95 = arith.constant 0 : index
    %c0_96 = arith.constant 0 : index
    %171 = vector.load %arg13[%c0_95, %c0_96] : memref<1x10xf32, #tpu.memory_space<vmem>>, vector<1x10xf32>
    %cst_97 = arith.constant dense<0.000000e+00> : vector<2x10xf32>
    %172 = tpu.matmul %169, %170, %cst_97 {dimension_numbers = #tpu.dot_dimension_numbers<[1], [0], [0], [1], [0, 0, 1, 1], [], []>} : vector<2x32xf32>, vector<32x10xf32>, vector<2x10xf32> -> vector<2x10xf32>
    %173 = vector.broadcast %171 : vector<1x10xf32> to vector<2x10xf32>
    %174 = arith.addf %172, %173 : vector<2x10xf32>
    %175 = vector.shape_cast %174 : vector<2x10xf32> to vector<1x2x10xf32>
    %c0_98 = arith.constant 0 : index
    %c0_99 = arith.constant 0 : index
    %c0_100 = arith.constant 0 : index
    %176 = vector.load %arg14[%c0_98, %c0_99, %c0_100] : memref<1x2x10xf32, #tpu.memory_space<vmem>>, vector<1x2x10xf32>
    tpu.vector_store %arg14[%c0_98, %c0_99, %c0_100], %175 {strides = array<i32>} : memref<1x2x10xf32, #tpu.memory_space<vmem>>, vector<1x2x10xf32>,
    return
  }
  func.func @transform_0(%arg0: i32) -> (i32, i32) {
    %c0_i32 = arith.constant 0 : i32
    %c0_i32_0 = arith.constant 0 : i32
    %c0_i32_1 = arith.constant 0 : i32
    return %c0_i32, %c0_i32_0 : i32, i32
  }
  func.func @transform_1(%arg0: i32) -> (i32, i32, i32) {
    %c0_i32 = arith.constant 0 : i32
    %c0_i32_0 = arith.constant 0 : i32
    %c0_i32_1 = arith.constant 0 : i32
    return %arg0, %c0_i32, %c0_i32_0 : i32, i32, i32
  }
  func.func @transform_2(%arg0: i32) -> (i32, i32, i32) {
    %c0_i32 = arith.constant 0 : i32
    %c0_i32_0 = arith.constant 0 : i32
    %c0_i32_1 = arith.constant 0 : i32
    %c0_i32_2 = arith.constant 0 : i32
    return %c0_i32, %c0_i32_0, %c0_i32_1 : i32, i32, i32
  }
  func.func @transform_3(%arg0: i32) -> (i32, i32, i32) {
    %c0_i32 = arith.constant 0 : i32
    %c0_i32_0 = arith.constant 0 : i32
    %c0_i32_1 = arith.constant 0 : i32
    %c0_i32_2 = arith.constant 0 : i32
    return %c0_i32, %c0_i32_0, %c0_i32_1 : i32, i32, i32
  }
  func.func @transform_4(%arg0: i32) -> (i32, i32, i32) {
    %c0_i32 = arith.constant 0 : i32
    %c0_i32_0 = arith.constant 0 : i32
    %c0_i32_1 = arith.constant 0 : i32
    %c0_i32_2 = arith.constant 0 : i32
    return %c0_i32, %c0_i32_0, %c0_i32_1 : i32, i32, i32
  }
  func.func @transform_5(%arg0: i32) -> (i32, i32, i32) {
    %c0_i32 = arith.constant 0 : i32
    %c0_i32_0 = arith.constant 0 : i32
    %c0_i32_1 = arith.constant 0 : i32
    %c0_i32_2 = arith.constant 0 : i32
    return %c0_i32, %c0_i32_0, %c0_i32_1 : i32, i32, i32
  }
  func.func @transform_6(%arg0: i32) -> (i32, i32, i32) {
    %c0_i32 = arith.constant 0 : i32
    %c0_i32_0 = arith.constant 0 : i32
    %c0_i32_1 = arith.constant 0 : i32
    %c0_i32_2 = arith.constant 0 : i32
    return %c0_i32, %c0_i32_0, %c0_i32_1 : i32, i32, i32
  }
  func.func @transform_7(%arg0: i32) -> (i32, i32, i32) {
    %c0_i32 = arith.constant 0 : i32
    %c0_i32_0 = arith.constant 0 : i32
    %c0_i32_1 = arith.constant 0 : i32
    %c0_i32_2 = arith.constant 0 : i32
    return %c0_i32, %c0_i32_0, %c0_i32_1 : i32, i32, i32
  }
  func.func @transform_8(%arg0: i32) -> (i32, i32, i32) {
    %c0_i32 = arith.constant 0 : i32
    %c0_i32_0 = arith.constant 0 : i32
    %c0_i32_1 = arith.constant 0 : i32
    %c0_i32_2 = arith.constant 0 : i32
    return %c0_i32, %c0_i32_0, %c0_i32_1 : i32, i32, i32
  }
  func.func @transform_9(%arg0: i32) -> (i32, i32, i32) {
    %c0_i32 = arith.constant 0 : i32
    %c0_i32_0 = arith.constant 0 : i32
    %c0_i32_1 = arith.constant 0 : i32
    %c0_i32_2 = arith.constant 0 : i32
    return %c0_i32, %c0_i32_0, %c0_i32_1 : i32, i32, i32
  }
  func.func @transform_10(%arg0: i32) -> (i32, i32, i32) {
    %c0_i32 = arith.constant 0 : i32
    %c0_i32_0 = arith.constant 0 : i32
    %c0_i32_1 = arith.constant 0 : i32
    %c0_i32_2 = arith.constant 0 : i32
    return %c0_i32, %c0_i32_0, %c0_i32_1 : i32, i32, i32
  }
  func.func @transform_11(%arg0: i32) -> (i32, i32) {
    %c0_i32 = arith.constant 0 : i32
    %c0_i32_0 = arith.constant 0 : i32
    %c0_i32_1 = arith.constant 0 : i32
    return %c0_i32, %c0_i32_0 : i32, i32
  }
  func.func @transform_12(%arg0: i32) -> (i32, i32) {
    %c0_i32 = arith.constant 0 : i32
    %c0_i32_0 = arith.constant 0 : i32
    %c0_i32_1 = arith.constant 0 : i32
    return %c0_i32, %c0_i32_0 : i32, i32
  }
  func.func @transform_13(%arg0: i32) -> (i32, i32, i32) {
    %c0_i32 = arith.constant 0 : i32
    %c0_i32_0 = arith.constant 0 : i32
    %c0_i32_1 = arith.constant 0 : i32
    return %arg0, %c0_i32, %c0_i32_0 : i32, i32, i32
  }
}

</mosaic_0001>

<llo_original>
// kernel: pncnn_forward.1
$region0: #{pncnn_forward.1}
  #allocation0 [shape = 'u32[]', space=smem, size = 0x4, offset = 0x4, fixed_abs, tag = 'smem constant byte address 0x4 - core index']
  #allocation1 [shape = 'u32[144,128]{1,0:T(1,128)}', space=vmem, size = 0x12000, scoped, tag = 'internal scratch']
  #allocation2 [shape = 'f32[1,1]{1,0:T(1,128)S(6)}', space=smem, size = 0x200, scoped, tag = 'scoped memory for pncnn_forward.1']
  %s0 = inlined_call_operand.<no memory space> [shape: f32[1,1], index: 0, kind: input, shape index: {}]
  %s1 = inlined_call_operand.vmem [shape: f32[2,64,4], index: 1, kind: input, shape index: {}]
  %s2 = inlined_call_operand.vmem [shape: f32[2,4,32], index: 2, kind: input, shape index: {}]
  %s3 = inlined_call_operand.vmem [shape: f32[2,1,32], index: 3, kind: input, shape index: {}]
  %s4 = inlined_call_operand.vmem [shape: f32[2,32,32], index: 4, kind: input, shape index: {}]
  %s5 = inlined_call_operand.vmem [shape: f32[2,32,32], index: 5, kind: input, shape index: {}]
  %s6 = inlined_call_operand.vmem [shape: f32[2,1,32], index: 6, kind: input, shape index: {}]
  %s7 = inlined_call_operand.vmem [shape: f32[2,32,32], index: 7, kind: input, shape index: {}]
  %s8 = inlined_call_operand.vmem [shape: f32[2,32,32], index: 8, kind: input, shape index: {}]
  %s9 = inlined_call_operand.vmem [shape: f32[2,1,32], index: 9, kind: input, shape index: {}]
  %s10 = inlined_call_operand.vmem [shape: f32[2,32,32], index: 10, kind: input, shape index: {}]
  %s11 = inlined_call_operand.vmem [shape: f32[32,10], index: 11, kind: input, shape index: {}]
  %s12 = inlined_call_operand.vmem [shape: f32[1,10], index: 12, kind: input, shape index: {}]
  %s13 = inlined_call_operand.hbm [shape: f32[1,2,10], index: 13, kind: output, shape index: {}]
  %s14 = sld [smem:[#allocation0]]
  $region62: #{pncnn_forward.1} parent=0
    _
  %s16 = ssub.s32 1, %s14
  %s17 = scalar_select 0, %s16, %s14
  %18 = sst [smem:[#allocation2]] %s0
  $region1: #{pncnn_forward.1} parent=0
    #allocation3 [shape = 'u8[1024]{0}', space=vmem, size = 0x400, scoped, tag = 'output window, operand 0, single buffered']
    #allocation4 [shape = 's32[1]{0}', space=sflag, size = 0x4, scoped, tag = 'scoped memory for pncnn_forward.1']
    %19 = vsyncpa [#allocation4], 0
    // Predicated region
    $region2: #{pncnn_forward.1} parent=1 // pred_check
      _
    $region3: #{pncnn_forward.1} parent=1 // pred_check_branch
      %21 = sbr.rel (0) target = $region5
    $region4: #{pncnn_forward.1} parent=1 // pred_region
      _
    $region5: #{pncnn_forward.1} parent=1 // pred_fallthru
      _
    // Predicated region
    $region6: #{pncnn_forward.1} parent=1 // pred_check
      _
    $region7: #{pncnn_forward.1} parent=1 // pred_check_branch
      %23 = sbr.rel (0) target = $region9
    $region8: #{pncnn_forward.1} parent=1 // pred_region
      _
    $region9: #{pncnn_forward.1} parent=1 // pred_fallthru
      _
    // Predicated region
    $region10: #{pncnn_forward.1} parent=1 // pred_check
      _
    $region11: #{pncnn_forward.1} parent=1 // pred_check_branch
      %25 = sbr.rel (0) target = $region13
    $region12: #{pncnn_forward.1} parent=1 // pred_region
      _
    $region13: #{pncnn_forward.1} parent=1 // pred_fallthru
      _
    // Predicated region
    $region14: #{pncnn_forward.1} parent=1 // pred_check
      _
    $region15: #{pncnn_forward.1} parent=1 // pred_check_branch
      %27 = sbr.rel (0) target = $region17
    $region16: #{pncnn_forward.1} parent=1 // pred_region
      _
    $region17: #{pncnn_forward.1} parent=1 // pred_fallthru
      _
    // Predicated region
    $region18: #{pncnn_forward.1} parent=1 // pred_check
      _
    $region19: #{pncnn_forward.1} parent=1 // pred_check_branch
      %29 = sbr.rel (0) target = $region21
    $region20: #{pncnn_forward.1} parent=1 // pred_region
      _
    $region21: #{pncnn_forward.1} parent=1 // pred_fallthru
      _
    // Predicated region
    $region22: #{pncnn_forward.1} parent=1 // pred_check
      _
    $region23: #{pncnn_forward.1} parent=1 // pred_check_branch
      %31 = sbr.rel (0) target = $region25
    $region24: #{pncnn_forward.1} parent=1 // pred_region
      _
    $region25: #{pncnn_forward.1} parent=1 // pred_fallthru
      _
    // Predicated region
    $region26: #{pncnn_forward.1} parent=1 // pred_check
      _
    $region27: #{pncnn_forward.1} parent=1 // pred_check_branch
      %33 = sbr.rel (0) target = $region29
    $region28: #{pncnn_forward.1} parent=1 // pred_region
      _
    $region29: #{pncnn_forward.1} parent=1 // pred_fallthru
      _
    // Predicated region
    $region30: #{pncnn_forward.1} parent=1 // pred_check
      _
    $region31: #{pncnn_forward.1} parent=1 // pred_check_branch
      %35 = sbr.rel (0) target = $region33
    $region32: #{pncnn_forward.1} parent=1 // pred_region
      _
    $region33: #{pncnn_forward.1} parent=1 // pred_fallthru
      _
    // Predicated region
    $region34: #{pncnn_forward.1} parent=1 // pred_check
      _
    $region35: #{pncnn_forward.1} parent=1 // pred_check_branch
      %37 = sbr.rel (0) target = $region37
    $region36: #{pncnn_forward.1} parent=1 // pred_region
      _
    $region37: #{pncnn_forward.1} parent=1 // pred_fallthru
      _
    // Predicated region
    $region38: #{pncnn_forward.1} parent=1 // pred_check
      _
    $region39: #{pncnn_forward.1} parent=1 // pred_check_branch
      %39 = sbr.rel (0) target = $region41
    $region40: #{pncnn_forward.1} parent=1 // pred_region
      _
    $region41: #{pncnn_forward.1} parent=1 // pred_fallthru
      _
    // Predicated region
    $region42: #{pncnn_forward.1} parent=1 // pred_check
      _
    $region43: #{pncnn_forward.1} parent=1 // pred_check_branch
      %41 = sbr.rel (0) target = $region45
    $region44: #{pncnn_forward.1} parent=1 // pred_region
      _
    $region45: #{pncnn_forward.1} parent=1 // pred_fallthru
      _
    // Predicated region
    $region46: #{pncnn_forward.1} parent=1 // pred_check
      _
    $region47: #{pncnn_forward.1} parent=1 // pred_check_branch
      %43 = sbr.rel (0) target = $region49
    $region48: #{pncnn_forward.1} parent=1 // pred_region
      _
    $region49: #{pncnn_forward.1} parent=1 // pred_fallthru
      _
    // Predicated region
    $region50: #{pncnn_forward.1} parent=1 // pred_check
      _
    $region51: #{pncnn_forward.1} parent=1 // pred_check_branch
      %45 = sbr.rel (0) target = $region53
    $region52: #{pncnn_forward.1} parent=1 // pred_region
      _
    $region53: #{pncnn_forward.1} parent=1 // pred_fallthru
      _
    %v46 = vld [vmem:[%s1] sm:$0xff]
    %v47 = vld [vmem:[%s1 + $0x8] sm:$0xff]
    %v48 = vld [vmem:[%s1 + $0x10] sm:$0xff]
    %v49 = vld [vmem:[%s1 + $0x18] sm:$0xff]
    %v50 = vld [vmem:[%s1 + $0x20] sm:$0xff]
    %v51 = vld [vmem:[%s1 + $0x28] sm:$0xff]
    %v52 = vld [vmem:[%s1 + $0x30] sm:$0xff]
    %v53 = vld [vmem:[%s1 + $0x38] sm:$0xff]
    %v54 = vld [vmem:[%s1 + $0x40] sm:$0xff]
    %v55 = vld [vmem:[%s1 + $0x48] sm:$0xff]
    %v56 = vld [vmem:[%s1 + $0x50] sm:$0xff]
    %v57 = vld [vmem:[%s1 + $0x58] sm:$0xff]
    %v58 = vld [vmem:[%s1 + $0x60] sm:$0xff]
    %v59 = vld [vmem:[%s1 + $0x68] sm:$0xff]
    %v60 = vld [vmem:[%s1 + $0x70] sm:$0xff]
    %v61 = vld [vmem:[%s1 + $0x78] sm:$0xff]
    %s62 = sld [smem:[#allocation2]]
    %v63 = vstv %s62
    %v64 = vld [vmem:[%s2] sm:$0xf]
    %s65 = scalar_lea.vmem %s2, 4
    %v66 = vld [vmem:[%s65] sm:$0xf]
    %v67 = vld [vmem:[%s3] sm:$0x1]
    %s68 = scalar_lea.vmem %s3, 1
    %v69 = vld [vmem:[%s68] sm:$0x1]
    %v70 = vld [vmem:[%s4] sm:$0xff]
    %v71 = vld [vmem:[%s4 + $0x8] sm:$0xff]
    %v72 = vld [vmem:[%s4 + $0x10] sm:$0xff]
    %v73 = vld [vmem:[%s4 + $0x18] sm:$0xff]
    %s74 = scalar_lea.vmem %s4, 32
    %v75 = vld [vmem:[%s74] sm:$0xff]
    %v76 = vld [vmem:[%s74 + $0x8] sm:$0xff]
    %v77 = vld [vmem:[%s74 + $0x10] sm:$0xff]
    %v78 = vld [vmem:[%s74 + $0x18] sm:$0xff]
    %v80 = vlaneseq
    %v81 = vshrl.u32 %v80, 7
    %v82 = vsub.s32 0, %v81
    %v83 = vrot.slane %v67, %v82
    %vm85 = vcmask 31744
    %v87 = vsel %vm85, %v46, 0
    %v90 = vsel %vm85, %v47, 0
    %v93 = vsel %vm85, %v48, 0
    %v96 = vsel %vm85, %v49, 0
    %v99 = vsel %vm85, %v50, 0
    %v102 = vsel %vm85, %v51, 0
    %v105 = vsel %vm85, %v52, 0
    %v108 = vsel %vm85, %v53, 0
    %v111 = vsel %vm85, %v54, 0
    %v114 = vsel %vm85, %v55, 0
    %v117 = vsel %vm85, %v56, 0
    %v120 = vsel %vm85, %v57, 0
    %v123 = vsel %vm85, %v58, 0
    %v126 = vsel %vm85, %v59, 0
    %v129 = vsel %vm85, %v60, 0
    %v132 = vsel %vm85, %v61, 0
    %vm134 = vcmask 1043456
    %v136 = vsel %vm134, %v64, 0
    %138 = vmatprep.subr.mxu0 0.0
    %139 = vmatpush1.msra.mxu0 0.0
    %140 = vmatprep.subr.mxu0 0.0
    %141 = vmatpush1.msra.mxu0 0.0
    %142 = vmatprep.subr.mxu0 0.0
    %143 = vmatpush1.msra.mxu0 0.0
    %144 = vmatprep.subr.mxu0 0.0
    %145 = vmatpush1.msra.mxu0 0.0
    %146 = vmatprep.subr.mxu0 0.0
    %147 = vmatpush1.msra.mxu0 0.0
    %148 = vmatprep.subr.mxu0 0.0
    %149 = vmatpush1.msra.mxu0 0.0
    %150 = vmatprep.subr.mxu0 0.0
    %151 = vmatpush1.msra.mxu0 0.0
    %152 = vmatprep.subr.mxu0 0.0
    %153 = vmatpush1.msra.mxu0 0.0
    %154 = vmatprep.subr.mxu0 0.0
    %155 = vmatpush1.msra.mxu0 0.0
    %156 = vmatprep.subr.mxu0 0.0
    %157 = vmatpush1.msra.mxu0 0.0
    %158 = vmatprep.subr.mxu0 0.0
    %159 = vmatpush1.msra.mxu0 0.0
    %160 = vmatprep.subr.mxu0 0.0
    %161 = vmatpush1.msra.mxu0 0.0
    %162 = vmatprep.subr.mxu0 0.0
    %163 = vmatpush1.msra.mxu0 0.0
    %164 = vmatprep.subr.mxu0 0.0
    %165 = vmatpush1.msra.mxu0 0.0
    %166 = vmatprep.subr.mxu0 0.0
    %167 = vmatpush1.msra.mxu0 0.0
    %168 = vmatprep.subr.mxu0 0.0
    %169 = vmatpush1.msra.mxu0 %v136
    %170 = vmatprep.subr.mxu0 0.0
    %171 = vmatpush2.msra.mxu0 0.0
    %172 = vmatprep.subr.mxu0 0.0
    %173 = vmatpush2.msra.mxu0 0.0
    %174 = vmatprep.subr.mxu0 0.0
    %175 = vmatpush2.msra.mxu0 0.0
    %176 = vmatprep.subr.mxu0 0.0
    %177 = vmatpush2.msra.mxu0 0.0
    %178 = vmatprep.subr.mxu0 0.0
    %179 = vmatpush2.msra.mxu0 0.0
    %180 = vmatprep.subr.mxu0 0.0
    %181 = vmatpush2.msra.mxu0 0.0
    %182 = vmatprep.subr.mxu0 0.0
    %183 = vmatpush2.msra.mxu0 0.0
    %184 = vmatprep.subr.mxu0 0.0
    %185 = vmatpush2.msra.mxu0 0.0
    %186 = vmatprep.subr.mxu0 0.0
    %187 = vmatpush2.msra.mxu0 0.0
    %188 = vmatprep.subr.mxu0 0.0
    %189 = vmatpush2.msra.mxu0 0.0
    %190 = vmatprep.subr.mxu0 0.0
    %191 = vmatpush2.msra.mxu0 0.0
    %192 = vmatprep.subr.mxu0 0.0
    %193 = vmatpush2.msra.mxu0 0.0
    %194 = vmatprep.subr.mxu0 0.0
    %195 = vmatpush2.msra.mxu0 0.0
    %196 = vmatprep.subr.mxu0 0.0
    %197 = vmatpush2.msra.mxu0 0.0
    %198 = vmatprep.subr.mxu0 0.0
    %199 = vmatpush2.msra.mxu0 0.0
    %200 = vmatprep.subr.mxu0 0.0
    %201 = vmatpush2.msra.mxu0 0.0
    %202 = vmatprep.mubr.f32.mxu0 0.0
    %203 = vmatmul.mubr.f32.gmra.mxu0 %v87
    %v204 = vpop.f32.mrf.mxu0
    %v205 = vadd.f32 %v83, %v204
    %v206 = vpop.f32.mrf.mxu0
    %207 = vmatprep.mubr.f32.mxu0 0.0
    %208 = vmatmul.mubr.f32.gmra.mxu0 %v90
    %v209 = vpop.f32.mrf.mxu0
    %v210 = vadd.f32 %v83, %v209
    %v211 = vpop.f32.mrf.mxu0
    %212 = vmatprep.mubr.f32.mxu0 0.0
    %213 = vmatmul.mubr.f32.gmra.mxu0 %v93
    %v214 = vpop.f32.mrf.mxu0
    %v215 = vadd.f32 %v83, %v214
    %v216 = vpop.f32.mrf.mxu0
    %217 = vmatprep.mubr.f32.mxu0 0.0
    %218 = vmatmul.mubr.f32.gmra.mxu0 %v96
    %v219 = vpop.f32.mrf.mxu0
    %v220 = vadd.f32 %v83, %v219
    %v221 = vpop.f32.mrf.mxu0
    %222 = vmatprep.mubr.f32.mxu0 0.0
    %223 = vmatmul.mubr.f32.gmra.mxu0 %v99
    %v224 = vpop.f32.mrf.mxu0
    %v225 = vadd.f32 %v83, %v224
    %v226 = vpop.f32.mrf.mxu0
    %227 = vmatprep.mubr.f32.mxu0 0.0
    %228 = vmatmul.mubr.f32.gmra.mxu0 %v102
    %v229 = vpop.f32.mrf.mxu0
    %v230 = vadd.f32 %v83, %v229
    %v231 = vpop.f32.mrf.mxu0
    %232 = vmatprep.mubr.f32.mxu0 0.0
    %233 = vmatmul.mubr.f32.gmra.mxu0 %v105
    %v234 = vpop.f32.mrf.mxu0
    %v235 = vadd.f32 %v83, %v234
    %v236 = vpop.f32.mrf.mxu0
    %237 = vmatprep.mubr.f32.mxu0 0.0
    %238 = vmatmul.mubr.f32.gmra.mxu0 %v108
    %v239 = vpop.f32.mrf.mxu0
    %v240 = vadd.f32 %v83, %v239
    %v241 = vpop.f32.mrf.mxu0
    %242 = vmatprep.mubr.f32.mxu0 0.0
    %243 = vmatmul.mubr.f32.gmra.mxu0 %v111
    %v244 = vpop.f32.mrf.mxu0
    %v245 = vadd.f32 %v83, %v244
    %v246 = vpop.f32.mrf.mxu0
    %247 = vmatprep.mubr.f32.mxu0 0.0
    %248 = vmatmul.mubr.f32.gmra.mxu0 %v114
    %v249 = vpop.f32.mrf.mxu0
    %v250 = vadd.f32 %v83, %v249
    %v251 = vpop.f32.mrf.mxu0
    %252 = vmatprep.mubr.f32.mxu0 0.0
    %253 = vmatmul.mubr.f32.gmra.mxu0 %v117
    %v254 = vpop.f32.mrf.mxu0
    %v255 = vadd.f32 %v83, %v254
    %v256 = vpop.f32.mrf.mxu0
    %257 = vmatprep.mubr.f32.mxu0 0.0
    %258 = vmatmul.mubr.f32.gmra.mxu0 %v120
    %v259 = vpop.f32.mrf.mxu0
    %v260 = vadd.f32 %v83, %v259
    %v261 = vpop.f32.mrf.mxu0
    %262 = vmatprep.mubr.f32.mxu0 0.0
    %263 = vmatmul.mubr.f32.gmra.mxu0 %v123
    %v264 = vpop.f32.mrf.mxu0
    %v265 = vadd.f32 %v83, %v264
    %v266 = vpop.f32.mrf.mxu0
    %267 = vmatprep.mubr.f32.mxu0 0.0
    %268 = vmatmul.mubr.f32.gmra.mxu0 %v126
    %v269 = vpop.f32.mrf.mxu0
    %v270 = vadd.f32 %v83, %v269
    %v271 = vpop.f32.mrf.mxu0
    %272 = vmatprep.mubr.f32.mxu0 0.0
    %273 = vmatmul.mubr.f32.gmra.mxu0 %v129
    %v274 = vpop.f32.mrf.mxu0
    %v275 = vadd.f32 %v83, %v274
    %v276 = vpop.f32.mrf.mxu0
    %277 = vmatprep.mubr.f32.mxu0 0.0
    %278 = vmatmul.mubr.f32.gmra.mxu0 %v132
    %v279 = vpop.f32.mrf.mxu0
    %v280 = vadd.f32 %v83, %v279
    %v281 = vpop.f32.mrf.mxu0
    %282 = vdwg.mxu0
    %v283 = vmul.f32 %v63, %v63
    %v285 = vsel %vm85, %v283, 0
    %v288 = vsel %vm134, %v66, 0
    %290 = vmatprep.subr.mxu0 0.0
    %291 = vmatpush1.msra.mxu0 0.0
    %292 = vmatprep.subr.mxu0 0.0
    %293 = vmatpush1.msra.mxu0 0.0
    %294 = vmatprep.subr.mxu0 0.0
    %295 = vmatpush1.msra.mxu0 0.0
    %296 = vmatprep.subr.mxu0 0.0
    %297 = vmatpush1.msra.mxu0 0.0
    %298 = vmatprep.subr.mxu0 0.0
    %299 = vmatpush1.msra.mxu0 0.0
    %300 = vmatprep.subr.mxu0 0.0
    %301 = vmatpush1.msra.mxu0 0.0
    %302 = vmatprep.subr.mxu0 0.0
    %303 = vmatpush1.msra.mxu0 0.0
    %304 = vmatprep.subr.mxu0 0.0
    %305 = vmatpush1.msra.mxu0 0.0
    %306 = vmatprep.subr.mxu0 0.0
    %307 = vmatpush1.msra.mxu0 0.0
    %308 = vmatprep.subr.mxu0 0.0
    %309 = vmatpush1.msra.mxu0 0.0
    %310 = vmatprep.subr.mxu0 0.0
    %311 = vmatpush1.msra.mxu0 0.0
    %312 = vmatprep.subr.mxu0 0.0
    %313 = vmatpush1.msra.mxu0 0.0
    %314 = vmatprep.subr.mxu0 0.0
    %315 = vmatpush1.msra.mxu0 0.0
    %316 = vmatprep.subr.mxu0 0.0
    %317 = vmatpush1.msra.mxu0 0.0
    %318 = vmatprep.subr.mxu0 0.0
    %319 = vmatpush1.msra.mxu0 0.0
    %320 = vmatprep.subr.mxu0 0.0
    %321 = vmatpush1.msra.mxu0 %v288
    %322 = vmatprep.subr.mxu0 0.0
    %323 = vmatpush2.msra.mxu0 0.0
    %324 = vmatprep.subr.mxu0 0.0
    %325 = vmatpush2.msra.mxu0 0.0
    %326 = vmatprep.subr.mxu0 0.0
    %327 = vmatpush2.msra.mxu0 0.0
    %328 = vmatprep.subr.mxu0 0.0
    %329 = vmatpush2.msra.mxu0 0.0
    %330 = vmatprep.subr.mxu0 0.0
    %331 = vmatpush2.msra.mxu0 0.0
    %332 = vmatprep.subr.mxu0 0.0
    %333 = vmatpush2.msra.mxu0 0.0
    %334 = vmatprep.subr.mxu0 0.0
    %335 = vmatpush2.msra.mxu0 0.0
    %336 = vmatprep.subr.mxu0 0.0
    %337 = vmatpush2.msra.mxu0 0.0
    %338 = vmatprep.subr.mxu0 0.0
    %339 = vmatpush2.msra.mxu0 0.0
    %340 = vmatprep.subr.mxu0 0.0
    %341 = vmatpush2.msra.mxu0 0.0
    %342 = vmatprep.subr.mxu0 0.0
    %343 = vmatpush2.msra.mxu0 0.0
    %344 = vmatprep.subr.mxu0 0.0
    %345 = vmatpush2.msra.mxu0 0.0
    %346 = vmatprep.subr.mxu0 0.0
    %347 = vmatpush2.msra.mxu0 0.0
    %348 = vmatprep.subr.mxu0 0.0
    %349 = vmatpush2.msra.mxu0 0.0
    %350 = vmatprep.subr.mxu0 0.0
    %351 = vmatpush2.msra.mxu0 0.0
    %352 = vmatprep.subr.mxu0 0.0
    %353 = vmatpush2.msra.mxu0 0.0
    %354 = vmatprep.mubr.f32.mxu0 0.0
    %355 = vmatmul.mubr.f32.gmra.mxu0 %v285
    %v356 = vpop.f32.mrf.mxu0
    %v357 = vadd.f32 0.0, %v356
    %v358 = vpop.f32.mrf.mxu0
    %359 = vmatprep.mubr.f32.mxu0 0.0
    %360 = vmatmul.mubr.f32.gmra.mxu0 %v285
    %v361 = vpop.f32.mrf.mxu0
    %v362 = vadd.f32 0.0, %v361
    %v363 = vpop.f32.mrf.mxu0
    %364 = vmatprep.mubr.f32.mxu0 0.0
    %365 = vmatmul.mubr.f32.gmra.mxu0 %v285
    %v366 = vpop.f32.mrf.mxu0
    %v367 = vadd.f32 0.0, %v366
    %v368 = vpop.f32.mrf.mxu0
    %369 = vmatprep.mubr.f32.mxu0 0.0
    %370 = vmatmul.mubr.f32.gmra.mxu0 %v285
    %v371 = vpop.f32.mrf.mxu0
    %v372 = vadd.f32 0.0, %v371
    %v373 = vpop.f32.mrf.mxu0
    %374 = vmatprep.mubr.f32.mxu0 0.0
    %375 = vmatmul.mubr.f32.gmra.mxu0 %v285
    %v376 = vpop.f32.mrf.mxu0
    %v377 = vadd.f32 0.0, %v376
    %v378 = vpop.f32.mrf.mxu0
    %379 = vmatprep.mubr.f32.mxu0 0.0
    %380 = vmatmul.mubr.f32.gmra.mxu0 %v285
    %v381 = vpop.f32.mrf.mxu0
    %v382 = vadd.f32 0.0, %v381
    %v383 = vpop.f32.mrf.mxu0
    %384 = vmatprep.mubr.f32.mxu0 0.0
    %385 = vmatmul.mubr.f32.gmra.mxu0 %v285
    %v386 = vpop.f32.mrf.mxu0
    %v387 = vadd.f32 0.0, %v386
    %v388 = vpop.f32.mrf.mxu0
    %389 = vmatprep.mubr.f32.mxu0 0.0
    %390 = vmatmul.mubr.f32.gmra.mxu0 %v285
    %v391 = vpop.f32.mrf.mxu0
    %v392 = vadd.f32 0.0, %v391
    %v393 = vpop.f32.mrf.mxu0
    %394 = vmatprep.mubr.f32.mxu0 0.0
    %395 = vmatmul.mubr.f32.gmra.mxu0 %v285
    %v396 = vpop.f32.mrf.mxu0
    %v397 = vadd.f32 0.0, %v396
    %v398 = vpop.f32.mrf.mxu0
    %399 = vmatprep.mubr.f32.mxu0 0.0
    %400 = vmatmul.mubr.f32.gmra.mxu0 %v285
    %v401 = vpop.f32.mrf.mxu0
    %v402 = vadd.f32 0.0, %v401
    %v403 = vpop.f32.mrf.mxu0
    %404 = vmatprep.mubr.f32.mxu0 0.0
    %405 = vmatmul.mubr.f32.gmra.mxu0 %v285
    %v406 = vpop.f32.mrf.mxu0
    %v407 = vadd.f32 0.0, %v406
    %v408 = vpop.f32.mrf.mxu0
    %409 = vmatprep.mubr.f32.mxu0 0.0
    %410 = vmatmul.mubr.f32.gmra.mxu0 %v285
    %v411 = vpop.f32.mrf.mxu0
    %v412 = vadd.f32 0.0, %v411
    %v413 = vpop.f32.mrf.mxu0
    %414 = vmatprep.mubr.f32.mxu0 0.0
    %415 = vmatmul.mubr.f32.gmra.mxu0 %v285
    %v416 = vpop.f32.mrf.mxu0
    %v417 = vadd.f32 0.0, %v416
    %v418 = vpop.f32.mrf.mxu0
    %419 = vmatprep.mubr.f32.mxu0 0.0
    %420 = vmatmul.mubr.f32.gmra.mxu0 %v285
    %v421 = vpop.f32.mrf.mxu0
    %v422 = vadd.f32 0.0, %v421
    %v423 = vpop.f32.mrf.mxu0
    %424 = vmatprep.mubr.f32.mxu0 0.0
    %425 = vmatmul.mubr.f32.gmra.mxu0 %v285
    %v426 = vpop.f32.mrf.mxu0
    %v427 = vadd.f32 0.0, %v426
    %v428 = vpop.f32.mrf.mxu0
    %429 = vmatprep.mubr.f32.mxu0 0.0
    %430 = vmatmul.mubr.f32.gmra.mxu0 %v285
    %v431 = vpop.f32.mrf.mxu0
    %v432 = vadd.f32 0.0, %v431
    %v433 = vpop.f32.mrf.mxu0
    %434 = vdwg.mxu0
    %v435 = vmax.f32 %v357, 1e-07
    %v436 = vmax.f32 %v362, 1e-07
    %v437 = vmax.f32 %v367, 1e-07
    %v438 = vmax.f32 %v372, 1e-07
    %v439 = vmax.f32 %v377, 1e-07
    %v440 = vmax.f32 %v382, 1e-07
    %v441 = vmax.f32 %v387, 1e-07
    %v442 = vmax.f32 %v392, 1e-07
    %v443 = vmax.f32 %v397, 1e-07
    %v444 = vmax.f32 %v402, 1e-07
    %v445 = vmax.f32 %v407, 1e-07
    %v446 = vmax.f32 %v412, 1e-07
    %v447 = vmax.f32 %v417, 1e-07
    %v448 = vmax.f32 %v422, 1e-07
    %v449 = vmax.f32 %v427, 1e-07
    %v450 = vmax.f32 %v432, 1e-07
    %v451 = vrsqrt.pop %v435
    %v452 = vmul.f32 %v435, %v451
    %vm453 = vcmp.eq.f32.partialorder %v435, inf
    %v454 = vsel %vm453, %v435, %v452
    %vm455 = vcmp.eq.f32.partialorder %v435, 0.0
    %v456 = vand.u32 %v435, 2147483648
    %v457 = vsel %vm455, %v456, %v454
    %v458 = vrsqrt.pop %v436
    %v459 = vmul.f32 %v436, %v458
    %vm460 = vcmp.eq.f32.partialorder %v436, inf
    %v461 = vsel %vm460, %v436, %v459
    %vm462 = vcmp.eq.f32.partialorder %v436, 0.0
    %v463 = vand.u32 %v436, 2147483648
    %v464 = vsel %vm462, %v463, %v461
    %v465 = vrsqrt.pop %v437
    %v466 = vmul.f32 %v437, %v465
    %vm467 = vcmp.eq.f32.partialorder %v437, inf
    %v468 = vsel %vm467, %v437, %v466
    %vm469 = vcmp.eq.f32.partialorder %v437, 0.0
    %v470 = vand.u32 %v437, 2147483648
    %v471 = vsel %vm469, %v470, %v468
    %v472 = vrsqrt.pop %v438
    %v473 = vmul.f32 %v438, %v472
    %vm474 = vcmp.eq.f32.partialorder %v438, inf
    %v475 = vsel %vm474, %v438, %v473
    %vm476 = vcmp.eq.f32.partialorder %v438, 0.0
    %v477 = vand.u32 %v438, 2147483648
    %v478 = vsel %vm476, %v477, %v475
    %v479 = vrsqrt.pop %v439
    %v480 = vmul.f32 %v439, %v479
    %vm481 = vcmp.eq.f32.partialorder %v439, inf
    %v482 = vsel %vm481, %v439, %v480
    %vm483 = vcmp.eq.f32.partialorder %v439, 0.0
    %v484 = vand.u32 %v439, 2147483648
    %v485 = vsel %vm483, %v484, %v482
    %v486 = vrsqrt.pop %v440
    %v487 = vmul.f32 %v440, %v486
    %vm488 = vcmp.eq.f32.partialorder %v440, inf
    %v489 = vsel %vm488, %v440, %v487
    %vm490 = vcmp.eq.f32.partialorder %v440, 0.0
    %v491 = vand.u32 %v440, 2147483648
    %v492 = vsel %vm490, %v491, %v489
    %v493 = vrsqrt.pop %v441
    %v494 = vmul.f32 %v441, %v493
    %vm495 = vcmp.eq.f32.partialorder %v441, inf
    %v496 = vsel %vm495, %v441, %v494
    %vm497 = vcmp.eq.f32.partialorder %v441, 0.0
    %v498 = vand.u32 %v441, 2147483648
    %v499 = vsel %vm497, %v498, %v496
    %v500 = vrsqrt.pop %v442
    %v501 = vmul.f32 %v442, %v500
    %vm502 = vcmp.eq.f32.partialorder %v442, inf
    %v503 = vsel %vm502, %v442, %v501
    %vm504 = vcmp.eq.f32.partialorder %v442, 0.0
    %v505 = vand.u32 %v442, 2147483648
    %v506 = vsel %vm504, %v505, %v503
    %v507 = vrsqrt.pop %v443
    %v508 = vmul.f32 %v443, %v507
    %vm509 = vcmp.eq.f32.partialorder %v443, inf
    %v510 = vsel %vm509, %v443, %v508
    %vm511 = vcmp.eq.f32.partialorder %v443, 0.0
    %v512 = vand.u32 %v443, 2147483648
    %v513 = vsel %vm511, %v512, %v510
    %v514 = vrsqrt.pop %v444
    %v515 = vmul.f32 %v444, %v514
    %vm516 = vcmp.eq.f32.partialorder %v444, inf
    %v517 = vsel %vm516, %v444, %v515
    %vm518 = vcmp.eq.f32.partialorder %v444, 0.0
    %v519 = vand.u32 %v444, 2147483648
    %v520 = vsel %vm518, %v519, %v517
    %v521 = vrsqrt.pop %v445
    %v522 = vmul.f32 %v445, %v521
    %vm523 = vcmp.eq.f32.partialorder %v445, inf
    %v524 = vsel %vm523, %v445, %v522
    %vm525 = vcmp.eq.f32.partialorder %v445, 0.0
    %v526 = vand.u32 %v445, 2147483648
    %v527 = vsel %vm525, %v526, %v524
    %v528 = vrsqrt.pop %v446
    %v529 = vmul.f32 %v446, %v528
    %vm530 = vcmp.eq.f32.partialorder %v446, inf
    %v531 = vsel %vm530, %v446, %v529
    %vm532 = vcmp.eq.f32.partialorder %v446, 0.0
    %v533 = vand.u32 %v446, 2147483648
    %v534 = vsel %vm532, %v533, %v531
    %v535 = vrsqrt.pop %v447
    %v536 = vmul.f32 %v447, %v535
    %vm537 = vcmp.eq.f32.partialorder %v447, inf
    %v538 = vsel %vm537, %v447, %v536
    %vm539 = vcmp.eq.f32.partialorder %v447, 0.0
    %v540 = vand.u32 %v447, 2147483648
    %v541 = vsel %vm539, %v540, %v538
    %v542 = vrsqrt.pop %v448
    %v543 = vmul.f32 %v448, %v542
    %vm544 = vcmp.eq.f32.partialorder %v448, inf
    %v545 = vsel %vm544, %v448, %v543
    %vm546 = vcmp.eq.f32.partialorder %v448, 0.0
    %v547 = vand.u32 %v448, 2147483648
    %v548 = vsel %vm546, %v547, %v545
    %v549 = vrsqrt.pop %v449
    %v550 = vmul.f32 %v449, %v549
    %vm551 = vcmp.eq.f32.partialorder %v449, inf
    %v552 = vsel %vm551, %v449, %v550
    %vm553 = vcmp.eq.f32.partialorder %v449, 0.0
    %v554 = vand.u32 %v449, 2147483648
    %v555 = vsel %vm553, %v554, %v552
    %v556 = vrsqrt.pop %v450
    %v557 = vmul.f32 %v450, %v556
    %vm558 = vcmp.eq.f32.partialorder %v450, inf
    %v559 = vsel %vm558, %v450, %v557
    %vm560 = vcmp.eq.f32.partialorder %v450, 0.0
    %v561 = vand.u32 %v450, 2147483648
    %v562 = vsel %vm560, %v561, %v559
    %v563 = vadd.f32 %v457, 1e-06
    %v564 = vadd.f32 %v464, 1e-06
    %v565 = vadd.f32 %v471, 1e-06
    %v566 = vadd.f32 %v478, 1e-06
    %v567 = vadd.f32 %v485, 1e-06
    %v568 = vadd.f32 %v492, 1e-06
    %v569 = vadd.f32 %v499, 1e-06
    %v570 = vadd.f32 %v506, 1e-06
    %v571 = vadd.f32 %v513, 1e-06
    %v572 = vadd.f32 %v520, 1e-06
    %v573 = vadd.f32 %v527, 1e-06
    %v574 = vadd.f32 %v534, 1e-06
    %v575 = vadd.f32 %v541, 1e-06
    %v576 = vadd.f32 %v548, 1e-06
    %v577 = vadd.f32 %v555, 1e-06
    %v578 = vadd.f32 %v562, 1e-06
    %v579 = vrcp.pop %v563
    %v580 = vmul.f32 %v205, %v579
    %v581 = vrcp.pop %v564
    %v582 = vmul.f32 %v210, %v581
    %v583 = vrcp.pop %v565
    %v584 = vmul.f32 %v215, %v583
    %v585 = vrcp.pop %v566
    %v586 = vmul.f32 %v220, %v585
    %v587 = vrcp.pop %v567
    %v588 = vmul.f32 %v225, %v587
    %v589 = vrcp.pop %v568
    %v590 = vmul.f32 %v230, %v589
    %v591 = vrcp.pop %v569
    %v592 = vmul.f32 %v235, %v591
    %v593 = vrcp.pop %v570
    %v594 = vmul.f32 %v240, %v593
    %v595 = vrcp.pop %v571
    %v596 = vmul.f32 %v245, %v595
    %v597 = vrcp.pop %v572
    %v598 = vmul.f32 %v250, %v597
    %v599 = vrcp.pop %v573
    %v600 = vmul.f32 %v255, %v599
    %v601 = vrcp.pop %v574
    %v602 = vmul.f32 %v260, %v601
    %v603 = vrcp.pop %v575
    %v604 = vmul.f32 %v265, %v603
    %v605 = vrcp.pop %v576
    %v606 = vmul.f32 %v270, %v605
    %v607 = vrcp.pop %v577
    %v608 = vmul.f32 %v275, %v607
    %v609 = vrcp.pop %v578
    %v610 = vmul.f32 %v280, %v609
    %v611 = vmul.f32 %v580, 0.70710677
    %v612 = vmul.f32 %v582, 0.70710677
    %v613 = vmul.f32 %v584, 0.70710677
    %v614 = vmul.f32 %v586, 0.70710677
    %v615 = vmul.f32 %v588, 0.70710677
    %v616 = vmul.f32 %v590, 0.70710677
    %v617 = vmul.f32 %v592, 0.70710677
    %v618 = vmul.f32 %v594, 0.70710677
    %v619 = vmul.f32 %v596, 0.70710677
    %v620 = vmul.f32 %v598, 0.70710677
    %v621 = vmul.f32 %v600, 0.70710677
    %v622 = vmul.f32 %v602, 0.70710677
    %v623 = vmul.f32 %v604, 0.70710677
    %v624 = vmul.f32 %v606, 0.70710677
    %v625 = vmul.f32 %v608, 0.70710677
    %v626 = vmul.f32 %v610, 0.70710677
    %v627 = verf.f32.pop %v611
    %v628 = verf.f32.pop %v612
    %v629 = verf.f32.pop %v613
    %v630 = verf.f32.pop %v614
    %v631 = verf.f32.pop %v615
    %v632 = verf.f32.pop %v616
    %v633 = verf.f32.pop %v617
    %v634 = verf.f32.pop %v618
    %v635 = verf.f32.pop %v619
    %v636 = verf.f32.pop %v620
    %v637 = verf.f32.pop %v621
    %v638 = verf.f32.pop %v622
    %v639 = verf.f32.pop %v623
    %v640 = verf.f32.pop %v624
    %v641 = verf.f32.pop %v625
    %v642 = verf.f32.pop %v626
    %v643 = vadd.f32 %v627, 1.0
    %v644 = vadd.f32 %v628, 1.0
    %v645 = vadd.f32 %v629, 1.0
    %v646 = vadd.f32 %v630, 1.0
    %v647 = vadd.f32 %v631, 1.0
    %v648 = vadd.f32 %v632, 1.0
    %v649 = vadd.f32 %v633, 1.0
    %v650 = vadd.f32 %v634, 1.0
    %v651 = vadd.f32 %v635, 1.0
    %v652 = vadd.f32 %v636, 1.0
    %v653 = vadd.f32 %v637, 1.0
    %v654 = vadd.f32 %v638, 1.0
    %v655 = vadd.f32 %v639, 1.0
    %v656 = vadd.f32 %v640, 1.0
    %v657 = vadd.f32 %v641, 1.0
    %v658 = vadd.f32 %v642, 1.0
    %v659 = vmul.f32 %v643, 0.5
    %v660 = vmul.f32 %v644, 0.5
    %v661 = vmul.f32 %v645, 0.5
    %v662 = vmul.f32 %v646, 0.5
    %v663 = vmul.f32 %v647, 0.5
    %v664 = vmul.f32 %v648, 0.5
    %v665 = vmul.f32 %v649, 0.5
    %v666 = vmul.f32 %v650, 0.5
    %v667 = vmul.f32 %v651, 0.5
    %v668 = vmul.f32 %v652, 0.5
    %v669 = vmul.f32 %v653, 0.5
    %v670 = vmul.f32 %v654, 0.5
    %v671 = vmul.f32 %v655, 0.5
    %v672 = vmul.f32 %v656, 0.5
    %v673 = vmul.f32 %v657, 0.5
    %v674 = vmul.f32 %v658, 0.5
    %v675 = vmul.f32 %v580, -0.5
    %v676 = vmul.f32 %v582, -0.5
    %v677 = vmul.f32 %v584, -0.5
    %v678 = vmul.f32 %v586, -0.5
    %v679 = vmul.f32 %v588, -0.5
    %v680 = vmul.f32 %v590, -0.5
    %v681 = vmul.f32 %v592, -0.5
    %v682 = vmul.f32 %v594, -0.5
    %v683 = vmul.f32 %v596, -0.5
    %v684 = vmul.f32 %v598, -0.5
    %v685 = vmul.f32 %v600, -0.5
    %v686 = vmul.f32 %v602, -0.5
    %v687 = vmul.f32 %v604, -0.5
    %v688 = vmul.f32 %v606, -0.5
    %v689 = vmul.f32 %v608, -0.5
    %v690 = vmul.f32 %v610, -0.5
    %v691 = vmul.f32 %v675, %v580
    %v692 = vmul.f32 %v676, %v582
    %v693 = vmul.f32 %v677, %v584
    %v694 = vmul.f32 %v678, %v586
    %v695 = vmul.f32 %v679, %v588
    %v696 = vmul.f32 %v680, %v590
    %v697 = vmul.f32 %v681, %v592
    %v698 = vmul.f32 %v682, %v594
    %v699 = vmul.f32 %v683, %v596
    %v700 = vmul.f32 %v684, %v598
    %v701 = vmul.f32 %v685, %v600
    %v702 = vmul.f32 %v686, %v602
    %v703 = vmul.f32 %v687, %v604
    %v704 = vmul.f32 %v688, %v606
    %v705 = vmul.f32 %v689, %v608
    %v706 = vmul.f32 %v690, %v610
    %v707 = vmul.f32 %v691, 1.442695
    %v708 = vpow.pop %v707
    %v709 = vmul.f32 %v692, 1.442695
    %v710 = vpow.pop %v709
    %v711 = vmul.f32 %v693, 1.442695
    %v712 = vpow.pop %v711
    %v713 = vmul.f32 %v694, 1.442695
    %v714 = vpow.pop %v713
    %v715 = vmul.f32 %v695, 1.442695
    %v716 = vpow.pop %v715
    %v717 = vmul.f32 %v696, 1.442695
    %v718 = vpow.pop %v717
    %v719 = vmul.f32 %v697, 1.442695
    %v720 = vpow.pop %v719
    %v721 = vmul.f32 %v698, 1.442695
    %v722 = vpow.pop %v721
    %v723 = vmul.f32 %v699, 1.442695
    %v724 = vpow.pop %v723
    %v725 = vmul.f32 %v700, 1.442695
    %v726 = vpow.pop %v725
    %v727 = vmul.f32 %v701, 1.442695
    %v728 = vpow.pop %v727
    %v729 = vmul.f32 %v702, 1.442695
    %v730 = vpow.pop %v729
    %v731 = vmul.f32 %v703, 1.442695
    %v732 = vpow.pop %v731
    %v733 = vmul.f32 %v704, 1.442695
    %v734 = vpow.pop %v733
    %v735 = vmul.f32 %v705, 1.442695
    %v736 = vpow.pop %v735
    %v737 = vmul.f32 %v706, 1.442695
    %v738 = vpow.pop %v737
    %v739 = vmul.f32 %v708, 0.3989423
    %v740 = vmul.f32 %v710, 0.3989423
    %v741 = vmul.f32 %v712, 0.3989423
    %v742 = vmul.f32 %v714, 0.3989423
    %v743 = vmul.f32 %v716, 0.3989423
    %v744 = vmul.f32 %v718, 0.3989423
    %v745 = vmul.f32 %v720, 0.3989423
    %v746 = vmul.f32 %v722, 0.3989423
    %v747 = vmul.f32 %v724, 0.3989423
    %v748 = vmul.f32 %v726, 0.3989423
    %v749 = vmul.f32 %v728, 0.3989423
    %v750 = vmul.f32 %v730, 0.3989423
    %v751 = vmul.f32 %v732, 0.3989423
    %v752 = vmul.f32 %v734, 0.3989423
    %v753 = vmul.f32 %v736, 0.3989423
    %v754 = vmul.f32 %v738, 0.3989423
    %v755 = vmul.f32 %v205, %v659
    %v756 = vmul.f32 %v210, %v660
    %v757 = vmul.f32 %v215, %v661
    %v758 = vmul.f32 %v220, %v662
    %v759 = vmul.f32 %v225, %v663
    %v760 = vmul.f32 %v230, %v664
    %v761 = vmul.f32 %v235, %v665
    %v762 = vmul.f32 %v240, %v666
    %v763 = vmul.f32 %v245, %v667
    %v764 = vmul.f32 %v250, %v668
    %v765 = vmul.f32 %v255, %v669
    %v766 = vmul.f32 %v260, %v670
    %v767 = vmul.f32 %v265, %v671
    %v768 = vmul.f32 %v270, %v672
    %v769 = vmul.f32 %v275, %v673
    %v770 = vmul.f32 %v280, %v674
    %v771 = vmul.f32 %v563, %v739
    %v772 = vmul.f32 %v564, %v740
    %v773 = vmul.f32 %v565, %v741
    %v774 = vmul.f32 %v566, %v742
    %v775 = vmul.f32 %v567, %v743
    %v776 = vmul.f32 %v568, %v744
    %v777 = vmul.f32 %v569, %v745
    %v778 = vmul.f32 %v570, %v746
    %v779 = vmul.f32 %v571, %v747
    %v780 = vmul.f32 %v572, %v748
    %v781 = vmul.f32 %v573, %v749
    %v782 = vmul.f32 %v574, %v750
    %v783 = vmul.f32 %v575, %v751
    %v784 = vmul.f32 %v576, %v752
    %v785 = vmul.f32 %v577, %v753
    %v786 = vmul.f32 %v578, %v754
    %v787 = vadd.f32 %v755, %v771
    %v788 = vadd.f32 %v756, %v772
    %v789 = vadd.f32 %v757, %v773
    %v790 = vadd.f32 %v758, %v774
    %v791 = vadd.f32 %v759, %v775
    %v792 = vadd.f32 %v760, %v776
    %v793 = vadd.f32 %v761, %v777
    %v794 = vadd.f32 %v762, %v778
    %v795 = vadd.f32 %v763, %v779
    %v796 = vadd.f32 %v764, %v780
    %v797 = vadd.f32 %v765, %v781
    %v798 = vadd.f32 %v766, %v782
    %v799 = vadd.f32 %v767, %v783
    %v800 = vadd.f32 %v768, %v784
    %v801 = vadd.f32 %v769, %v785
    %v802 = vadd.f32 %v770, %v786
    %v803 = vmul.f32 %v205, %v205
    %v804 = vmul.f32 %v210, %v210
    %v805 = vmul.f32 %v215, %v215
    %v806 = vmul.f32 %v220, %v220
    %v807 = vmul.f32 %v225, %v225
    %v808 = vmul.f32 %v230, %v230
    %v809 = vmul.f32 %v235, %v235
    %v810 = vmul.f32 %v240, %v240
    %v811 = vmul.f32 %v245, %v245
    %v812 = vmul.f32 %v250, %v250
    %v813 = vmul.f32 %v255, %v255
    %v814 = vmul.f32 %v260, %v260
    %v815 = vmul.f32 %v265, %v265
    %v816 = vmul.f32 %v270, %v270
    %v817 = vmul.f32 %v275, %v275
    %v818 = vmul.f32 %v280, %v280
    %v819 = vmul.f32 %v563, %v563
    %v820 = vmul.f32 %v564, %v564
    %v821 = vmul.f32 %v565, %v565
    %v822 = vmul.f32 %v566, %v566
    %v823 = vmul.f32 %v567, %v567
    %v824 = vmul.f32 %v568, %v568
    %v825 = vmul.f32 %v569, %v569
    %v826 = vmul.f32 %v570, %v570
    %v827 = vmul.f32 %v571, %v571
    %v828 = vmul.f32 %v572, %v572
    %v829 = vmul.f32 %v573, %v573
    %v830 = vmul.f32 %v574, %v574
    %v831 = vmul.f32 %v575, %v575
    %v832 = vmul.f32 %v576, %v576
    %v833 = vmul.f32 %v577, %v577
    %v834 = vmul.f32 %v578, %v578
    %v835 = vadd.f32 %v803, %v819
    %v836 = vadd.f32 %v804, %v820
    %v837 = vadd.f32 %v805, %v821
    %v838 = vadd.f32 %v806, %v822
    %v839 = vadd.f32 %v807, %v823
    %v840 = vadd.f32 %v808, %v824
    %v841 = vadd.f32 %v809, %v825
    %v842 = vadd.f32 %v810, %v826
    %v843 = vadd.f32 %v811, %v827
    %v844 = vadd.f32 %v812, %v828
    %v845 = vadd.f32 %v813, %v829
    %v846 = vadd.f32 %v814, %v830
    %v847 = vadd.f32 %v815, %v831
    %v848 = vadd.f32 %v816, %v832
    %v849 = vadd.f32 %v817, %v833
    %v850 = vadd.f32 %v818, %v834
    %v851 = vmul.f32 %v835, %v659
    %v852 = vmul.f32 %v836, %v660
    %v853 = vmul.f32 %v837, %v661
    %v854 = vmul.f32 %v838, %v662
    %v855 = vmul.f32 %v839, %v663
    %v856 = vmul.f32 %v840, %v664
    %v857 = vmul.f32 %v841, %v665
    %v858 = vmul.f32 %v842, %v666
    %v859 = vmul.f32 %v843, %v667
    %v860 = vmul.f32 %v844, %v668
    %v861 = vmul.f32 %v845, %v669
    %v862 = vmul.f32 %v846, %v670
    %v863 = vmul.f32 %v847, %v671
    %v864 = vmul.f32 %v848, %v672
    %v865 = vmul.f32 %v849, %v673
    %v866 = vmul.f32 %v850, %v674
    %v867 = vmul.f32 %v205, %v563
    %v868 = vmul.f32 %v210, %v564
    %v869 = vmul.f32 %v215, %v565
    %v870 = vmul.f32 %v220, %v566
    %v871 = vmul.f32 %v225, %v567
    %v872 = vmul.f32 %v230, %v568
    %v873 = vmul.f32 %v235, %v569
    %v874 = vmul.f32 %v240, %v570
    %v875 = vmul.f32 %v245, %v571
    %v876 = vmul.f32 %v250, %v572
    %v877 = vmul.f32 %v255, %v573
    %v878 = vmul.f32 %v260, %v574
    %v879 = vmul.f32 %v265, %v575
    %v880 = vmul.f32 %v270, %v576
    %v881 = vmul.f32 %v275, %v577
    %v882 = vmul.f32 %v280, %v578
    %v883 = vmul.f32 %v867, %v739
    %v884 = vmul.f32 %v868, %v740
    %v885 = vmul.f32 %v869, %v741
    %v886 = vmul.f32 %v870, %v742
    %v887 = vmul.f32 %v871, %v743
    %v888 = vmul.f32 %v872, %v744
    %v889 = vmul.f32 %v873, %v745
    %v890 = vmul.f32 %v874, %v746
    %v891 = vmul.f32 %v875, %v747
    %v892 = vmul.f32 %v876, %v748
    %v893 = vmul.f32 %v877, %v749
    %v894 = vmul.f32 %v878, %v750
    %v895 = vmul.f32 %v879, %v751
    %v896 = vmul.f32 %v880, %v752
    %v897 = vmul.f32 %v881, %v753
    %v898 = vmul.f32 %v882, %v754
    %v899 = vadd.f32 %v851, %v883
    %v900 = vadd.f32 %v852, %v884
    %v901 = vadd.f32 %v853, %v885
    %v902 = vadd.f32 %v854, %v886
    %v903 = vadd.f32 %v855, %v887
    %v904 = vadd.f32 %v856, %v888
    %v905 = vadd.f32 %v857, %v889
    %v906 = vadd.f32 %v858, %v890
    %v907 = vadd.f32 %v859, %v891
    %v908 = vadd.f32 %v860, %v892
    %v909 = vadd.f32 %v861, %v893
    %v910 = vadd.f32 %v862, %v894
    %v911 = vadd.f32 %v863, %v895
    %v912 = vadd.f32 %v864, %v896
    %v913 = vadd.f32 %v865, %v897
    %v914 = vadd.f32 %v866, %v898
    %v915 = vmul.f32 %v787, %v787
    %v916 = vmul.f32 %v788, %v788
    %v917 = vmul.f32 %v789, %v789
    %v918 = vmul.f32 %v790, %v790
    %v919 = vmul.f32 %v791, %v791
    %v920 = vmul.f32 %v792, %v792
    %v921 = vmul.f32 %v793, %v793
    %v922 = vmul.f32 %v794, %v794
    %v923 = vmul.f32 %v795, %v795
    %v924 = vmul.f32 %v796, %v796
    %v925 = vmul.f32 %v797, %v797
    %v926 = vmul.f32 %v798, %v798
    %v927 = vmul.f32 %v799, %v799
    %v928 = vmul.f32 %v800, %v800
    %v929 = vmul.f32 %v801, %v801
    %v930 = vmul.f32 %v802, %v802
    %v931 = vsub.f32 %v899, %v915
    %v932 = vsub.f32 %v900, %v916
    %v933 = vsub.f32 %v901, %v917
    %v934 = vsub.f32 %v902, %v918
    %v935 = vsub.f32 %v903, %v919
    %v936 = vsub.f32 %v904, %v920
    %v937 = vsub.f32 %v905, %v921
    %v938 = vsub.f32 %v906, %v922
    %v939 = vsub.f32 %v907, %v923
    %v940 = vsub.f32 %v908, %v924
    %v941 = vsub.f32 %v909, %v925
    %v942 = vsub.f32 %v910, %v926
    %v943 = vsub.f32 %v911, %v927
    %v944 = vsub.f32 %v912, %v928
    %v945 = vsub.f32 %v913, %v929
    %v946 = vsub.f32 %v914, %v930
    %v947 = vadd.f32 %v931, 1e-06
    %v948 = vadd.f32 %v932, 1e-06
    %v949 = vadd.f32 %v933, 1e-06
    %v950 = vadd.f32 %v934, 1e-06
    %v951 = vadd.f32 %v935, 1e-06
    %v952 = vadd.f32 %v936, 1e-06
    %v953 = vadd.f32 %v937, 1e-06
    %v954 = vadd.f32 %v938, 1e-06
    %v955 = vadd.f32 %v939, 1e-06
    %v956 = vadd.f32 %v940, 1e-06
    %v957 = vadd.f32 %v941, 1e-06
    %v958 = vadd.f32 %v942, 1e-06
    %v959 = vadd.f32 %v943, 1e-06
    %v960 = vadd.f32 %v944, 1e-06
    %v961 = vadd.f32 %v945, 1e-06
    %v962 = vadd.f32 %v946, 1e-06
    %v963 = vmax.f32 %v947, 1e-06
    %v964 = vmax.f32 %v948, 1e-06
    %v965 = vmax.f32 %v949, 1e-06
    %v966 = vmax.f32 %v950, 1e-06
    %v967 = vmax.f32 %v951, 1e-06
    %v968 = vmax.f32 %v952, 1e-06
    %v969 = vmax.f32 %v953, 1e-06
    %v970 = vmax.f32 %v954, 1e-06
    %v971 = vmax.f32 %v955, 1e-06
    %v972 = vmax.f32 %v956, 1e-06
    %v973 = vmax.f32 %v957, 1e-06
    %v974 = vmax.f32 %v958, 1e-06
    %v975 = vmax.f32 %v959, 1e-06
    %v976 = vmax.f32 %v960, 1e-06
    %v977 = vmax.f32 %v961, 1e-06
    %v978 = vmax.f32 %v962, 1e-06
    %v979 = vrsqrt.pop %v963
    %v980 = vmul.f32 %v963, %v979
    %vm981 = vcmp.eq.f32.partialorder %v963, inf
    %v982 = vsel %vm981, %v963, %v980
    %vm983 = vcmp.eq.f32.partialorder %v963, 0.0
    %v984 = vand.u32 %v963, 2147483648
    %v985 = vsel %vm983, %v984, %v982
    %v986 = vrsqrt.pop %v964
    %v987 = vmul.f32 %v964, %v986
    %vm988 = vcmp.eq.f32.partialorder %v964, inf
    %v989 = vsel %vm988, %v964, %v987
    %vm990 = vcmp.eq.f32.partialorder %v964, 0.0
    %v991 = vand.u32 %v964, 2147483648
    %v992 = vsel %vm990, %v991, %v989
    %v993 = vrsqrt.pop %v965
    %v994 = vmul.f32 %v965, %v993
    %vm995 = vcmp.eq.f32.partialorder %v965, inf
    %v996 = vsel %vm995, %v965, %v994
    %vm997 = vcmp.eq.f32.partialorder %v965, 0.0
    %v998 = vand.u32 %v965, 2147483648
    %v999 = vsel %vm997, %v998, %v996
    %v1000 = vrsqrt.pop %v966
    %v1001 = vmul.f32 %v966, %v1000
    %vm1002 = vcmp.eq.f32.partialorder %v966, inf
    %v1003 = vsel %vm1002, %v966, %v1001
    %vm1004 = vcmp.eq.f32.partialorder %v966, 0.0
    %v1005 = vand.u32 %v966, 2147483648
    %v1006 = vsel %vm1004, %v1005, %v1003
    %v1007 = vrsqrt.pop %v967
    %v1008 = vmul.f32 %v967, %v1007
    %vm1009 = vcmp.eq.f32.partialorder %v967, inf
    %v1010 = vsel %vm1009, %v967, %v1008
    %vm1011 = vcmp.eq.f32.partialorder %v967, 0.0
    %v1012 = vand.u32 %v967, 2147483648
    %v1013 = vsel %vm1011, %v1012, %v1010
    %v1014 = vrsqrt.pop %v968
    %v1015 = vmul.f32 %v968, %v1014
    %vm1016 = vcmp.eq.f32.partialorder %v968, inf
    %v1017 = vsel %vm1016, %v968, %v1015
    %vm1018 = vcmp.eq.f32.partialorder %v968, 0.0
    %v1019 = vand.u32 %v968, 2147483648
    %v1020 = vsel %vm1018, %v1019, %v1017
    %v1021 = vrsqrt.pop %v969
    %v1022 = vmul.f32 %v969, %v1021
    %vm1023 = vcmp.eq.f32.partialorder %v969, inf
    %v1024 = vsel %vm1023, %v969, %v1022
    %vm1025 = vcmp.eq.f32.partialorder %v969, 0.0
    %v1026 = vand.u32 %v969, 2147483648
    %v1027 = vsel %vm1025, %v1026, %v1024
    %v1028 = vrsqrt.pop %v970
    %v1029 = vmul.f32 %v970, %v1028
    %vm1030 = vcmp.eq.f32.partialorder %v970, inf
    %v1031 = vsel %vm1030, %v970, %v1029
    %vm1032 = vcmp.eq.f32.partialorder %v970, 0.0
    %v1033 = vand.u32 %v970, 2147483648
    %v1034 = vsel %vm1032, %v1033, %v1031
    %v1035 = vrsqrt.pop %v971
    %v1036 = vmul.f32 %v971, %v1035
    %vm1037 = vcmp.eq.f32.partialorder %v971, inf
    %v1038 = vsel %vm1037, %v971, %v1036
    %vm1039 = vcmp.eq.f32.partialorder %v971, 0.0
    %v1040 = vand.u32 %v971, 2147483648
    %v1041 = vsel %vm1039, %v1040, %v1038
    %v1042 = vrsqrt.pop %v972
    %v1043 = vmul.f32 %v972, %v1042
    %vm1044 = vcmp.eq.f32.partialorder %v972, inf
    %v1045 = vsel %vm1044, %v972, %v1043
    %vm1046 = vcmp.eq.f32.partialorder %v972, 0.0
    %v1047 = vand.u32 %v972, 2147483648
    %v1048 = vsel %vm1046, %v1047, %v1045
    %v1049 = vrsqrt.pop %v973
    %v1050 = vmul.f32 %v973, %v1049
    %vm1051 = vcmp.eq.f32.partialorder %v973, inf
    %v1052 = vsel %vm1051, %v973, %v1050
    %vm1053 = vcmp.eq.f32.partialorder %v973, 0.0
    %v1054 = vand.u32 %v973, 2147483648
    %v1055 = vsel %vm1053, %v1054, %v1052
    %v1056 = vrsqrt.pop %v974
    %v1057 = vmul.f32 %v974, %v1056
    %vm1058 = vcmp.eq.f32.partialorder %v974, inf
    %v1059 = vsel %vm1058, %v974, %v1057
    %vm1060 = vcmp.eq.f32.partialorder %v974, 0.0
    %v1061 = vand.u32 %v974, 2147483648
    %v1062 = vsel %vm1060, %v1061, %v1059
    %v1063 = vrsqrt.pop %v975
    %v1064 = vmul.f32 %v975, %v1063
    %vm1065 = vcmp.eq.f32.partialorder %v975, inf
    %v1066 = vsel %vm1065, %v975, %v1064
    %vm1067 = vcmp.eq.f32.partialorder %v975, 0.0
    %v1068 = vand.u32 %v975, 2147483648
    %v1069 = vsel %vm1067, %v1068, %v1066
    %v1070 = vrsqrt.pop %v976
    %v1071 = vmul.f32 %v976, %v1070
    %vm1072 = vcmp.eq.f32.partialorder %v976, inf
    %v1073 = vsel %vm1072, %v976, %v1071
    %vm1074 = vcmp.eq.f32.partialorder %v976, 0.0
    %v1075 = vand.u32 %v976, 2147483648
    %v1076 = vsel %vm1074, %v1075, %v1073
    %v1077 = vrsqrt.pop %v977
    %v1078 = vmul.f32 %v977, %v1077
    %vm1079 = vcmp.eq.f32.partialorder %v977, inf
    %v1080 = vsel %vm1079, %v977, %v1078
    %vm1081 = vcmp.eq.f32.partialorder %v977, 0.0
    %v1082 = vand.u32 %v977, 2147483648
    %v1083 = vsel %vm1081, %v1082, %v1080
    %v1084 = vrsqrt.pop %v978
    %v1085 = vmul.f32 %v978, %v1084
    %vm1086 = vcmp.eq.f32.partialorder %v978, inf
    %v1087 = vsel %vm1086, %v978, %v1085
    %vm1088 = vcmp.eq.f32.partialorder %v978, 0.0
    %v1089 = vand.u32 %v978, 2147483648
    %v1090 = vsel %vm1088, %v1089, %v1087
    %v1092 = vlaneseq
    %v1093 = vshrl.u32 %v1092, 7
    %v1094 = vsub.s32 0, %v1093
    %v1095 = vrot.slane %v69, %v1094
    %vm1097 = vcmask 261120
    %v1099 = vsel %vm1097, %v787, 0
    %v1102 = vsel %vm1097, %v788, 0
    %v1105 = vsel %vm1097, %v789, 0
    %v1108 = vsel %vm1097, %v790, 0
    %v1111 = vsel %vm1097, %v791, 0
    %v1114 = vsel %vm1097, %v792, 0
    %v1117 = vsel %vm1097, %v793, 0
    %v1120 = vsel %vm1097, %v794, 0
    %v1123 = vsel %vm1097, %v795, 0
    %v1126 = vsel %vm1097, %v796, 0
    %v1129 = vsel %vm1097, %v797, 0
    %v1132 = vsel %vm1097, %v798, 0
    %v1135 = vsel %vm1097, %v799, 0
    %v1138 = vsel %vm1097, %v800, 0
    %v1141 = vsel %vm1097, %v801, 0
    %v1144 = vsel %vm1097, %v802, 0
    %1146 = vmatprep.subr.mxu0 0.0
    %1147 = vmatpush1.msra.mxu0 0.0
    %1148 = vmatprep.subr.mxu0 0.0
    %1149 = vmatpush1.msra.mxu0 0.0
    %1150 = vmatprep.subr.mxu0 0.0
    %1151 = vmatpush1.msra.mxu0 0.0
    %1152 = vmatprep.subr.mxu0 0.0
    %1153 = vmatpush1.msra.mxu0 0.0
    %1154 = vmatprep.subr.mxu0 0.0
    %1155 = vmatpush1.msra.mxu0 0.0
    %1156 = vmatprep.subr.mxu0 0.0
    %1157 = vmatpush1.msra.mxu0 0.0
    %1158 = vmatprep.subr.mxu0 0.0
    %1159 = vmatpush1.msra.mxu0 0.0
    %1160 = vmatprep.subr.mxu0 0.0
    %1161 = vmatpush1.msra.mxu0 0.0
    %1162 = vmatprep.subr.mxu0 0.0
    %1163 = vmatpush1.msra.mxu0 0.0
    %1164 = vmatprep.subr.mxu0 0.0
    %1165 = vmatpush1.msra.mxu0 0.0
    %1166 = vmatprep.subr.mxu0 0.0
    %1167 = vmatpush1.msra.mxu0 0.0
    %1168 = vmatprep.subr.mxu0 0.0
    %1169 = vmatpush1.msra.mxu0 0.0
    %1170 = vmatprep.subr.mxu0 0.0
    %1171 = vmatpush1.msra.mxu0 %v73
    %1172 = vmatprep.subr.mxu0 0.0
    %1173 = vmatpush1.msra.mxu0 %v72
    %1174 = vmatprep.subr.mxu0 0.0
    %1175 = vmatpush1.msra.mxu0 %v71
    %1176 = vmatprep.subr.mxu0 0.0
    %1177 = vmatpush1.msra.mxu0 %v70
    %1178 = vmatprep.subr.mxu0 0.0
    %1179 = vmatpush2.msra.mxu0 0.0
    %1180 = vmatprep.subr.mxu0 0.0
    %1181 = vmatpush2.msra.mxu0 0.0
    %1182 = vmatprep.subr.mxu0 0.0
    %1183 = vmatpush2.msra.mxu0 0.0
    %1184 = vmatprep.subr.mxu0 0.0
    %1185 = vmatpush2.msra.mxu0 0.0
    %1186 = vmatprep.subr.mxu0 0.0
    %1187 = vmatpush2.msra.mxu0 0.0
    %1188 = vmatprep.subr.mxu0 0.0
    %1189 = vmatpush2.msra.mxu0 0.0
    %1190 = vmatprep.subr.mxu0 0.0
    %1191 = vmatpush2.msra.mxu0 0.0
    %1192 = vmatprep.subr.mxu0 0.0
    %1193 = vmatpush2.msra.mxu0 0.0
    %1194 = vmatprep.subr.mxu0 0.0
    %1195 = vmatpush2.msra.mxu0 0.0
    %1196 = vmatprep.subr.mxu0 0.0
    %1197 = vmatpush2.msra.mxu0 0.0
    %1198 = vmatprep.subr.mxu0 0.0
    %1199 = vmatpush2.msra.mxu0 0.0
    %1200 = vmatprep.subr.mxu0 0.0
    %1201 = vmatpush2.msra.mxu0 0.0
    %1202 = vmatprep.subr.mxu0 0.0
    %1203 = vmatpush2.msra.mxu0 0.0
    %1204 = vmatprep.subr.mxu0 0.0
    %1205 = vmatpush2.msra.mxu0 0.0
    %1206 = vmatprep.subr.mxu0 0.0
    %1207 = vmatpush2.msra.mxu0 0.0
    %1208 = vmatprep.subr.mxu0 0.0
    %1209 = vmatpush2.msra.mxu0 0.0
    %1210 = vmatprep.mubr.f32.mxu0 0.0
    %1211 = vmatmul.mubr.f32.gmra.mxu0 %v1099
    %v1212 = vpop.f32.mrf.mxu0
    %v1213 = vadd.f32 %v1095, %v1212
    %v1214 = vpop.f32.mrf.mxu0
    %1215 = vmatprep.mubr.f32.mxu0 0.0
    %1216 = vmatmul.mubr.f32.gmra.mxu0 %v1102
    %v1217 = vpop.f32.mrf.mxu0
    %v1218 = vadd.f32 %v1095, %v1217
    %v1219 = vpop.f32.mrf.mxu0
    %1220 = vmatprep.mubr.f32.mxu0 0.0
    %1221 = vmatmul.mubr.f32.gmra.mxu0 %v1105
    %v1222 = vpop.f32.mrf.mxu0
    %v1223 = vadd.f32 %v1095, %v1222
    %v1224 = vpop.f32.mrf.mxu0
    %1225 = vmatprep.mubr.f32.mxu0 0.0
    %1226 = vmatmul.mubr.f32.gmra.mxu0 %v1108
    %v1227 = vpop.f32.mrf.mxu0
    %v1228 = vadd.f32 %v1095, %v1227
    %v1229 = vpop.f32.mrf.mxu0
    %1230 = vmatprep.mubr.f32.mxu0 0.0
    %1231 = vmatmul.mubr.f32.gmra.mxu0 %v1111
    %v1232 = vpop.f32.mrf.mxu0
    %v1233 = vadd.f32 %v1095, %v1232
    %v1234 = vpop.f32.mrf.mxu0
    %1235 = vmatprep.mubr.f32.mxu0 0.0
    %1236 = vmatmul.mubr.f32.gmra.mxu0 %v1114
    %v1237 = vpop.f32.mrf.mxu0
    %v1238 = vadd.f32 %v1095, %v1237
    %v1239 = vpop.f32.mrf.mxu0
    %1240 = vmatprep.mubr.f32.mxu0 0.0
    %1241 = vmatmul.mubr.f32.gmra.mxu0 %v1117
    %v1242 = vpop.f32.mrf.mxu0
    %v1243 = vadd.f32 %v1095, %v1242
    %v1244 = vpop.f32.mrf.mxu0
    %1245 = vmatprep.mubr.f32.mxu0 0.0
    %1246 = vmatmul.mubr.f32.gmra.mxu0 %v1120
    %v1247 = vpop.f32.mrf.mxu0
    %v1248 = vadd.f32 %v1095, %v1247
    %v1249 = vpop.f32.mrf.mxu0
    %1250 = vmatprep.mubr.f32.mxu0 0.0
    %1251 = vmatmul.mubr.f32.gmra.mxu0 %v1123
    %v1252 = vpop.f32.mrf.mxu0
    %v1253 = vadd.f32 %v1095, %v1252
    %v1254 = vpop.f32.mrf.mxu0
    %1255 = vmatprep.mubr.f32.mxu0 0.0
    %1256 = vmatmul.mubr.f32.gmra.mxu0 %v1126
    %v1257 = vpop.f32.mrf.mxu0
    %v1258 = vadd.f32 %v1095, %v1257
    %v1259 = vpop.f32.mrf.mxu0
    %1260 = vmatprep.mubr.f32.mxu0 0.0
    %1261 = vmatmul.mubr.f32.gmra.mxu0 %v1129
    %v1262 = vpop.f32.mrf.mxu0
    %v1263 = vadd.f32 %v1095, %v1262
    %v1264 = vpop.f32.mrf.mxu0
    %1265 = vmatprep.mubr.f32.mxu0 0.0
    %1266 = vmatmul.mubr.f32.gmra.mxu0 %v1132
    %v1267 = vpop.f32.mrf.mxu0
    %v1268 = vadd.f32 %v1095, %v1267
    %v1269 = vpop.f32.mrf.mxu0
    %1270 = vmatprep.mubr.f32.mxu0 0.0
    %1271 = vmatmul.mubr.f32.gmra.mxu0 %v1135
    %v1272 = vpop.f32.mrf.mxu0
    %v1273 = vadd.f32 %v1095, %v1272
    %v1274 = vpop.f32.mrf.mxu0
    %1275 = vmatprep.mubr.f32.mxu0 0.0
    %1276 = vmatmul.mubr.f32.gmra.mxu0 %v1138
    %v1277 = vpop.f32.mrf.mxu0
    %v1278 = vadd.f32 %v1095, %v1277
    %v1279 = vpop.f32.mrf.mxu0
    %1280 = vmatprep.mubr.f32.mxu0 0.0
    %1281 = vmatmul.mubr.f32.gmra.mxu0 %v1141
    %v1282 = vpop.f32.mrf.mxu0
    %v1283 = vadd.f32 %v1095, %v1282
    %v1284 = vpop.f32.mrf.mxu0
    %1285 = vmatprep.mubr.f32.mxu0 0.0
    %1286 = vmatmul.mubr.f32.gmra.mxu0 %v1144
    %v1287 = vpop.f32.mrf.mxu0
    %v1288 = vadd.f32 %v1095, %v1287
    %v1289 = vpop.f32.mrf.mxu0
    %1290 = vdwg.mxu0
    %v1291 = vmul.f32 %v985, %v985
    %v1292 = vmul.f32 %v992, %v992
    %v1293 = vmul.f32 %v999, %v999
    %v1294 = vmul.f32 %v1006, %v1006
    %v1295 = vmul.f32 %v1013, %v1013
    %v1296 = vmul.f32 %v1020, %v1020
    %v1297 = vmul.f32 %v1027, %v1027
    %v1298 = vmul.f32 %v1034, %v1034
    %v1299 = vmul.f32 %v1041, %v1041
    %v1300 = vmul.f32 %v1048, %v1048
    %v1301 = vmul.f32 %v1055, %v1055
    %v1302 = vmul.f32 %v1062, %v1062
    %v1303 = vmul.f32 %v1069, %v1069
    %v1304 = vmul.f32 %v1076, %v1076
    %v1305 = vmul.f32 %v1083, %v1083
    %v1306 = vmul.f32 %v1090, %v1090
    %v1308 = vsel %vm1097, %v1291, 0
    %v1311 = vsel %vm1097, %v1292, 0
    %v1314 = vsel %vm1097, %v1293, 0
    %v1317 = vsel %vm1097, %v1294, 0
    %v1320 = vsel %vm1097, %v1295, 0
    %v1323 = vsel %vm1097, %v1296, 0
    %v1326 = vsel %vm1097, %v1297, 0
    %v1329 = vsel %vm1097, %v1298, 0
    %v1332 = vsel %vm1097, %v1299, 0
    %v1335 = vsel %vm1097, %v1300, 0
    %v1338 = vsel %vm1097, %v1301, 0
    %v1341 = vsel %vm1097, %v1302, 0
    %v1344 = vsel %vm1097, %v1303, 0
    %v1347 = vsel %vm1097, %v1304, 0
    %v1350 = vsel %vm1097, %v1305, 0
    %v1353 = vsel %vm1097, %v1306, 0
    %1355 = vmatprep.subr.mxu0 0.0
    %1356 = vmatpush1.msra.mxu0 0.0
    %1357 = vmatprep.subr.mxu0 0.0
    %1358 = vmatpush1.msra.mxu0 0.0
    %1359 = vmatprep.subr.mxu0 0.0
    %1360 = vmatpush1.msra.mxu0 0.0
    %1361 = vmatprep.subr.mxu0 0.0
    %1362 = vmatpush1.msra.mxu0 0.0
    %1363 = vmatprep.subr.mxu0 0.0
    %1364 = vmatpush1.msra.mxu0 0.0
    %1365 = vmatprep.subr.mxu0 0.0
    %1366 = vmatpush1.msra.mxu0 0.0
    %1367 = vmatprep.subr.mxu0 0.0
    %1368 = vmatpush1.msra.mxu0 0.0
    %1369 = vmatprep.subr.mxu0 0.0
    %1370 = vmatpush1.msra.mxu0 0.0
    %1371 = vmatprep.subr.mxu0 0.0
    %1372 = vmatpush1.msra.mxu0 0.0
    %1373 = vmatprep.subr.mxu0 0.0
    %1374 = vmatpush1.msra.mxu0 0.0
    %1375 = vmatprep.subr.mxu0 0.0
    %1376 = vmatpush1.msra.mxu0 0.0
    %1377 = vmatprep.subr.mxu0 0.0
    %1378 = vmatpush1.msra.mxu0 0.0
    %1379 = vmatprep.subr.mxu0 0.0
    %1380 = vmatpush1.msra.mxu0 %v78
    %1381 = vmatprep.subr.mxu0 0.0
    %1382 = vmatpush1.msra.mxu0 %v77
    %1383 = vmatprep.subr.mxu0 0.0
    %1384 = vmatpush1.msra.mxu0 %v76
    %1385 = vmatprep.subr.mxu0 0.0
    %1386 = vmatpush1.msra.mxu0 %v75
    %1387 = vmatprep.subr.mxu0 0.0
    %1388 = vmatpush2.msra.mxu0 0.0
    %1389 = vmatprep.subr.mxu0 0.0
    %1390 = vmatpush2.msra.mxu0 0.0
    %1391 = vmatprep.subr.mxu0 0.0
    %1392 = vmatpush2.msra.mxu0 0.0
    %1393 = vmatprep.subr.mxu0 0.0
    %1394 = vmatpush2.msra.mxu0 0.0
    %1395 = vmatprep.subr.mxu0 0.0
    %1396 = vmatpush2.msra.mxu0 0.0
    %1397 = vmatprep.subr.mxu0 0.0
    %1398 = vmatpush2.msra.mxu0 0.0
    %1399 = vmatprep.subr.mxu0 0.0
    %1400 = vmatpush2.msra.mxu0 0.0
    %1401 = vmatprep.subr.mxu0 0.0
    %1402 = vmatpush2.msra.mxu0 0.0
    %1403 = vmatprep.subr.mxu0 0.0
    %1404 = vmatpush2.msra.mxu0 0.0
    %1405 = vmatprep.subr.mxu0 0.0
    %1406 = vmatpush2.msra.mxu0 0.0
    %1407 = vmatprep.subr.mxu0 0.0
    %1408 = vmatpush2.msra.mxu0 0.0
    %1409 = vmatprep.subr.mxu0 0.0
    %1410 = vmatpush2.msra.mxu0 0.0
    %1411 = vmatprep.subr.mxu0 0.0
    %1412 = vmatpush2.msra.mxu0 0.0
    %1413 = vmatprep.subr.mxu0 0.0
    %1414 = vmatpush2.msra.mxu0 0.0
    %1415 = vmatprep.subr.mxu0 0.0
    %1416 = vmatpush2.msra.mxu0 0.0
    %1417 = vmatprep.subr.mxu0 0.0
    %1418 = vmatpush2.msra.mxu0 0.0
    %1419 = vmatprep.mubr.f32.mxu0 0.0
    %1420 = vmatmul.mubr.f32.gmra.mxu0 %v1308
    %v1421 = vpop.f32.mrf.mxu0
    %v1422 = vadd.f32 0.0, %v1421
    %v1423 = vpop.f32.mrf.mxu0
    %1424 = vmatprep.mubr.f32.mxu0 0.0
    %1425 = vmatmul.mubr.f32.gmra.mxu0 %v1311
    %v1426 = vpop.f32.mrf.mxu0
    %v1427 = vadd.f32 0.0, %v1426
    %v1428 = vpop.f32.mrf.mxu0
    %1429 = vmatprep.mubr.f32.mxu0 0.0
    %1430 = vmatmul.mubr.f32.gmra.mxu0 %v1314
    %v1431 = vpop.f32.mrf.mxu0
    %v1432 = vadd.f32 0.0, %v1431
    %v1433 = vpop.f32.mrf.mxu0
    %1434 = vmatprep.mubr.f32.mxu0 0.0
    %1435 = vmatmul.mubr.f32.gmra.mxu0 %v1317
    %v1436 = vpop.f32.mrf.mxu0
    %v1437 = vadd.f32 0.0, %v1436
    %v1438 = vpop.f32.mrf.mxu0
    %1439 = vmatprep.mubr.f32.mxu0 0.0
    %1440 = vmatmul.mubr.f32.gmra.mxu0 %v1320
    %v1441 = vpop.f32.mrf.mxu0
    %v1442 = vadd.f32 0.0, %v1441
    %v1443 = vpop.f32.mrf.mxu0
    %1444 = vmatprep.mubr.f32.mxu0 0.0
    %1445 = vmatmul.mubr.f32.gmra.mxu0 %v1323
    %v1446 = vpop.f32.mrf.mxu0
    %v1447 = vadd.f32 0.0, %v1446
    %v1448 = vpop.f32.mrf.mxu0
    %1449 = vmatprep.mubr.f32.mxu0 0.0
    %1450 = vmatmul.mubr.f32.gmra.mxu0 %v1326
    %v1451 = vpop.f32.mrf.mxu0
    %v1452 = vadd.f32 0.0, %v1451
    %v1453 = vpop.f32.mrf.mxu0
    %1454 = vmatprep.mubr.f32.mxu0 0.0
    %1455 = vmatmul.mubr.f32.gmra.mxu0 %v1329
    %v1456 = vpop.f32.mrf.mxu0
    %v1457 = vadd.f32 0.0, %v1456
    %v1458 = vpop.f32.mrf.mxu0
    %1459 = vmatprep.mubr.f32.mxu0 0.0
    %1460 = vmatmul.mubr.f32.gmra.mxu0 %v1332
    %v1461 = vpop.f32.mrf.mxu0
    %v1462 = vadd.f32 0.0, %v1461
    %v1463 = vpop.f32.mrf.mxu0
    %1464 = vmatprep.mubr.f32.mxu0 0.0
    %1465 = vmatmul.mubr.f32.gmra.mxu0 %v1335
    %v1466 = vpop.f32.mrf.mxu0
    %v1467 = vadd.f32 0.0, %v1466
    %v1468 = vpop.f32.mrf.mxu0
    %1469 = vmatprep.mubr.f32.mxu0 0.0
    %1470 = vmatmul.mubr.f32.gmra.mxu0 %v1338
    %v1471 = vpop.f32.mrf.mxu0
    %v1472 = vadd.f32 0.0, %v1471
    %v1473 = vpop.f32.mrf.mxu0
    %1474 = vmatprep.mubr.f32.mxu0 0.0
    %1475 = vmatmul.mubr.f32.gmra.mxu0 %v1341
    %v1476 = vpop.f32.mrf.mxu0
    %v1477 = vadd.f32 0.0, %v1476
    %v1478 = vpop.f32.mrf.mxu0
    %1479 = vmatprep.mubr.f32.mxu0 0.0
    %1480 = vmatmul.mubr.f32.gmra.mxu0 %v1344
    %v1481 = vpop.f32.mrf.mxu0
    %v1482 = vadd.f32 0.0, %v1481
    %v1483 = vpop.f32.mrf.mxu0
    %1484 = vmatprep.mubr.f32.mxu0 0.0
    %1485 = vmatmul.mubr.f32.gmra.mxu0 %v1347
    %v1486 = vpop.f32.mrf.mxu0
    %v1487 = vadd.f32 0.0, %v1486
    %v1488 = vpop.f32.mrf.mxu0
    %1489 = vmatprep.mubr.f32.mxu0 0.0
    %1490 = vmatmul.mubr.f32.gmra.mxu0 %v1350
    %v1491 = vpop.f32.mrf.mxu0
    %v1492 = vadd.f32 0.0, %v1491
    %v1493 = vpop.f32.mrf.mxu0
    %1494 = vmatprep.mubr.f32.mxu0 0.0
    %1495 = vmatmul.mubr.f32.gmra.mxu0 %v1353
    %v1496 = vpop.f32.mrf.mxu0
    %v1497 = vadd.f32 0.0, %v1496
    %v1498 = vpop.f32.mrf.mxu0
    %1499 = vdwg.mxu0
    %v1500 = vmax.f32 %v1422, 1e-07
    %v1501 = vmax.f32 %v1427, 1e-07
    %v1502 = vmax.f32 %v1432, 1e-07
    %v1503 = vmax.f32 %v1437, 1e-07
    %v1504 = vmax.f32 %v1442, 1e-07
    %v1505 = vmax.f32 %v1447, 1e-07
    %v1506 = vmax.f32 %v1452, 1e-07
    %v1507 = vmax.f32 %v1457, 1e-07
    %v1508 = vmax.f32 %v1462, 1e-07
    %v1509 = vmax.f32 %v1467, 1e-07
    %v1510 = vmax.f32 %v1472, 1e-07
    %v1511 = vmax.f32 %v1477, 1e-07
    %v1512 = vmax.f32 %v1482, 1e-07
    %v1513 = vmax.f32 %v1487, 1e-07
    %v1514 = vmax.f32 %v1492, 1e-07
    %v1515 = vmax.f32 %v1497, 1e-07
    %v1516 = vrsqrt.pop %v1500
    %v1517 = vmul.f32 %v1500, %v1516
    %vm1518 = vcmp.eq.f32.partialorder %v1500, inf
    %v1519 = vsel %vm1518, %v1500, %v1517
    %vm1520 = vcmp.eq.f32.partialorder %v1500, 0.0
    %v1521 = vand.u32 %v1500, 2147483648
    %v1522 = vsel %vm1520, %v1521, %v1519
    %v1523 = vrsqrt.pop %v1501
    %v1524 = vmul.f32 %v1501, %v1523
    %vm1525 = vcmp.eq.f32.partialorder %v1501, inf
    %v1526 = vsel %vm1525, %v1501, %v1524
    %vm1527 = vcmp.eq.f32.partialorder %v1501, 0.0
    %v1528 = vand.u32 %v1501, 2147483648
    %v1529 = vsel %vm1527, %v1528, %v1526
    %v1530 = vrsqrt.pop %v1502
    %v1531 = vmul.f32 %v1502, %v1530
    %vm1532 = vcmp.eq.f32.partialorder %v1502, inf
    %v1533 = vsel %vm1532, %v1502, %v1531
    %vm1534 = vcmp.eq.f32.partialorder %v1502, 0.0
    %v1535 = vand.u32 %v1502, 2147483648
    %v1536 = vsel %vm1534, %v1535, %v1533
    %v1537 = vrsqrt.pop %v1503
    %v1538 = vmul.f32 %v1503, %v1537
    %vm1539 = vcmp.eq.f32.partialorder %v1503, inf
    %v1540 = vsel %vm1539, %v1503, %v1538
    %vm1541 = vcmp.eq.f32.partialorder %v1503, 0.0
    %v1542 = vand.u32 %v1503, 2147483648
    %v1543 = vsel %vm1541, %v1542, %v1540
    %v1544 = vrsqrt.pop %v1504
    %v1545 = vmul.f32 %v1504, %v1544
    %vm1546 = vcmp.eq.f32.partialorder %v1504, inf
    %v1547 = vsel %vm1546, %v1504, %v1545
    %vm1548 = vcmp.eq.f32.partialorder %v1504, 0.0
    %v1549 = vand.u32 %v1504, 2147483648
    %v1550 = vsel %vm1548, %v1549, %v1547
    %v1551 = vrsqrt.pop %v1505
    %v1552 = vmul.f32 %v1505, %v1551
    %vm1553 = vcmp.eq.f32.partialorder %v1505, inf
    %v1554 = vsel %vm1553, %v1505, %v1552
    %vm1555 = vcmp.eq.f32.partialorder %v1505, 0.0
    %v1556 = vand.u32 %v1505, 2147483648
    %v1557 = vsel %vm1555, %v1556, %v1554
    %v1558 = vrsqrt.pop %v1506
    %v1559 = vmul.f32 %v1506, %v1558
    %vm1560 = vcmp.eq.f32.partialorder %v1506, inf
    %v1561 = vsel %vm1560, %v1506, %v1559
    %vm1562 = vcmp.eq.f32.partialorder %v1506, 0.0
    %v1563 = vand.u32 %v1506, 2147483648
    %v1564 = vsel %vm1562, %v1563, %v1561
    %v1565 = vrsqrt.pop %v1507
    %v1566 = vmul.f32 %v1507, %v1565
    %vm1567 = vcmp.eq.f32.partialorder %v1507, inf
    %v1568 = vsel %vm1567, %v1507, %v1566
    %vm1569 = vcmp.eq.f32.partialorder %v1507, 0.0
    %v1570 = vand.u32 %v1507, 2147483648
    %v1571 = vsel %vm1569, %v1570, %v1568
    %v1572 = vrsqrt.pop %v1508
    %v1573 = vmul.f32 %v1508, %v1572
    %vm1574 = vcmp.eq.f32.partialorder %v1508, inf
    %v1575 = vsel %vm1574, %v1508, %v1573
    %vm1576 = vcmp.eq.f32.partialorder %v1508, 0.0
    %v1577 = vand.u32 %v1508, 2147483648
    %v1578 = vsel %vm1576, %v1577, %v1575
    %v1579 = vrsqrt.pop %v1509
    %v1580 = vmul.f32 %v1509, %v1579
    %vm1581 = vcmp.eq.f32.partialorder %v1509, inf
    %v1582 = vsel %vm1581, %v1509, %v1580
    %vm1583 = vcmp.eq.f32.partialorder %v1509, 0.0
    %v1584 = vand.u32 %v1509, 2147483648
    %v1585 = vsel %vm1583, %v1584, %v1582
    %v1586 = vrsqrt.pop %v1510
    %v1587 = vmul.f32 %v1510, %v1586
    %vm1588 = vcmp.eq.f32.partialorder %v1510, inf
    %v1589 = vsel %vm1588, %v1510, %v1587
    %vm1590 = vcmp.eq.f32.partialorder %v1510, 0.0
    %v1591 = vand.u32 %v1510, 2147483648
    %v1592 = vsel %vm1590, %v1591, %v1589
    %v1593 = vrsqrt.pop %v1511
    %v1594 = vmul.f32 %v1511, %v1593
    %vm1595 = vcmp.eq.f32.partialorder %v1511, inf
    %v1596 = vsel %vm1595, %v1511, %v1594
    %vm1597 = vcmp.eq.f32.partialorder %v1511, 0.0
    %v1598 = vand.u32 %v1511, 2147483648
    %v1599 = vsel %vm1597, %v1598, %v1596
    %v1600 = vrsqrt.pop %v1512
    %v1601 = vmul.f32 %v1512, %v1600
    %vm1602 = vcmp.eq.f32.partialorder %v1512, inf
    %v1603 = vsel %vm1602, %v1512, %v1601
    %vm1604 = vcmp.eq.f32.partialorder %v1512, 0.0
    %v1605 = vand.u32 %v1512, 2147483648
    %v1606 = vsel %vm1604, %v1605, %v1603
    %v1607 = vrsqrt.pop %v1513
    %v1608 = vmul.f32 %v1513, %v1607
    %vm1609 = vcmp.eq.f32.partialorder %v1513, inf
    %v1610 = vsel %vm1609, %v1513, %v1608
    %vm1611 = vcmp.eq.f32.partialorder %v1513, 0.0
    %v1612 = vand.u32 %v1513, 2147483648
    %v1613 = vsel %vm1611, %v1612, %v1610
    %v1614 = vrsqrt.pop %v1514
    %v1615 = vmul.f32 %v1514, %v1614
    %vm1616 = vcmp.eq.f32.partialorder %v1514, inf
    %v1617 = vsel %vm1616, %v1514, %v1615
    %vm1618 = vcmp.eq.f32.partialorder %v1514, 0.0
    %v1619 = vand.u32 %v1514, 2147483648
    %v1620 = vsel %vm1618, %v1619, %v1617
    %v1621 = vrsqrt.pop %v1515
    %v1622 = vmul.f32 %v1515, %v1621
    %vm1623 = vcmp.eq.f32.partialorder %v1515, inf
    %v1624 = vsel %vm1623, %v1515, %v1622
    %vm1625 = vcmp.eq.f32.partialorder %v1515, 0.0
    %v1626 = vand.u32 %v1515, 2147483648
    %v1627 = vsel %vm1625, %v1626, %v1624
    %v1628 = vld [vmem:[%s5] sm:$0xff]
    %v1629 = vld [vmem:[%s5 + $0x8] sm:$0xff]
    %v1630 = vld [vmem:[%s5 + $0x10] sm:$0xff]
    %v1631 = vld [vmem:[%s5 + $0x18] sm:$0xff]
    %s1632 = scalar_lea.vmem %s5, 32
    %v1633 = vld [vmem:[%s1632] sm:$0xff]
    %v1634 = vld [vmem:[%s1632 + $0x8] sm:$0xff]
    %v1635 = vld [vmem:[%s1632 + $0x10] sm:$0xff]
    %v1636 = vld [vmem:[%s1632 + $0x18] sm:$0xff]
    %v1637 = vld [vmem:[%s6] sm:$0x1]
    %s1638 = scalar_lea.vmem %s6, 1
    %v1639 = vld [vmem:[%s1638] sm:$0x1]
    %v1640 = vld [vmem:[%s7] sm:$0xff]
    %v1641 = vld [vmem:[%s7 + $0x8] sm:$0xff]
    %v1642 = vld [vmem:[%s7 + $0x10] sm:$0xff]
    %v1643 = vld [vmem:[%s7 + $0x18] sm:$0xff]
    %s1644 = scalar_lea.vmem %s7, 32
    %v1645 = vld [vmem:[%s1644] sm:$0xff]
    %v1646 = vld [vmem:[%s1644 + $0x8] sm:$0xff]
    %v1647 = vld [vmem:[%s1644 + $0x10] sm:$0xff]
    %v1648 = vld [vmem:[%s1644 + $0x18] sm:$0xff]
    %v1650 = vlaneseq
    %v1651 = vshrl.u32 %v1650, 7
    %v1652 = vsub.s32 0, %v1651
    %v1653 = vrot.slane %v1637, %v1652
    %v1656 = vsel %vm1097, %v1213, 0
    %v1659 = vsel %vm1097, %v1218, 0
    %v1662 = vsel %vm1097, %v1223, 0
    %v1665 = vsel %vm1097, %v1228, 0
    %v1668 = vsel %vm1097, %v1233, 0
    %v1671 = vsel %vm1097, %v1238, 0
    %v1674 = vsel %vm1097, %v1243, 0
    %v1677 = vsel %vm1097, %v1248, 0
    %v1680 = vsel %vm1097, %v1253, 0
    %v1683 = vsel %vm1097, %v1258, 0
    %v1686 = vsel %vm1097, %v1263, 0
    %v1689 = vsel %vm1097, %v1268, 0
    %v1692 = vsel %vm1097, %v1273, 0
    %v1695 = vsel %vm1097, %v1278, 0
    %v1698 = vsel %vm1097, %v1283, 0
    %v1701 = vsel %vm1097, %v1288, 0
    %1703 = vmatprep.subr.mxu0 0.0
    %1704 = vmatpush1.msra.mxu0 0.0
    %1705 = vmatprep.subr.mxu0 0.0
    %1706 = vmatpush1.msra.mxu0 0.0
    %1707 = vmatprep.subr.mxu0 0.0
    %1708 = vmatpush1.msra.mxu0 0.0
    %1709 = vmatprep.subr.mxu0 0.0
    %1710 = vmatpush1.msra.mxu0 0.0
    %1711 = vmatprep.subr.mxu0 0.0
    %1712 = vmatpush1.msra.mxu0 0.0
    %1713 = vmatprep.subr.mxu0 0.0
    %1714 = vmatpush1.msra.mxu0 0.0
    %1715 = vmatprep.subr.mxu0 0.0
    %1716 = vmatpush1.msra.mxu0 0.0
    %1717 = vmatprep.subr.mxu0 0.0
    %1718 = vmatpush1.msra.mxu0 0.0
    %1719 = vmatprep.subr.mxu0 0.0
    %1720 = vmatpush1.msra.mxu0 0.0
    %1721 = vmatprep.subr.mxu0 0.0
    %1722 = vmatpush1.msra.mxu0 0.0
    %1723 = vmatprep.subr.mxu0 0.0
    %1724 = vmatpush1.msra.mxu0 0.0
    %1725 = vmatprep.subr.mxu0 0.0
    %1726 = vmatpush1.msra.mxu0 0.0
    %1727 = vmatprep.subr.mxu0 0.0
    %1728 = vmatpush1.msra.mxu0 %v1631
    %1729 = vmatprep.subr.mxu0 0.0
    %1730 = vmatpush1.msra.mxu0 %v1630
    %1731 = vmatprep.subr.mxu0 0.0
    %1732 = vmatpush1.msra.mxu0 %v1629
    %1733 = vmatprep.subr.mxu0 0.0
    %1734 = vmatpush1.msra.mxu0 %v1628
    %1735 = vmatprep.subr.mxu0 0.0
    %1736 = vmatpush2.msra.mxu0 0.0
    %1737 = vmatprep.subr.mxu0 0.0
    %1738 = vmatpush2.msra.mxu0 0.0
    %1739 = vmatprep.subr.mxu0 0.0
    %1740 = vmatpush2.msra.mxu0 0.0
    %1741 = vmatprep.subr.mxu0 0.0
    %1742 = vmatpush2.msra.mxu0 0.0
    %1743 = vmatprep.subr.mxu0 0.0
    %1744 = vmatpush2.msra.mxu0 0.0
    %1745 = vmatprep.subr.mxu0 0.0
    %1746 = vmatpush2.msra.mxu0 0.0
    %1747 = vmatprep.subr.mxu0 0.0
    %1748 = vmatpush2.msra.mxu0 0.0
    %1749 = vmatprep.subr.mxu0 0.0
    %1750 = vmatpush2.msra.mxu0 0.0
    %1751 = vmatprep.subr.mxu0 0.0
    %1752 = vmatpush2.msra.mxu0 0.0
    %1753 = vmatprep.subr.mxu0 0.0
    %1754 = vmatpush2.msra.mxu0 0.0
    %1755 = vmatprep.subr.mxu0 0.0
    %1756 = vmatpush2.msra.mxu0 0.0
    %1757 = vmatprep.subr.mxu0 0.0
    %1758 = vmatpush2.msra.mxu0 0.0
    %1759 = vmatprep.subr.mxu0 0.0
    %1760 = vmatpush2.msra.mxu0 0.0
    %1761 = vmatprep.subr.mxu0 0.0
    %1762 = vmatpush2.msra.mxu0 0.0
    %1763 = vmatprep.subr.mxu0 0.0
    %1764 = vmatpush2.msra.mxu0 0.0
    %1765 = vmatprep.subr.mxu0 0.0
    %1766 = vmatpush2.msra.mxu0 0.0
    %1767 = vmatprep.mubr.f32.mxu0 0.0
    %1768 = vmatmul.mubr.f32.gmra.mxu0 %v1656
    %v1769 = vpop.f32.mrf.mxu0
    %v1770 = vadd.f32 %v1653, %v1769
    %v1771 = vpop.f32.mrf.mxu0
    %1772 = vmatprep.mubr.f32.mxu0 0.0
    %1773 = vmatmul.mubr.f32.gmra.mxu0 %v1659
    %v1774 = vpop.f32.mrf.mxu0
    %v1775 = vadd.f32 %v1653, %v1774
    %v1776 = vpop.f32.mrf.mxu0
    %1777 = vmatprep.mubr.f32.mxu0 0.0
    %1778 = vmatmul.mubr.f32.gmra.mxu0 %v1662
    %v1779 = vpop.f32.mrf.mxu0
    %v1780 = vadd.f32 %v1653, %v1779
    %v1781 = vpop.f32.mrf.mxu0
    %1782 = vmatprep.mubr.f32.mxu0 0.0
    %1783 = vmatmul.mubr.f32.gmra.mxu0 %v1665
    %v1784 = vpop.f32.mrf.mxu0
    %v1785 = vadd.f32 %v1653, %v1784
    %v1786 = vpop.f32.mrf.mxu0
    %1787 = vmatprep.mubr.f32.mxu0 0.0
    %1788 = vmatmul.mubr.f32.gmra.mxu0 %v1668
    %v1789 = vpop.f32.mrf.mxu0
    %v1790 = vadd.f32 %v1653, %v1789
    %v1791 = vpop.f32.mrf.mxu0
    %1792 = vmatprep.mubr.f32.mxu0 0.0
    %1793 = vmatmul.mubr.f32.gmra.mxu0 %v1671
    %v1794 = vpop.f32.mrf.mxu0
    %v1795 = vadd.f32 %v1653, %v1794
    %v1796 = vpop.f32.mrf.mxu0
    %1797 = vmatprep.mubr.f32.mxu0 0.0
    %1798 = vmatmul.mubr.f32.gmra.mxu0 %v1674
    %v1799 = vpop.f32.mrf.mxu0
    %v1800 = vadd.f32 %v1653, %v1799
    %v1801 = vpop.f32.mrf.mxu0
    %1802 = vmatprep.mubr.f32.mxu0 0.0
    %1803 = vmatmul.mubr.f32.gmra.mxu0 %v1677
    %v1804 = vpop.f32.mrf.mxu0
    %v1805 = vadd.f32 %v1653, %v1804
    %v1806 = vpop.f32.mrf.mxu0
    %1807 = vmatprep.mubr.f32.mxu0 0.0
    %1808 = vmatmul.mubr.f32.gmra.mxu0 %v1680
    %v1809 = vpop.f32.mrf.mxu0
    %v1810 = vadd.f32 %v1653, %v1809
    %v1811 = vpop.f32.mrf.mxu0
    %1812 = vmatprep.mubr.f32.mxu0 0.0
    %1813 = vmatmul.mubr.f32.gmra.mxu0 %v1683
    %v1814 = vpop.f32.mrf.mxu0
    %v1815 = vadd.f32 %v1653, %v1814
    %v1816 = vpop.f32.mrf.mxu0
    %1817 = vmatprep.mubr.f32.mxu0 0.0
    %1818 = vmatmul.mubr.f32.gmra.mxu0 %v1686
    %v1819 = vpop.f32.mrf.mxu0
    %v1820 = vadd.f32 %v1653, %v1819
    %v1821 = vpop.f32.mrf.mxu0
    %1822 = vmatprep.mubr.f32.mxu0 0.0
    %1823 = vmatmul.mubr.f32.gmra.mxu0 %v1689
    %v1824 = vpop.f32.mrf.mxu0
    %v1825 = vadd.f32 %v1653, %v1824
    %v1826 = vpop.f32.mrf.mxu0
    %1827 = vmatprep.mubr.f32.mxu0 0.0
    %1828 = vmatmul.mubr.f32.gmra.mxu0 %v1692
    %v1829 = vpop.f32.mrf.mxu0
    %v1830 = vadd.f32 %v1653, %v1829
    %v1831 = vpop.f32.mrf.mxu0
    %1832 = vmatprep.mubr.f32.mxu0 0.0
    %1833 = vmatmul.mubr.f32.gmra.mxu0 %v1695
    %v1834 = vpop.f32.mrf.mxu0
    %v1835 = vadd.f32 %v1653, %v1834
    %v1836 = vpop.f32.mrf.mxu0
    %1837 = vmatprep.mubr.f32.mxu0 0.0
    %1838 = vmatmul.mubr.f32.gmra.mxu0 %v1698
    %v1839 = vpop.f32.mrf.mxu0
    %v1840 = vadd.f32 %v1653, %v1839
    %v1841 = vpop.f32.mrf.mxu0
    %1842 = vmatprep.mubr.f32.mxu0 0.0
    %1843 = vmatmul.mubr.f32.gmra.mxu0 %v1701
    %v1844 = vpop.f32.mrf.mxu0
    %v1845 = vadd.f32 %v1653, %v1844
    %v1846 = vpop.f32.mrf.mxu0
    %1847 = vdwg.mxu0
    %v1848 = vmul.f32 %v1522, %v1522
    %v1849 = vmul.f32 %v1529, %v1529
    %v1850 = vmul.f32 %v1536, %v1536
    %v1851 = vmul.f32 %v1543, %v1543
    %v1852 = vmul.f32 %v1550, %v1550
    %v1853 = vmul.f32 %v1557, %v1557
    %v1854 = vmul.f32 %v1564, %v1564
    %v1855 = vmul.f32 %v1571, %v1571
    %v1856 = vmul.f32 %v1578, %v1578
    %v1857 = vmul.f32 %v1585, %v1585
    %v1858 = vmul.f32 %v1592, %v1592
    %v1859 = vmul.f32 %v1599, %v1599
    %v1860 = vmul.f32 %v1606, %v1606
    %v1861 = vmul.f32 %v1613, %v1613
    %v1862 = vmul.f32 %v1620, %v1620
    %v1863 = vmul.f32 %v1627, %v1627
    %v1865 = vsel %vm1097, %v1848, 0
    %v1868 = vsel %vm1097, %v1849, 0
    %v1871 = vsel %vm1097, %v1850, 0
    %v1874 = vsel %vm1097, %v1851, 0
    %v1877 = vsel %vm1097, %v1852, 0
    %v1880 = vsel %vm1097, %v1853, 0
    %v1883 = vsel %vm1097, %v1854, 0
    %v1886 = vsel %vm1097, %v1855, 0
    %v1889 = vsel %vm1097, %v1856, 0
    %v1892 = vsel %vm1097, %v1857, 0
    %v1895 = vsel %vm1097, %v1858, 0
    %v1898 = vsel %vm1097, %v1859, 0
    %v1901 = vsel %vm1097, %v1860, 0
    %v1904 = vsel %vm1097, %v1861, 0
    %v1907 = vsel %vm1097, %v1862, 0
    %v1910 = vsel %vm1097, %v1863, 0
    %1912 = vmatprep.subr.mxu0 0.0
    %1913 = vmatpush1.msra.mxu0 0.0
    %1914 = vmatprep.subr.mxu0 0.0
    %1915 = vmatpush1.msra.mxu0 0.0
    %1916 = vmatprep.subr.mxu0 0.0
    %1917 = vmatpush1.msra.mxu0 0.0
    %1918 = vmatprep.subr.mxu0 0.0
    %1919 = vmatpush1.msra.mxu0 0.0
    %1920 = vmatprep.subr.mxu0 0.0
    %1921 = vmatpush1.msra.mxu0 0.0
    %1922 = vmatprep.subr.mxu0 0.0
    %1923 = vmatpush1.msra.mxu0 0.0
    %1924 = vmatprep.subr.mxu0 0.0
    %1925 = vmatpush1.msra.mxu0 0.0
    %1926 = vmatprep.subr.mxu0 0.0
    %1927 = vmatpush1.msra.mxu0 0.0
    %1928 = vmatprep.subr.mxu0 0.0
    %1929 = vmatpush1.msra.mxu0 0.0
    %1930 = vmatprep.subr.mxu0 0.0
    %1931 = vmatpush1.msra.mxu0 0.0
    %1932 = vmatprep.subr.mxu0 0.0
    %1933 = vmatpush1.msra.mxu0 0.0
    %1934 = vmatprep.subr.mxu0 0.0
    %1935 = vmatpush1.msra.mxu0 0.0
    %1936 = vmatprep.subr.mxu0 0.0
    %1937 = vmatpush1.msra.mxu0 %v1636
    %1938 = vmatprep.subr.mxu0 0.0
    %1939 = vmatpush1.msra.mxu0 %v1635
    %1940 = vmatprep.subr.mxu0 0.0
    %1941 = vmatpush1.msra.mxu0 %v1634
    %1942 = vmatprep.subr.mxu0 0.0
    %1943 = vmatpush1.msra.mxu0 %v1633
    %1944 = vmatprep.subr.mxu0 0.0
    %1945 = vmatpush2.msra.mxu0 0.0
    %1946 = vmatprep.subr.mxu0 0.0
    %1947 = vmatpush2.msra.mxu0 0.0
    %1948 = vmatprep.subr.mxu0 0.0
    %1949 = vmatpush2.msra.mxu0 0.0
    %1950 = vmatprep.subr.mxu0 0.0
    %1951 = vmatpush2.msra.mxu0 0.0
    %1952 = vmatprep.subr.mxu0 0.0
    %1953 = vmatpush2.msra.mxu0 0.0
    %1954 = vmatprep.subr.mxu0 0.0
    %1955 = vmatpush2.msra.mxu0 0.0
    %1956 = vmatprep.subr.mxu0 0.0
    %1957 = vmatpush2.msra.mxu0 0.0
    %1958 = vmatprep.subr.mxu0 0.0
    %1959 = vmatpush2.msra.mxu0 0.0
    %1960 = vmatprep.subr.mxu0 0.0
    %1961 = vmatpush2.msra.mxu0 0.0
    %1962 = vmatprep.subr.mxu0 0.0
    %1963 = vmatpush2.msra.mxu0 0.0
    %1964 = vmatprep.subr.mxu0 0.0
    %1965 = vmatpush2.msra.mxu0 0.0
    %1966 = vmatprep.subr.mxu0 0.0
    %1967 = vmatpush2.msra.mxu0 0.0
    %1968 = vmatprep.subr.mxu0 0.0
    %1969 = vmatpush2.msra.mxu0 0.0
    %1970 = vmatprep.subr.mxu0 0.0
    %1971 = vmatpush2.msra.mxu0 0.0
    %1972 = vmatprep.subr.mxu0 0.0
    %1973 = vmatpush2.msra.mxu0 0.0
    %1974 = vmatprep.subr.mxu0 0.0
    %1975 = vmatpush2.msra.mxu0 0.0
    %1976 = vmatprep.mubr.f32.mxu0 0.0
    %1977 = vmatmul.mubr.f32.gmra.mxu0 %v1865
    %v1978 = vpop.f32.mrf.mxu0
    %v1979 = vadd.f32 0.0, %v1978
    %v1980 = vpop.f32.mrf.mxu0
    %1981 = vmatprep.mubr.f32.mxu0 0.0
    %1982 = vmatmul.mubr.f32.gmra.mxu0 %v1868
    %v1983 = vpop.f32.mrf.mxu0
    %v1984 = vadd.f32 0.0, %v1983
    %v1985 = vpop.f32.mrf.mxu0
    %1986 = vmatprep.mubr.f32.mxu0 0.0
    %1987 = vmatmul.mubr.f32.gmra.mxu0 %v1871
    %v1988 = vpop.f32.mrf.mxu0
    %v1989 = vadd.f32 0.0, %v1988
    %v1990 = vpop.f32.mrf.mxu0
    %1991 = vmatprep.mubr.f32.mxu0 0.0
    %1992 = vmatmul.mubr.f32.gmra.mxu0 %v1874
    %v1993 = vpop.f32.mrf.mxu0
    %v1994 = vadd.f32 0.0, %v1993
    %v1995 = vpop.f32.mrf.mxu0
    %1996 = vmatprep.mubr.f32.mxu0 0.0
    %1997 = vmatmul.mubr.f32.gmra.mxu0 %v1877
    %v1998 = vpop.f32.mrf.mxu0
    %v1999 = vadd.f32 0.0, %v1998
    %v2000 = vpop.f32.mrf.mxu0
    %2001 = vmatprep.mubr.f32.mxu0 0.0
    %2002 = vmatmul.mubr.f32.gmra.mxu0 %v1880
    %v2003 = vpop.f32.mrf.mxu0
    %v2004 = vadd.f32 0.0, %v2003
    %v2005 = vpop.f32.mrf.mxu0
    %2006 = vmatprep.mubr.f32.mxu0 0.0
    %2007 = vmatmul.mubr.f32.gmra.mxu0 %v1883
    %v2008 = vpop.f32.mrf.mxu0
    %v2009 = vadd.f32 0.0, %v2008
    %v2010 = vpop.f32.mrf.mxu0
    %2011 = vmatprep.mubr.f32.mxu0 0.0
    %2012 = vmatmul.mubr.f32.gmra.mxu0 %v1886
    %v2013 = vpop.f32.mrf.mxu0
    %v2014 = vadd.f32 0.0, %v2013
    %v2015 = vpop.f32.mrf.mxu0
    %2016 = vmatprep.mubr.f32.mxu0 0.0
    %2017 = vmatmul.mubr.f32.gmra.mxu0 %v1889
    %v2018 = vpop.f32.mrf.mxu0
    %v2019 = vadd.f32 0.0, %v2018
    %v2020 = vpop.f32.mrf.mxu0
    %2021 = vmatprep.mubr.f32.mxu0 0.0
    %2022 = vmatmul.mubr.f32.gmra.mxu0 %v1892
    %v2023 = vpop.f32.mrf.mxu0
    %v2024 = vadd.f32 0.0, %v2023
    %v2025 = vpop.f32.mrf.mxu0
    %2026 = vmatprep.mubr.f32.mxu0 0.0
    %2027 = vmatmul.mubr.f32.gmra.mxu0 %v1895
    %v2028 = vpop.f32.mrf.mxu0
    %v2029 = vadd.f32 0.0, %v2028
    %v2030 = vpop.f32.mrf.mxu0
    %2031 = vmatprep.mubr.f32.mxu0 0.0
    %2032 = vmatmul.mubr.f32.gmra.mxu0 %v1898
    %v2033 = vpop.f32.mrf.mxu0
    %v2034 = vadd.f32 0.0, %v2033
    %v2035 = vpop.f32.mrf.mxu0
    %2036 = vmatprep.mubr.f32.mxu0 0.0
    %2037 = vmatmul.mubr.f32.gmra.mxu0 %v1901
    %v2038 = vpop.f32.mrf.mxu0
    %v2039 = vadd.f32 0.0, %v2038
    %v2040 = vpop.f32.mrf.mxu0
    %2041 = vmatprep.mubr.f32.mxu0 0.0
    %2042 = vmatmul.mubr.f32.gmra.mxu0 %v1904
    %v2043 = vpop.f32.mrf.mxu0
    %v2044 = vadd.f32 0.0, %v2043
    %v2045 = vpop.f32.mrf.mxu0
    %2046 = vmatprep.mubr.f32.mxu0 0.0
    %2047 = vmatmul.mubr.f32.gmra.mxu0 %v1907
    %v2048 = vpop.f32.mrf.mxu0
    %v2049 = vadd.f32 0.0, %v2048
    %v2050 = vpop.f32.mrf.mxu0
    %2051 = vmatprep.mubr.f32.mxu0 0.0
    %2052 = vmatmul.mubr.f32.gmra.mxu0 %v1910
    %v2053 = vpop.f32.mrf.mxu0
    %v2054 = vadd.f32 0.0, %v2053
    %v2055 = vpop.f32.mrf.mxu0
    %2056 = vdwg.mxu0
    %v2057 = vmax.f32 %v1979, 1e-07
    %v2058 = vmax.f32 %v1984, 1e-07
    %v2059 = vmax.f32 %v1989, 1e-07
    %v2060 = vmax.f32 %v1994, 1e-07
    %v2061 = vmax.f32 %v1999, 1e-07
    %v2062 = vmax.f32 %v2004, 1e-07
    %v2063 = vmax.f32 %v2009, 1e-07
    %v2064 = vmax.f32 %v2014, 1e-07
    %v2065 = vmax.f32 %v2019, 1e-07
    %v2066 = vmax.f32 %v2024, 1e-07
    %v2067 = vmax.f32 %v2029, 1e-07
    %v2068 = vmax.f32 %v2034, 1e-07
    %v2069 = vmax.f32 %v2039, 1e-07
    %v2070 = vmax.f32 %v2044, 1e-07
    %v2071 = vmax.f32 %v2049, 1e-07
    %v2072 = vmax.f32 %v2054, 1e-07
    %v2073 = vrsqrt.pop %v2057
    %v2074 = vmul.f32 %v2057, %v2073
    %vm2075 = vcmp.eq.f32.partialorder %v2057, inf
    %v2076 = vsel %vm2075, %v2057, %v2074
    %vm2077 = vcmp.eq.f32.partialorder %v2057, 0.0
    %v2078 = vand.u32 %v2057, 2147483648
    %v2079 = vsel %vm2077, %v2078, %v2076
    %v2080 = vrsqrt.pop %v2058
    %v2081 = vmul.f32 %v2058, %v2080
    %vm2082 = vcmp.eq.f32.partialorder %v2058, inf
    %v2083 = vsel %vm2082, %v2058, %v2081
    %vm2084 = vcmp.eq.f32.partialorder %v2058, 0.0
    %v2085 = vand.u32 %v2058, 2147483648
    %v2086 = vsel %vm2084, %v2085, %v2083
    %v2087 = vrsqrt.pop %v2059
    %v2088 = vmul.f32 %v2059, %v2087
    %vm2089 = vcmp.eq.f32.partialorder %v2059, inf
    %v2090 = vsel %vm2089, %v2059, %v2088
    %vm2091 = vcmp.eq.f32.partialorder %v2059, 0.0
    %v2092 = vand.u32 %v2059, 2147483648
    %v2093 = vsel %vm2091, %v2092, %v2090
    %v2094 = vrsqrt.pop %v2060
    %v2095 = vmul.f32 %v2060, %v2094
    %vm2096 = vcmp.eq.f32.partialorder %v2060, inf
    %v2097 = vsel %vm2096, %v2060, %v2095
    %vm2098 = vcmp.eq.f32.partialorder %v2060, 0.0
    %v2099 = vand.u32 %v2060, 2147483648
    %v2100 = vsel %vm2098, %v2099, %v2097
    %v2101 = vrsqrt.pop %v2061
    %v2102 = vmul.f32 %v2061, %v2101
    %vm2103 = vcmp.eq.f32.partialorder %v2061, inf
    %v2104 = vsel %vm2103, %v2061, %v2102
    %vm2105 = vcmp.eq.f32.partialorder %v2061, 0.0
    %v2106 = vand.u32 %v2061, 2147483648
    %v2107 = vsel %vm2105, %v2106, %v2104
    %v2108 = vrsqrt.pop %v2062
    %v2109 = vmul.f32 %v2062, %v2108
    %vm2110 = vcmp.eq.f32.partialorder %v2062, inf
    %v2111 = vsel %vm2110, %v2062, %v2109
    %vm2112 = vcmp.eq.f32.partialorder %v2062, 0.0
    %v2113 = vand.u32 %v2062, 2147483648
    %v2114 = vsel %vm2112, %v2113, %v2111
    %v2115 = vrsqrt.pop %v2063
    %v2116 = vmul.f32 %v2063, %v2115
    %vm2117 = vcmp.eq.f32.partialorder %v2063, inf
    %v2118 = vsel %vm2117, %v2063, %v2116
    %vm2119 = vcmp.eq.f32.partialorder %v2063, 0.0
    %v2120 = vand.u32 %v2063, 2147483648
    %v2121 = vsel %vm2119, %v2120, %v2118
    %v2122 = vrsqrt.pop %v2064
    %v2123 = vmul.f32 %v2064, %v2122
    %vm2124 = vcmp.eq.f32.partialorder %v2064, inf
    %v2125 = vsel %vm2124, %v2064, %v2123
    %vm2126 = vcmp.eq.f32.partialorder %v2064, 0.0
    %v2127 = vand.u32 %v2064, 2147483648
    %v2128 = vsel %vm2126, %v2127, %v2125
    %v2129 = vrsqrt.pop %v2065
    %v2130 = vmul.f32 %v2065, %v2129
    %vm2131 = vcmp.eq.f32.partialorder %v2065, inf
    %v2132 = vsel %vm2131, %v2065, %v2130
    %vm2133 = vcmp.eq.f32.partialorder %v2065, 0.0
    %v2134 = vand.u32 %v2065, 2147483648
    %v2135 = vsel %vm2133, %v2134, %v2132
    %v2136 = vrsqrt.pop %v2066
    %v2137 = vmul.f32 %v2066, %v2136
    %vm2138 = vcmp.eq.f32.partialorder %v2066, inf
    %v2139 = vsel %vm2138, %v2066, %v2137
    %vm2140 = vcmp.eq.f32.partialorder %v2066, 0.0
    %v2141 = vand.u32 %v2066, 2147483648
    %v2142 = vsel %vm2140, %v2141, %v2139
    %v2143 = vrsqrt.pop %v2067
    %v2144 = vmul.f32 %v2067, %v2143
    %vm2145 = vcmp.eq.f32.partialorder %v2067, inf
    %v2146 = vsel %vm2145, %v2067, %v2144
    %vm2147 = vcmp.eq.f32.partialorder %v2067, 0.0
    %v2148 = vand.u32 %v2067, 2147483648
    %v2149 = vsel %vm2147, %v2148, %v2146
    %v2150 = vrsqrt.pop %v2068
    %v2151 = vmul.f32 %v2068, %v2150
    %vm2152 = vcmp.eq.f32.partialorder %v2068, inf
    %v2153 = vsel %vm2152, %v2068, %v2151
    %vm2154 = vcmp.eq.f32.partialorder %v2068, 0.0
    %v2155 = vand.u32 %v2068, 2147483648
    %v2156 = vsel %vm2154, %v2155, %v2153
    %v2157 = vrsqrt.pop %v2069
    %v2158 = vmul.f32 %v2069, %v2157
    %vm2159 = vcmp.eq.f32.partialorder %v2069, inf
    %v2160 = vsel %vm2159, %v2069, %v2158
    %vm2161 = vcmp.eq.f32.partialorder %v2069, 0.0
    %v2162 = vand.u32 %v2069, 2147483648
    %v2163 = vsel %vm2161, %v2162, %v2160
    %v2164 = vrsqrt.pop %v2070
    %v2165 = vmul.f32 %v2070, %v2164
    %vm2166 = vcmp.eq.f32.partialorder %v2070, inf
    %v2167 = vsel %vm2166, %v2070, %v2165
    %vm2168 = vcmp.eq.f32.partialorder %v2070, 0.0
    %v2169 = vand.u32 %v2070, 2147483648
    %v2170 = vsel %vm2168, %v2169, %v2167
    %v2171 = vrsqrt.pop %v2071
    %v2172 = vmul.f32 %v2071, %v2171
    %vm2173 = vcmp.eq.f32.partialorder %v2071, inf
    %v2174 = vsel %vm2173, %v2071, %v2172
    %vm2175 = vcmp.eq.f32.partialorder %v2071, 0.0
    %v2176 = vand.u32 %v2071, 2147483648
    %v2177 = vsel %vm2175, %v2176, %v2174
    %v2178 = vrsqrt.pop %v2072
    %v2179 = vmul.f32 %v2072, %v2178
    %vm2180 = vcmp.eq.f32.partialorder %v2072, inf
    %v2181 = vsel %vm2180, %v2072, %v2179
    %vm2182 = vcmp.eq.f32.partialorder %v2072, 0.0
    %v2183 = vand.u32 %v2072, 2147483648
    %v2184 = vsel %vm2182, %v2183, %v2181
    %v2185 = vadd.f32 %v2079, 1e-06
    %v2186 = vadd.f32 %v2086, 1e-06
    %v2187 = vadd.f32 %v2093, 1e-06
    %v2188 = vadd.f32 %v2100, 1e-06
    %v2189 = vadd.f32 %v2107, 1e-06
    %v2190 = vadd.f32 %v2114, 1e-06
    %v2191 = vadd.f32 %v2121, 1e-06
    %v2192 = vadd.f32 %v2128, 1e-06
    %v2193 = vadd.f32 %v2135, 1e-06
    %v2194 = vadd.f32 %v2142, 1e-06
    %v2195 = vadd.f32 %v2149, 1e-06
    %v2196 = vadd.f32 %v2156, 1e-06
    %v2197 = vadd.f32 %v2163, 1e-06
    %v2198 = vadd.f32 %v2170, 1e-06
    %v2199 = vadd.f32 %v2177, 1e-06
    %v2200 = vadd.f32 %v2184, 1e-06
    %v2201 = vrcp.pop %v2185
    %v2202 = vmul.f32 %v1770, %v2201
    %v2203 = vrcp.pop %v2186
    %v2204 = vmul.f32 %v1775, %v2203
    %v2205 = vrcp.pop %v2187
    %v2206 = vmul.f32 %v1780, %v2205
    %v2207 = vrcp.pop %v2188
    %v2208 = vmul.f32 %v1785, %v2207
    %v2209 = vrcp.pop %v2189
    %v2210 = vmul.f32 %v1790, %v2209
    %v2211 = vrcp.pop %v2190
    %v2212 = vmul.f32 %v1795, %v2211
    %v2213 = vrcp.pop %v2191
    %v2214 = vmul.f32 %v1800, %v2213
    %v2215 = vrcp.pop %v2192
    %v2216 = vmul.f32 %v1805, %v2215
    %v2217 = vrcp.pop %v2193
    %v2218 = vmul.f32 %v1810, %v2217
    %v2219 = vrcp.pop %v2194
    %v2220 = vmul.f32 %v1815, %v2219
    %v2221 = vrcp.pop %v2195
    %v2222 = vmul.f32 %v1820, %v2221
    %v2223 = vrcp.pop %v2196
    %v2224 = vmul.f32 %v1825, %v2223
    %v2225 = vrcp.pop %v2197
    %v2226 = vmul.f32 %v1830, %v2225
    %v2227 = vrcp.pop %v2198
    %v2228 = vmul.f32 %v1835, %v2227
    %v2229 = vrcp.pop %v2199
    %v2230 = vmul.f32 %v1840, %v2229
    %v2231 = vrcp.pop %v2200
    %v2232 = vmul.f32 %v1845, %v2231
    %v2233 = vmul.f32 %v2202, 0.70710677
    %v2234 = vmul.f32 %v2204, 0.70710677
    %v2235 = vmul.f32 %v2206, 0.70710677
    %v2236 = vmul.f32 %v2208, 0.70710677
    %v2237 = vmul.f32 %v2210, 0.70710677
    %v2238 = vmul.f32 %v2212, 0.70710677
    %v2239 = vmul.f32 %v2214, 0.70710677
    %v2240 = vmul.f32 %v2216, 0.70710677
    %v2241 = vmul.f32 %v2218, 0.70710677
    %v2242 = vmul.f32 %v2220, 0.70710677
    %v2243 = vmul.f32 %v2222, 0.70710677
    %v2244 = vmul.f32 %v2224, 0.70710677
    %v2245 = vmul.f32 %v2226, 0.70710677
    %v2246 = vmul.f32 %v2228, 0.70710677
    %v2247 = vmul.f32 %v2230, 0.70710677
    %v2248 = vmul.f32 %v2232, 0.70710677
    %v2249 = verf.f32.pop %v2233
    %v2250 = verf.f32.pop %v2234
    %v2251 = verf.f32.pop %v2235
    %v2252 = verf.f32.pop %v2236
    %v2253 = verf.f32.pop %v2237
    %v2254 = verf.f32.pop %v2238
    %v2255 = verf.f32.pop %v2239
    %v2256 = verf.f32.pop %v2240
    %v2257 = verf.f32.pop %v2241
    %v2258 = verf.f32.pop %v2242
    %v2259 = verf.f32.pop %v2243
    %v2260 = verf.f32.pop %v2244
    %v2261 = verf.f32.pop %v2245
    %v2262 = verf.f32.pop %v2246
    %v2263 = verf.f32.pop %v2247
    %v2264 = verf.f32.pop %v2248
    %v2265 = vadd.f32 %v2249, 1.0
    %v2266 = vadd.f32 %v2250, 1.0
    %v2267 = vadd.f32 %v2251, 1.0
    %v2268 = vadd.f32 %v2252, 1.0
    %v2269 = vadd.f32 %v2253, 1.0
    %v2270 = vadd.f32 %v2254, 1.0
    %v2271 = vadd.f32 %v2255, 1.0
    %v2272 = vadd.f32 %v2256, 1.0
    %v2273 = vadd.f32 %v2257, 1.0
    %v2274 = vadd.f32 %v2258, 1.0
    %v2275 = vadd.f32 %v2259, 1.0
    %v2276 = vadd.f32 %v2260, 1.0
    %v2277 = vadd.f32 %v2261, 1.0
    %v2278 = vadd.f32 %v2262, 1.0
    %v2279 = vadd.f32 %v2263, 1.0
    %v2280 = vadd.f32 %v2264, 1.0
    %v2281 = vmul.f32 %v2265, 0.5
    %v2282 = vmul.f32 %v2266, 0.5
    %v2283 = vmul.f32 %v2267, 0.5
    %v2284 = vmul.f32 %v2268, 0.5
    %v2285 = vmul.f32 %v2269, 0.5
    %v2286 = vmul.f32 %v2270, 0.5
    %v2287 = vmul.f32 %v2271, 0.5
    %v2288 = vmul.f32 %v2272, 0.5
    %v2289 = vmul.f32 %v2273, 0.5
    %v2290 = vmul.f32 %v2274, 0.5
    %v2291 = vmul.f32 %v2275, 0.5
    %v2292 = vmul.f32 %v2276, 0.5
    %v2293 = vmul.f32 %v2277, 0.5
    %v2294 = vmul.f32 %v2278, 0.5
    %v2295 = vmul.f32 %v2279, 0.5
    %v2296 = vmul.f32 %v2280, 0.5
    %v2297 = vmul.f32 %v2202, -0.5
    %v2298 = vmul.f32 %v2204, -0.5
    %v2299 = vmul.f32 %v2206, -0.5
    %v2300 = vmul.f32 %v2208, -0.5
    %v2301 = vmul.f32 %v2210, -0.5
    %v2302 = vmul.f32 %v2212, -0.5
    %v2303 = vmul.f32 %v2214, -0.5
    %v2304 = vmul.f32 %v2216, -0.5
    %v2305 = vmul.f32 %v2218, -0.5
    %v2306 = vmul.f32 %v2220, -0.5
    %v2307 = vmul.f32 %v2222, -0.5
    %v2308 = vmul.f32 %v2224, -0.5
    %v2309 = vmul.f32 %v2226, -0.5
    %v2310 = vmul.f32 %v2228, -0.5
    %v2311 = vmul.f32 %v2230, -0.5
    %v2312 = vmul.f32 %v2232, -0.5
    %v2313 = vmul.f32 %v2297, %v2202
    %v2314 = vmul.f32 %v2298, %v2204
    %v2315 = vmul.f32 %v2299, %v2206
    %v2316 = vmul.f32 %v2300, %v2208
    %v2317 = vmul.f32 %v2301, %v2210
    %v2318 = vmul.f32 %v2302, %v2212
    %v2319 = vmul.f32 %v2303, %v2214
    %v2320 = vmul.f32 %v2304, %v2216
    %v2321 = vmul.f32 %v2305, %v2218
    %v2322 = vmul.f32 %v2306, %v2220
    %v2323 = vmul.f32 %v2307, %v2222
    %v2324 = vmul.f32 %v2308, %v2224
    %v2325 = vmul.f32 %v2309, %v2226
    %v2326 = vmul.f32 %v2310, %v2228
    %v2327 = vmul.f32 %v2311, %v2230
    %v2328 = vmul.f32 %v2312, %v2232
    %v2329 = vmul.f32 %v2313, 1.442695
    %v2330 = vpow.pop %v2329
    %v2331 = vmul.f32 %v2314, 1.442695
    %v2332 = vpow.pop %v2331
    %v2333 = vmul.f32 %v2315, 1.442695
    %v2334 = vpow.pop %v2333
    %v2335 = vmul.f32 %v2316, 1.442695
    %v2336 = vpow.pop %v2335
    %v2337 = vmul.f32 %v2317, 1.442695
    %v2338 = vpow.pop %v2337
    %v2339 = vmul.f32 %v2318, 1.442695
    %v2340 = vpow.pop %v2339
    %v2341 = vmul.f32 %v2319, 1.442695
    %v2342 = vpow.pop %v2341
    %v2343 = vmul.f32 %v2320, 1.442695
    %v2344 = vpow.pop %v2343
    %v2345 = vmul.f32 %v2321, 1.442695
    %v2346 = vpow.pop %v2345
    %v2347 = vmul.f32 %v2322, 1.442695
    %v2348 = vpow.pop %v2347
    %v2349 = vmul.f32 %v2323, 1.442695
    %v2350 = vpow.pop %v2349
    %v2351 = vmul.f32 %v2324, 1.442695
    %v2352 = vpow.pop %v2351
    %v2353 = vmul.f32 %v2325, 1.442695
    %v2354 = vpow.pop %v2353
    %v2355 = vmul.f32 %v2326, 1.442695
    %v2356 = vpow.pop %v2355
    %v2357 = vmul.f32 %v2327, 1.442695
    %v2358 = vpow.pop %v2357
    %v2359 = vmul.f32 %v2328, 1.442695
    %v2360 = vpow.pop %v2359
    %v2361 = vmul.f32 %v2330, 0.3989423
    %v2362 = vmul.f32 %v2332, 0.3989423
    %v2363 = vmul.f32 %v2334, 0.3989423
    %v2364 = vmul.f32 %v2336, 0.3989423
    %v2365 = vmul.f32 %v2338, 0.3989423
    %v2366 = vmul.f32 %v2340, 0.3989423
    %v2367 = vmul.f32 %v2342, 0.3989423
    %v2368 = vmul.f32 %v2344, 0.3989423
    %v2369 = vmul.f32 %v2346, 0.3989423
    %v2370 = vmul.f32 %v2348, 0.3989423
    %v2371 = vmul.f32 %v2350, 0.3989423
    %v2372 = vmul.f32 %v2352, 0.3989423
    %v2373 = vmul.f32 %v2354, 0.3989423
    %v2374 = vmul.f32 %v2356, 0.3989423
    %v2375 = vmul.f32 %v2358, 0.3989423
    %v2376 = vmul.f32 %v2360, 0.3989423
    %v2377 = vmul.f32 %v1770, %v2281
    %v2378 = vmul.f32 %v1775, %v2282
    %v2379 = vmul.f32 %v1780, %v2283
    %v2380 = vmul.f32 %v1785, %v2284
    %v2381 = vmul.f32 %v1790, %v2285
    %v2382 = vmul.f32 %v1795, %v2286
    %v2383 = vmul.f32 %v1800, %v2287
    %v2384 = vmul.f32 %v1805, %v2288
    %v2385 = vmul.f32 %v1810, %v2289
    %v2386 = vmul.f32 %v1815, %v2290
    %v2387 = vmul.f32 %v1820, %v2291
    %v2388 = vmul.f32 %v1825, %v2292
    %v2389 = vmul.f32 %v1830, %v2293
    %v2390 = vmul.f32 %v1835, %v2294
    %v2391 = vmul.f32 %v1840, %v2295
    %v2392 = vmul.f32 %v1845, %v2296
    %v2393 = vmul.f32 %v2185, %v2361
    %v2394 = vmul.f32 %v2186, %v2362
    %v2395 = vmul.f32 %v2187, %v2363
    %v2396 = vmul.f32 %v2188, %v2364
    %v2397 = vmul.f32 %v2189, %v2365
    %v2398 = vmul.f32 %v2190, %v2366
    %v2399 = vmul.f32 %v2191, %v2367
    %v2400 = vmul.f32 %v2192, %v2368
    %v2401 = vmul.f32 %v2193, %v2369
    %v2402 = vmul.f32 %v2194, %v2370
    %v2403 = vmul.f32 %v2195, %v2371
    %v2404 = vmul.f32 %v2196, %v2372
    %v2405 = vmul.f32 %v2197, %v2373
    %v2406 = vmul.f32 %v2198, %v2374
    %v2407 = vmul.f32 %v2199, %v2375
    %v2408 = vmul.f32 %v2200, %v2376
    %v2409 = vadd.f32 %v2377, %v2393
    %v2410 = vadd.f32 %v2378, %v2394
    %v2411 = vadd.f32 %v2379, %v2395
    %v2412 = vadd.f32 %v2380, %v2396
    %v2413 = vadd.f32 %v2381, %v2397
    %v2414 = vadd.f32 %v2382, %v2398
    %v2415 = vadd.f32 %v2383, %v2399
    %v2416 = vadd.f32 %v2384, %v2400
    %v2417 = vadd.f32 %v2385, %v2401
    %v2418 = vadd.f32 %v2386, %v2402
    %v2419 = vadd.f32 %v2387, %v2403
    %v2420 = vadd.f32 %v2388, %v2404
    %v2421 = vadd.f32 %v2389, %v2405
    %v2422 = vadd.f32 %v2390, %v2406
    %v2423 = vadd.f32 %v2391, %v2407
    %v2424 = vadd.f32 %v2392, %v2408
    %v2425 = vmul.f32 %v1770, %v1770
    %v2426 = vmul.f32 %v1775, %v1775
    %v2427 = vmul.f32 %v1780, %v1780
    %v2428 = vmul.f32 %v1785, %v1785
    %v2429 = vmul.f32 %v1790, %v1790
    %v2430 = vmul.f32 %v1795, %v1795
    %v2431 = vmul.f32 %v1800, %v1800
    %v2432 = vmul.f32 %v1805, %v1805
    %v2433 = vmul.f32 %v1810, %v1810
    %v2434 = vmul.f32 %v1815, %v1815
    %v2435 = vmul.f32 %v1820, %v1820
    %v2436 = vmul.f32 %v1825, %v1825
    %v2437 = vmul.f32 %v1830, %v1830
    %v2438 = vmul.f32 %v1835, %v1835
    %v2439 = vmul.f32 %v1840, %v1840
    %v2440 = vmul.f32 %v1845, %v1845
    %v2441 = vmul.f32 %v2185, %v2185
    %v2442 = vmul.f32 %v2186, %v2186
    %v2443 = vmul.f32 %v2187, %v2187
    %v2444 = vmul.f32 %v2188, %v2188
    %v2445 = vmul.f32 %v2189, %v2189
    %v2446 = vmul.f32 %v2190, %v2190
    %v2447 = vmul.f32 %v2191, %v2191
    %v2448 = vmul.f32 %v2192, %v2192
    %v2449 = vmul.f32 %v2193, %v2193
    %v2450 = vmul.f32 %v2194, %v2194
    %v2451 = vmul.f32 %v2195, %v2195
    %v2452 = vmul.f32 %v2196, %v2196
    %v2453 = vmul.f32 %v2197, %v2197
    %v2454 = vmul.f32 %v2198, %v2198
    %v2455 = vmul.f32 %v2199, %v2199
    %v2456 = vmul.f32 %v2200, %v2200
    %v2457 = vadd.f32 %v2425, %v2441
    %v2458 = vadd.f32 %v2426, %v2442
    %v2459 = vadd.f32 %v2427, %v2443
    %v2460 = vadd.f32 %v2428, %v2444
    %v2461 = vadd.f32 %v2429, %v2445
    %v2462 = vadd.f32 %v2430, %v2446
    %v2463 = vadd.f32 %v2431, %v2447
    %v2464 = vadd.f32 %v2432, %v2448
    %v2465 = vadd.f32 %v2433, %v2449
    %v2466 = vadd.f32 %v2434, %v2450
    %v2467 = vadd.f32 %v2435, %v2451
    %v2468 = vadd.f32 %v2436, %v2452
    %v2469 = vadd.f32 %v2437, %v2453
    %v2470 = vadd.f32 %v2438, %v2454
    %v2471 = vadd.f32 %v2439, %v2455
    %v2472 = vadd.f32 %v2440, %v2456
    %v2473 = vmul.f32 %v2457, %v2281
    %v2474 = vmul.f32 %v2458, %v2282
    %v2475 = vmul.f32 %v2459, %v2283
    %v2476 = vmul.f32 %v2460, %v2284
    %v2477 = vmul.f32 %v2461, %v2285
    %v2478 = vmul.f32 %v2462, %v2286
    %v2479 = vmul.f32 %v2463, %v2287
    %v2480 = vmul.f32 %v2464, %v2288
    %v2481 = vmul.f32 %v2465, %v2289
    %v2482 = vmul.f32 %v2466, %v2290
    %v2483 = vmul.f32 %v2467, %v2291
    %v2484 = vmul.f32 %v2468, %v2292
    %v2485 = vmul.f32 %v2469, %v2293
    %v2486 = vmul.f32 %v2470, %v2294
    %v2487 = vmul.f32 %v2471, %v2295
    %v2488 = vmul.f32 %v2472, %v2296
    %v2489 = vmul.f32 %v1770, %v2185
    %v2490 = vmul.f32 %v1775, %v2186
    %v2491 = vmul.f32 %v1780, %v2187
    %v2492 = vmul.f32 %v1785, %v2188
    %v2493 = vmul.f32 %v1790, %v2189
    %v2494 = vmul.f32 %v1795, %v2190
    %v2495 = vmul.f32 %v1800, %v2191
    %v2496 = vmul.f32 %v1805, %v2192
    %v2497 = vmul.f32 %v1810, %v2193
    %v2498 = vmul.f32 %v1815, %v2194
    %v2499 = vmul.f32 %v1820, %v2195
    %v2500 = vmul.f32 %v1825, %v2196
    %v2501 = vmul.f32 %v1830, %v2197
    %v2502 = vmul.f32 %v1835, %v2198
    %v2503 = vmul.f32 %v1840, %v2199
    %v2504 = vmul.f32 %v1845, %v2200
    %v2505 = vmul.f32 %v2489, %v2361
    %v2506 = vmul.f32 %v2490, %v2362
    %v2507 = vmul.f32 %v2491, %v2363
    %v2508 = vmul.f32 %v2492, %v2364
    %v2509 = vmul.f32 %v2493, %v2365
    %v2510 = vmul.f32 %v2494, %v2366
    %v2511 = vmul.f32 %v2495, %v2367
    %v2512 = vmul.f32 %v2496, %v2368
    %v2513 = vmul.f32 %v2497, %v2369
    %v2514 = vmul.f32 %v2498, %v2370
    %v2515 = vmul.f32 %v2499, %v2371
    %v2516 = vmul.f32 %v2500, %v2372
    %v2517 = vmul.f32 %v2501, %v2373
    %v2518 = vmul.f32 %v2502, %v2374
    %v2519 = vmul.f32 %v2503, %v2375
    %v2520 = vmul.f32 %v2504, %v2376
    %v2521 = vadd.f32 %v2473, %v2505
    %v2522 = vadd.f32 %v2474, %v2506
    %v2523 = vadd.f32 %v2475, %v2507
    %v2524 = vadd.f32 %v2476, %v2508
    %v2525 = vadd.f32 %v2477, %v2509
    %v2526 = vadd.f32 %v2478, %v2510
    %v2527 = vadd.f32 %v2479, %v2511
    %v2528 = vadd.f32 %v2480, %v2512
    %v2529 = vadd.f32 %v2481, %v2513
    %v2530 = vadd.f32 %v2482, %v2514
    %v2531 = vadd.f32 %v2483, %v2515
    %v2532 = vadd.f32 %v2484, %v2516
    %v2533 = vadd.f32 %v2485, %v2517
    %v2534 = vadd.f32 %v2486, %v2518
    %v2535 = vadd.f32 %v2487, %v2519
    %v2536 = vadd.f32 %v2488, %v2520
    %v2537 = vmul.f32 %v2409, %v2409
    %v2538 = vmul.f32 %v2410, %v2410
    %v2539 = vmul.f32 %v2411, %v2411
    %v2540 = vmul.f32 %v2412, %v2412
    %v2541 = vmul.f32 %v2413, %v2413
    %v2542 = vmul.f32 %v2414, %v2414
    %v2543 = vmul.f32 %v2415, %v2415
    %v2544 = vmul.f32 %v2416, %v2416
    %v2545 = vmul.f32 %v2417, %v2417
    %v2546 = vmul.f32 %v2418, %v2418
    %v2547 = vmul.f32 %v2419, %v2419
    %v2548 = vmul.f32 %v2420, %v2420
    %v2549 = vmul.f32 %v2421, %v2421
    %v2550 = vmul.f32 %v2422, %v2422
    %v2551 = vmul.f32 %v2423, %v2423
    %v2552 = vmul.f32 %v2424, %v2424
    %v2553 = vsub.f32 %v2521, %v2537
    %v2554 = vsub.f32 %v2522, %v2538
    %v2555 = vsub.f32 %v2523, %v2539
    %v2556 = vsub.f32 %v2524, %v2540
    %v2557 = vsub.f32 %v2525, %v2541
    %v2558 = vsub.f32 %v2526, %v2542
    %v2559 = vsub.f32 %v2527, %v2543
    %v2560 = vsub.f32 %v2528, %v2544
    %v2561 = vsub.f32 %v2529, %v2545
    %v2562 = vsub.f32 %v2530, %v2546
    %v2563 = vsub.f32 %v2531, %v2547
    %v2564 = vsub.f32 %v2532, %v2548
    %v2565 = vsub.f32 %v2533, %v2549
    %v2566 = vsub.f32 %v2534, %v2550
    %v2567 = vsub.f32 %v2535, %v2551
    %v2568 = vsub.f32 %v2536, %v2552
    %v2569 = vadd.f32 %v2553, 1e-06
    %v2570 = vadd.f32 %v2554, 1e-06
    %v2571 = vadd.f32 %v2555, 1e-06
    %v2572 = vadd.f32 %v2556, 1e-06
    %v2573 = vadd.f32 %v2557, 1e-06
    %v2574 = vadd.f32 %v2558, 1e-06
    %v2575 = vadd.f32 %v2559, 1e-06
    %v2576 = vadd.f32 %v2560, 1e-06
    %v2577 = vadd.f32 %v2561, 1e-06
    %v2578 = vadd.f32 %v2562, 1e-06
    %v2579 = vadd.f32 %v2563, 1e-06
    %v2580 = vadd.f32 %v2564, 1e-06
    %v2581 = vadd.f32 %v2565, 1e-06
    %v2582 = vadd.f32 %v2566, 1e-06
    %v2583 = vadd.f32 %v2567, 1e-06
    %v2584 = vadd.f32 %v2568, 1e-06
    %v2585 = vmax.f32 %v2569, 1e-06
    %v2586 = vmax.f32 %v2570, 1e-06
    %v2587 = vmax.f32 %v2571, 1e-06
    %v2588 = vmax.f32 %v2572, 1e-06
    %v2589 = vmax.f32 %v2573, 1e-06
    %v2590 = vmax.f32 %v2574, 1e-06
    %v2591 = vmax.f32 %v2575, 1e-06
    %v2592 = vmax.f32 %v2576, 1e-06
    %v2593 = vmax.f32 %v2577, 1e-06
    %v2594 = vmax.f32 %v2578, 1e-06
    %v2595 = vmax.f32 %v2579, 1e-06
    %v2596 = vmax.f32 %v2580, 1e-06
    %v2597 = vmax.f32 %v2581, 1e-06
    %v2598 = vmax.f32 %v2582, 1e-06
    %v2599 = vmax.f32 %v2583, 1e-06
    %v2600 = vmax.f32 %v2584, 1e-06
    %v2601 = vrsqrt.pop %v2585
    %v2602 = vmul.f32 %v2585, %v2601
    %vm2603 = vcmp.eq.f32.partialorder %v2585, inf
    %v2604 = vsel %vm2603, %v2585, %v2602
    %vm2605 = vcmp.eq.f32.partialorder %v2585, 0.0
    %v2606 = vand.u32 %v2585, 2147483648
    %v2607 = vsel %vm2605, %v2606, %v2604
    %v2608 = vrsqrt.pop %v2586
    %v2609 = vmul.f32 %v2586, %v2608
    %vm2610 = vcmp.eq.f32.partialorder %v2586, inf
    %v2611 = vsel %vm2610, %v2586, %v2609
    %vm2612 = vcmp.eq.f32.partialorder %v2586, 0.0
    %v2613 = vand.u32 %v2586, 2147483648
    %v2614 = vsel %vm2612, %v2613, %v2611
    %v2615 = vrsqrt.pop %v2587
    %v2616 = vmul.f32 %v2587, %v2615
    %vm2617 = vcmp.eq.f32.partialorder %v2587, inf
    %v2618 = vsel %vm2617, %v2587, %v2616
    %vm2619 = vcmp.eq.f32.partialorder %v2587, 0.0
    %v2620 = vand.u32 %v2587, 2147483648
    %v2621 = vsel %vm2619, %v2620, %v2618
    %v2622 = vrsqrt.pop %v2588
    %v2623 = vmul.f32 %v2588, %v2622
    %vm2624 = vcmp.eq.f32.partialorder %v2588, inf
    %v2625 = vsel %vm2624, %v2588, %v2623
    %vm2626 = vcmp.eq.f32.partialorder %v2588, 0.0
    %v2627 = vand.u32 %v2588, 2147483648
    %v2628 = vsel %vm2626, %v2627, %v2625
    %v2629 = vrsqrt.pop %v2589
    %v2630 = vmul.f32 %v2589, %v2629
    %vm2631 = vcmp.eq.f32.partialorder %v2589, inf
    %v2632 = vsel %vm2631, %v2589, %v2630
    %vm2633 = vcmp.eq.f32.partialorder %v2589, 0.0
    %v2634 = vand.u32 %v2589, 2147483648
    %v2635 = vsel %vm2633, %v2634, %v2632
    %v2636 = vrsqrt.pop %v2590
    %v2637 = vmul.f32 %v2590, %v2636
    %vm2638 = vcmp.eq.f32.partialorder %v2590, inf
    %v2639 = vsel %vm2638, %v2590, %v2637
    %vm2640 = vcmp.eq.f32.partialorder %v2590, 0.0
    %v2641 = vand.u32 %v2590, 2147483648
    %v2642 = vsel %vm2640, %v2641, %v2639
    %v2643 = vrsqrt.pop %v2591
    %v2644 = vmul.f32 %v2591, %v2643
    %vm2645 = vcmp.eq.f32.partialorder %v2591, inf
    %v2646 = vsel %vm2645, %v2591, %v2644
    %vm2647 = vcmp.eq.f32.partialorder %v2591, 0.0
    %v2648 = vand.u32 %v2591, 2147483648
    %v2649 = vsel %vm2647, %v2648, %v2646
    %v2650 = vrsqrt.pop %v2592
    %v2651 = vmul.f32 %v2592, %v2650
    %vm2652 = vcmp.eq.f32.partialorder %v2592, inf
    %v2653 = vsel %vm2652, %v2592, %v2651
    %vm2654 = vcmp.eq.f32.partialorder %v2592, 0.0
    %v2655 = vand.u32 %v2592, 2147483648
    %v2656 = vsel %vm2654, %v2655, %v2653
    %v2657 = vrsqrt.pop %v2593
    %v2658 = vmul.f32 %v2593, %v2657
    %vm2659 = vcmp.eq.f32.partialorder %v2593, inf
    %v2660 = vsel %vm2659, %v2593, %v2658
    %vm2661 = vcmp.eq.f32.partialorder %v2593, 0.0
    %v2662 = vand.u32 %v2593, 2147483648
    %v2663 = vsel %vm2661, %v2662, %v2660
    %v2664 = vrsqrt.pop %v2594
    %v2665 = vmul.f32 %v2594, %v2664
    %vm2666 = vcmp.eq.f32.partialorder %v2594, inf
    %v2667 = vsel %vm2666, %v2594, %v2665
    %vm2668 = vcmp.eq.f32.partialorder %v2594, 0.0
    %v2669 = vand.u32 %v2594, 2147483648
    %v2670 = vsel %vm2668, %v2669, %v2667
    %v2671 = vrsqrt.pop %v2595
    %v2672 = vmul.f32 %v2595, %v2671
    %vm2673 = vcmp.eq.f32.partialorder %v2595, inf
    %v2674 = vsel %vm2673, %v2595, %v2672
    %vm2675 = vcmp.eq.f32.partialorder %v2595, 0.0
    %v2676 = vand.u32 %v2595, 2147483648
    %v2677 = vsel %vm2675, %v2676, %v2674
    %v2678 = vrsqrt.pop %v2596
    %v2679 = vmul.f32 %v2596, %v2678
    %vm2680 = vcmp.eq.f32.partialorder %v2596, inf
    %v2681 = vsel %vm2680, %v2596, %v2679
    %vm2682 = vcmp.eq.f32.partialorder %v2596, 0.0
    %v2683 = vand.u32 %v2596, 2147483648
    %v2684 = vsel %vm2682, %v2683, %v2681
    %v2685 = vrsqrt.pop %v2597
    %v2686 = vmul.f32 %v2597, %v2685
    %vm2687 = vcmp.eq.f32.partialorder %v2597, inf
    %v2688 = vsel %vm2687, %v2597, %v2686
    %vm2689 = vcmp.eq.f32.partialorder %v2597, 0.0
    %v2690 = vand.u32 %v2597, 2147483648
    %v2691 = vsel %vm2689, %v2690, %v2688
    %v2692 = vrsqrt.pop %v2598
    %v2693 = vmul.f32 %v2598, %v2692
    %vm2694 = vcmp.eq.f32.partialorder %v2598, inf
    %v2695 = vsel %vm2694, %v2598, %v2693
    %vm2696 = vcmp.eq.f32.partialorder %v2598, 0.0
    %v2697 = vand.u32 %v2598, 2147483648
    %v2698 = vsel %vm2696, %v2697, %v2695
    %v2699 = vrsqrt.pop %v2599
    %v2700 = vmul.f32 %v2599, %v2699
    %vm2701 = vcmp.eq.f32.partialorder %v2599, inf
    %v2702 = vsel %vm2701, %v2599, %v2700
    %vm2703 = vcmp.eq.f32.partialorder %v2599, 0.0
    %v2704 = vand.u32 %v2599, 2147483648
    %v2705 = vsel %vm2703, %v2704, %v2702
    %v2706 = vrsqrt.pop %v2600
    %v2707 = vmul.f32 %v2600, %v2706
    %vm2708 = vcmp.eq.f32.partialorder %v2600, inf
    %v2709 = vsel %vm2708, %v2600, %v2707
    %vm2710 = vcmp.eq.f32.partialorder %v2600, 0.0
    %v2711 = vand.u32 %v2600, 2147483648
    %v2712 = vsel %vm2710, %v2711, %v2709
    %v2714 = vlaneseq
    %v2715 = vshrl.u32 %v2714, 7
    %v2716 = vsub.s32 0, %v2715
    %v2717 = vrot.slane %v1639, %v2716
    %v2720 = vsel %vm1097, %v2409, 0
    %v2723 = vsel %vm1097, %v2410, 0
    %v2726 = vsel %vm1097, %v2411, 0
    %v2729 = vsel %vm1097, %v2412, 0
    %v2732 = vsel %vm1097, %v2413, 0
    %v2735 = vsel %vm1097, %v2414, 0
    %v2738 = vsel %vm1097, %v2415, 0
    %v2741 = vsel %vm1097, %v2416, 0
    %v2744 = vsel %vm1097, %v2417, 0
    %v2747 = vsel %vm1097, %v2418, 0
    %v2750 = vsel %vm1097, %v2419, 0
    %v2753 = vsel %vm1097, %v2420, 0
    %v2756 = vsel %vm1097, %v2421, 0
    %v2759 = vsel %vm1097, %v2422, 0
    %v2762 = vsel %vm1097, %v2423, 0
    %v2765 = vsel %vm1097, %v2424, 0
    %2767 = vmatprep.subr.mxu0 0.0
    %2768 = vmatpush1.msra.mxu0 0.0
    %2769 = vmatprep.subr.mxu0 0.0
    %2770 = vmatpush1.msra.mxu0 0.0
    %2771 = vmatprep.subr.mxu0 0.0
    %2772 = vmatpush1.msra.mxu0 0.0
    %2773 = vmatprep.subr.mxu0 0.0
    %2774 = vmatpush1.msra.mxu0 0.0
    %2775 = vmatprep.subr.mxu0 0.0
    %2776 = vmatpush1.msra.mxu0 0.0
    %2777 = vmatprep.subr.mxu0 0.0
    %2778 = vmatpush1.msra.mxu0 0.0
    %2779 = vmatprep.subr.mxu0 0.0
    %2780 = vmatpush1.msra.mxu0 0.0
    %2781 = vmatprep.subr.mxu0 0.0
    %2782 = vmatpush1.msra.mxu0 0.0
    %2783 = vmatprep.subr.mxu0 0.0
    %2784 = vmatpush1.msra.mxu0 0.0
    %2785 = vmatprep.subr.mxu0 0.0
    %2786 = vmatpush1.msra.mxu0 0.0
    %2787 = vmatprep.subr.mxu0 0.0
    %2788 = vmatpush1.msra.mxu0 0.0
    %2789 = vmatprep.subr.mxu0 0.0
    %2790 = vmatpush1.msra.mxu0 0.0
    %2791 = vmatprep.subr.mxu0 0.0
    %2792 = vmatpush1.msra.mxu0 %v1643
    %2793 = vmatprep.subr.mxu0 0.0
    %2794 = vmatpush1.msra.mxu0 %v1642
    %2795 = vmatprep.subr.mxu0 0.0
    %2796 = vmatpush1.msra.mxu0 %v1641
    %2797 = vmatprep.subr.mxu0 0.0
    %2798 = vmatpush1.msra.mxu0 %v1640
    %2799 = vmatprep.subr.mxu0 0.0
    %2800 = vmatpush2.msra.mxu0 0.0
    %2801 = vmatprep.subr.mxu0 0.0
    %2802 = vmatpush2.msra.mxu0 0.0
    %2803 = vmatprep.subr.mxu0 0.0
    %2804 = vmatpush2.msra.mxu0 0.0
    %2805 = vmatprep.subr.mxu0 0.0
    %2806 = vmatpush2.msra.mxu0 0.0
    %2807 = vmatprep.subr.mxu0 0.0
    %2808 = vmatpush2.msra.mxu0 0.0
    %2809 = vmatprep.subr.mxu0 0.0
    %2810 = vmatpush2.msra.mxu0 0.0
    %2811 = vmatprep.subr.mxu0 0.0
    %2812 = vmatpush2.msra.mxu0 0.0
    %2813 = vmatprep.subr.mxu0 0.0
    %2814 = vmatpush2.msra.mxu0 0.0
    %2815 = vmatprep.subr.mxu0 0.0
    %2816 = vmatpush2.msra.mxu0 0.0
    %2817 = vmatprep.subr.mxu0 0.0
    %2818 = vmatpush2.msra.mxu0 0.0
    %2819 = vmatprep.subr.mxu0 0.0
    %2820 = vmatpush2.msra.mxu0 0.0
    %2821 = vmatprep.subr.mxu0 0.0
    %2822 = vmatpush2.msra.mxu0 0.0
    %2823 = vmatprep.subr.mxu0 0.0
    %2824 = vmatpush2.msra.mxu0 0.0
    %2825 = vmatprep.subr.mxu0 0.0
    %2826 = vmatpush2.msra.mxu0 0.0
    %2827 = vmatprep.subr.mxu0 0.0
    %2828 = vmatpush2.msra.mxu0 0.0
    %2829 = vmatprep.subr.mxu0 0.0
    %2830 = vmatpush2.msra.mxu0 0.0
    %2831 = vmatprep.mubr.f32.mxu0 0.0
    %2832 = vmatmul.mubr.f32.gmra.mxu0 %v2720
    %v2833 = vpop.f32.mrf.mxu0
    %v2834 = vadd.f32 %v2717, %v2833
    %v2835 = vpop.f32.mrf.mxu0
    %2836 = vmatprep.mubr.f32.mxu0 0.0
    %2837 = vmatmul.mubr.f32.gmra.mxu0 %v2723
    %v2838 = vpop.f32.mrf.mxu0
    %v2839 = vadd.f32 %v2717, %v2838
    %v2840 = vpop.f32.mrf.mxu0
    %2841 = vmatprep.mubr.f32.mxu0 0.0
    %2842 = vmatmul.mubr.f32.gmra.mxu0 %v2726
    %v2843 = vpop.f32.mrf.mxu0
    %v2844 = vadd.f32 %v2717, %v2843
    %v2845 = vpop.f32.mrf.mxu0
    %2846 = vmatprep.mubr.f32.mxu0 0.0
    %2847 = vmatmul.mubr.f32.gmra.mxu0 %v2729
    %v2848 = vpop.f32.mrf.mxu0
    %v2849 = vadd.f32 %v2717, %v2848
    %v2850 = vpop.f32.mrf.mxu0
    %2851 = vmatprep.mubr.f32.mxu0 0.0
    %2852 = vmatmul.mubr.f32.gmra.mxu0 %v2732
    %v2853 = vpop.f32.mrf.mxu0
    %v2854 = vadd.f32 %v2717, %v2853
    %v2855 = vpop.f32.mrf.mxu0
    %2856 = vmatprep.mubr.f32.mxu0 0.0
    %2857 = vmatmul.mubr.f32.gmra.mxu0 %v2735
    %v2858 = vpop.f32.mrf.mxu0
    %v2859 = vadd.f32 %v2717, %v2858
    %v2860 = vpop.f32.mrf.mxu0
    %2861 = vmatprep.mubr.f32.mxu0 0.0
    %2862 = vmatmul.mubr.f32.gmra.mxu0 %v2738
    %v2863 = vpop.f32.mrf.mxu0
    %v2864 = vadd.f32 %v2717, %v2863
    %v2865 = vpop.f32.mrf.mxu0
    %2866 = vmatprep.mubr.f32.mxu0 0.0
    %2867 = vmatmul.mubr.f32.gmra.mxu0 %v2741
    %v2868 = vpop.f32.mrf.mxu0
    %v2869 = vadd.f32 %v2717, %v2868
    %v2870 = vpop.f32.mrf.mxu0
    %2871 = vmatprep.mubr.f32.mxu0 0.0
    %2872 = vmatmul.mubr.f32.gmra.mxu0 %v2744
    %v2873 = vpop.f32.mrf.mxu0
    %v2874 = vadd.f32 %v2717, %v2873
    %v2875 = vpop.f32.mrf.mxu0
    %2876 = vmatprep.mubr.f32.mxu0 0.0
    %2877 = vmatmul.mubr.f32.gmra.mxu0 %v2747
    %v2878 = vpop.f32.mrf.mxu0
    %v2879 = vadd.f32 %v2717, %v2878
    %v2880 = vpop.f32.mrf.mxu0
    %2881 = vmatprep.mubr.f32.mxu0 0.0
    %2882 = vmatmul.mubr.f32.gmra.mxu0 %v2750
    %v2883 = vpop.f32.mrf.mxu0
    %v2884 = vadd.f32 %v2717, %v2883
    %v2885 = vpop.f32.mrf.mxu0
    %2886 = vmatprep.mubr.f32.mxu0 0.0
    %2887 = vmatmul.mubr.f32.gmra.mxu0 %v2753
    %v2888 = vpop.f32.mrf.mxu0
    %v2889 = vadd.f32 %v2717, %v2888
    %v2890 = vpop.f32.mrf.mxu0
    %2891 = vmatprep.mubr.f32.mxu0 0.0
    %2892 = vmatmul.mubr.f32.gmra.mxu0 %v2756
    %v2893 = vpop.f32.mrf.mxu0
    %v2894 = vadd.f32 %v2717, %v2893
    %v2895 = vpop.f32.mrf.mxu0
    %2896 = vmatprep.mubr.f32.mxu0 0.0
    %2897 = vmatmul.mubr.f32.gmra.mxu0 %v2759
    %v2898 = vpop.f32.mrf.mxu0
    %v2899 = vadd.f32 %v2717, %v2898
    %v2900 = vpop.f32.mrf.mxu0
    %2901 = vmatprep.mubr.f32.mxu0 0.0
    %2902 = vmatmul.mubr.f32.gmra.mxu0 %v2762
    %v2903 = vpop.f32.mrf.mxu0
    %v2904 = vadd.f32 %v2717, %v2903
    %v2905 = vpop.f32.mrf.mxu0
    %2906 = vmatprep.mubr.f32.mxu0 0.0
    %2907 = vmatmul.mubr.f32.gmra.mxu0 %v2765
    %v2908 = vpop.f32.mrf.mxu0
    %v2909 = vadd.f32 %v2717, %v2908
    %v2910 = vpop.f32.mrf.mxu0
    %2911 = vdwg.mxu0
    %v2912 = vmul.f32 %v2607, %v2607
    %v2913 = vmul.f32 %v2614, %v2614
    %v2914 = vmul.f32 %v2621, %v2621
    %v2915 = vmul.f32 %v2628, %v2628
    %v2916 = vmul.f32 %v2635, %v2635
    %v2917 = vmul.f32 %v2642, %v2642
    %v2918 = vmul.f32 %v2649, %v2649
    %v2919 = vmul.f32 %v2656, %v2656
    %v2920 = vmul.f32 %v2663, %v2663
    %v2921 = vmul.f32 %v2670, %v2670
    %v2922 = vmul.f32 %v2677, %v2677
    %v2923 = vmul.f32 %v2684, %v2684
    %v2924 = vmul.f32 %v2691, %v2691
    %v2925 = vmul.f32 %v2698, %v2698
    %v2926 = vmul.f32 %v2705, %v2705
    %v2927 = vmul.f32 %v2712, %v2712
    %v2929 = vsel %vm1097, %v2912, 0
    %v2932 = vsel %vm1097, %v2913, 0
    %v2935 = vsel %vm1097, %v2914, 0
    %v2938 = vsel %vm1097, %v2915, 0
    %v2941 = vsel %vm1097, %v2916, 0
    %v2944 = vsel %vm1097, %v2917, 0
    %v2947 = vsel %vm1097, %v2918, 0
    %v2950 = vsel %vm1097, %v2919, 0
    %v2953 = vsel %vm1097, %v2920, 0
    %v2956 = vsel %vm1097, %v2921, 0
    %v2959 = vsel %vm1097, %v2922, 0
    %v2962 = vsel %vm1097, %v2923, 0
    %v2965 = vsel %vm1097, %v2924, 0
    %v2968 = vsel %vm1097, %v2925, 0
    %v2971 = vsel %vm1097, %v2926, 0
    %v2974 = vsel %vm1097, %v2927, 0
    %2976 = vmatprep.subr.mxu0 0.0
    %2977 = vmatpush1.msra.mxu0 0.0
    %2978 = vmatprep.subr.mxu0 0.0
    %2979 = vmatpush1.msra.mxu0 0.0
    %2980 = vmatprep.subr.mxu0 0.0
    %2981 = vmatpush1.msra.mxu0 0.0
    %2982 = vmatprep.subr.mxu0 0.0
    %2983 = vmatpush1.msra.mxu0 0.0
    %2984 = vmatprep.subr.mxu0 0.0
    %2985 = vmatpush1.msra.mxu0 0.0
    %2986 = vmatprep.subr.mxu0 0.0
    %2987 = vmatpush1.msra.mxu0 0.0
    %2988 = vmatprep.subr.mxu0 0.0
    %2989 = vmatpush1.msra.mxu0 0.0
    %2990 = vmatprep.subr.mxu0 0.0
    %2991 = vmatpush1.msra.mxu0 0.0
    %2992 = vmatprep.subr.mxu0 0.0
    %2993 = vmatpush1.msra.mxu0 0.0
    %2994 = vmatprep.subr.mxu0 0.0
    %2995 = vmatpush1.msra.mxu0 0.0
    %2996 = vmatprep.subr.mxu0 0.0
    %2997 = vmatpush1.msra.mxu0 0.0
    %2998 = vmatprep.subr.mxu0 0.0
    %2999 = vmatpush1.msra.mxu0 0.0
    %3000 = vmatprep.subr.mxu0 0.0
    %3001 = vmatpush1.msra.mxu0 %v1648
    %3002 = vmatprep.subr.mxu0 0.0
    %3003 = vmatpush1.msra.mxu0 %v1647
    %3004 = vmatprep.subr.mxu0 0.0
    %3005 = vmatpush1.msra.mxu0 %v1646
    %3006 = vmatprep.subr.mxu0 0.0
    %3007 = vmatpush1.msra.mxu0 %v1645
    %3008 = vmatprep.subr.mxu0 0.0
    %3009 = vmatpush2.msra.mxu0 0.0
    %3010 = vmatprep.subr.mxu0 0.0
    %3011 = vmatpush2.msra.mxu0 0.0
    %3012 = vmatprep.subr.mxu0 0.0
    %3013 = vmatpush2.msra.mxu0 0.0
    %3014 = vmatprep.subr.mxu0 0.0
    %3015 = vmatpush2.msra.mxu0 0.0
    %3016 = vmatprep.subr.mxu0 0.0
    %3017 = vmatpush2.msra.mxu0 0.0
    %3018 = vmatprep.subr.mxu0 0.0
    %3019 = vmatpush2.msra.mxu0 0.0
    %3020 = vmatprep.subr.mxu0 0.0
    %3021 = vmatpush2.msra.mxu0 0.0
    %3022 = vmatprep.subr.mxu0 0.0
    %3023 = vmatpush2.msra.mxu0 0.0
    %3024 = vmatprep.subr.mxu0 0.0
    %3025 = vmatpush2.msra.mxu0 0.0
    %3026 = vmatprep.subr.mxu0 0.0
    %3027 = vmatpush2.msra.mxu0 0.0
    %3028 = vmatprep.subr.mxu0 0.0
    %3029 = vmatpush2.msra.mxu0 0.0
    %3030 = vmatprep.subr.mxu0 0.0
    %3031 = vmatpush2.msra.mxu0 0.0
    %3032 = vmatprep.subr.mxu0 0.0
    %3033 = vmatpush2.msra.mxu0 0.0
    %3034 = vmatprep.subr.mxu0 0.0
    %3035 = vmatpush2.msra.mxu0 0.0
    %3036 = vmatprep.subr.mxu0 0.0
    %3037 = vmatpush2.msra.mxu0 0.0
    %3038 = vmatprep.subr.mxu0 0.0
    %3039 = vmatpush2.msra.mxu0 0.0
    %3040 = vmatprep.mubr.f32.mxu0 0.0
    %3041 = vmatmul.mubr.f32.gmra.mxu0 %v2929
    %v3042 = vpop.f32.mrf.mxu0
    %v3043 = vadd.f32 0.0, %v3042
    %v3044 = vpop.f32.mrf.mxu0
    %3045 = vmatprep.mubr.f32.mxu0 0.0
    %3046 = vmatmul.mubr.f32.gmra.mxu0 %v2932
    %v3047 = vpop.f32.mrf.mxu0
    %v3048 = vadd.f32 0.0, %v3047
    %v3049 = vpop.f32.mrf.mxu0
    %3050 = vmatprep.mubr.f32.mxu0 0.0
    %3051 = vmatmul.mubr.f32.gmra.mxu0 %v2935
    %v3052 = vpop.f32.mrf.mxu0
    %v3053 = vadd.f32 0.0, %v3052
    %v3054 = vpop.f32.mrf.mxu0
    %3055 = vmatprep.mubr.f32.mxu0 0.0
    %3056 = vmatmul.mubr.f32.gmra.mxu0 %v2938
    %v3057 = vpop.f32.mrf.mxu0
    %v3058 = vadd.f32 0.0, %v3057
    %v3059 = vpop.f32.mrf.mxu0
    %3060 = vmatprep.mubr.f32.mxu0 0.0
    %3061 = vmatmul.mubr.f32.gmra.mxu0 %v2941
    %v3062 = vpop.f32.mrf.mxu0
    %v3063 = vadd.f32 0.0, %v3062
    %v3064 = vpop.f32.mrf.mxu0
    %3065 = vmatprep.mubr.f32.mxu0 0.0
    %3066 = vmatmul.mubr.f32.gmra.mxu0 %v2944
    %v3067 = vpop.f32.mrf.mxu0
    %v3068 = vadd.f32 0.0, %v3067
    %v3069 = vpop.f32.mrf.mxu0
    %3070 = vmatprep.mubr.f32.mxu0 0.0
    %3071 = vmatmul.mubr.f32.gmra.mxu0 %v2947
    %v3072 = vpop.f32.mrf.mxu0
    %v3073 = vadd.f32 0.0, %v3072
    %v3074 = vpop.f32.mrf.mxu0
    %3075 = vmatprep.mubr.f32.mxu0 0.0
    %3076 = vmatmul.mubr.f32.gmra.mxu0 %v2950
    %v3077 = vpop.f32.mrf.mxu0
    %v3078 = vadd.f32 0.0, %v3077
    %v3079 = vpop.f32.mrf.mxu0
    %3080 = vmatprep.mubr.f32.mxu0 0.0
    %3081 = vmatmul.mubr.f32.gmra.mxu0 %v2953
    %v3082 = vpop.f32.mrf.mxu0
    %v3083 = vadd.f32 0.0, %v3082
    %v3084 = vpop.f32.mrf.mxu0
    %3085 = vmatprep.mubr.f32.mxu0 0.0
    %3086 = vmatmul.mubr.f32.gmra.mxu0 %v2956
    %v3087 = vpop.f32.mrf.mxu0
    %v3088 = vadd.f32 0.0, %v3087
    %v3089 = vpop.f32.mrf.mxu0
    %3090 = vmatprep.mubr.f32.mxu0 0.0
    %3091 = vmatmul.mubr.f32.gmra.mxu0 %v2959
    %v3092 = vpop.f32.mrf.mxu0
    %v3093 = vadd.f32 0.0, %v3092
    %v3094 = vpop.f32.mrf.mxu0
    %3095 = vmatprep.mubr.f32.mxu0 0.0
    %3096 = vmatmul.mubr.f32.gmra.mxu0 %v2962
    %v3097 = vpop.f32.mrf.mxu0
    %v3098 = vadd.f32 0.0, %v3097
    %v3099 = vpop.f32.mrf.mxu0
    %3100 = vmatprep.mubr.f32.mxu0 0.0
    %3101 = vmatmul.mubr.f32.gmra.mxu0 %v2965
    %v3102 = vpop.f32.mrf.mxu0
    %v3103 = vadd.f32 0.0, %v3102
    %v3104 = vpop.f32.mrf.mxu0
    %3105 = vmatprep.mubr.f32.mxu0 0.0
    %3106 = vmatmul.mubr.f32.gmra.mxu0 %v2968
    %v3107 = vpop.f32.mrf.mxu0
    %v3108 = vadd.f32 0.0, %v3107
    %v3109 = vpop.f32.mrf.mxu0
    %3110 = vmatprep.mubr.f32.mxu0 0.0
    %3111 = vmatmul.mubr.f32.gmra.mxu0 %v2971
    %v3112 = vpop.f32.mrf.mxu0
    %v3113 = vadd.f32 0.0, %v3112
    %v3114 = vpop.f32.mrf.mxu0
    %3115 = vmatprep.mubr.f32.mxu0 0.0
    %3116 = vmatmul.mubr.f32.gmra.mxu0 %v2974
    %v3117 = vpop.f32.mrf.mxu0
    %v3118 = vadd.f32 0.0, %v3117
    %v3119 = vpop.f32.mrf.mxu0
    %3120 = vdwg.mxu0
    %v3121 = vmax.f32 %v3043, 1e-07
    %v3122 = vmax.f32 %v3048, 1e-07
    %v3123 = vmax.f32 %v3053, 1e-07
    %v3124 = vmax.f32 %v3058, 1e-07
    %v3125 = vmax.f32 %v3063, 1e-07
    %v3126 = vmax.f32 %v3068, 1e-07
    %v3127 = vmax.f32 %v3073, 1e-07
    %v3128 = vmax.f32 %v3078, 1e-07
    %v3129 = vmax.f32 %v3083, 1e-07
    %v3130 = vmax.f32 %v3088, 1e-07
    %v3131 = vmax.f32 %v3093, 1e-07
    %v3132 = vmax.f32 %v3098, 1e-07
    %v3133 = vmax.f32 %v3103, 1e-07
    %v3134 = vmax.f32 %v3108, 1e-07
    %v3135 = vmax.f32 %v3113, 1e-07
    %v3136 = vmax.f32 %v3118, 1e-07
    %v3137 = vrsqrt.pop %v3121
    %v3138 = vmul.f32 %v3121, %v3137
    %vm3139 = vcmp.eq.f32.partialorder %v3121, inf
    %v3140 = vsel %vm3139, %v3121, %v3138
    %vm3141 = vcmp.eq.f32.partialorder %v3121, 0.0
    %v3142 = vand.u32 %v3121, 2147483648
    %v3143 = vsel %vm3141, %v3142, %v3140
    %v3144 = vrsqrt.pop %v3122
    %v3145 = vmul.f32 %v3122, %v3144
    %vm3146 = vcmp.eq.f32.partialorder %v3122, inf
    %v3147 = vsel %vm3146, %v3122, %v3145
    %vm3148 = vcmp.eq.f32.partialorder %v3122, 0.0
    %v3149 = vand.u32 %v3122, 2147483648
    %v3150 = vsel %vm3148, %v3149, %v3147
    %v3151 = vrsqrt.pop %v3123
    %v3152 = vmul.f32 %v3123, %v3151
    %vm3153 = vcmp.eq.f32.partialorder %v3123, inf
    %v3154 = vsel %vm3153, %v3123, %v3152
    %vm3155 = vcmp.eq.f32.partialorder %v3123, 0.0
    %v3156 = vand.u32 %v3123, 2147483648
    %v3157 = vsel %vm3155, %v3156, %v3154
    %v3158 = vrsqrt.pop %v3124
    %v3159 = vmul.f32 %v3124, %v3158
    %vm3160 = vcmp.eq.f32.partialorder %v3124, inf
    %v3161 = vsel %vm3160, %v3124, %v3159
    %vm3162 = vcmp.eq.f32.partialorder %v3124, 0.0
    %v3163 = vand.u32 %v3124, 2147483648
    %v3164 = vsel %vm3162, %v3163, %v3161
    %v3165 = vrsqrt.pop %v3125
    %v3166 = vmul.f32 %v3125, %v3165
    %vm3167 = vcmp.eq.f32.partialorder %v3125, inf
    %v3168 = vsel %vm3167, %v3125, %v3166
    %vm3169 = vcmp.eq.f32.partialorder %v3125, 0.0
    %v3170 = vand.u32 %v3125, 2147483648
    %v3171 = vsel %vm3169, %v3170, %v3168
    %v3172 = vrsqrt.pop %v3126
    %v3173 = vmul.f32 %v3126, %v3172
    %vm3174 = vcmp.eq.f32.partialorder %v3126, inf
    %v3175 = vsel %vm3174, %v3126, %v3173
    %vm3176 = vcmp.eq.f32.partialorder %v3126, 0.0
    %v3177 = vand.u32 %v3126, 2147483648
    %v3178 = vsel %vm3176, %v3177, %v3175
    %v3179 = vrsqrt.pop %v3127
    %v3180 = vmul.f32 %v3127, %v3179
    %vm3181 = vcmp.eq.f32.partialorder %v3127, inf
    %v3182 = vsel %vm3181, %v3127, %v3180
    %vm3183 = vcmp.eq.f32.partialorder %v3127, 0.0
    %v3184 = vand.u32 %v3127, 2147483648
    %v3185 = vsel %vm3183, %v3184, %v3182
    %v3186 = vrsqrt.pop %v3128
    %v3187 = vmul.f32 %v3128, %v3186
    %vm3188 = vcmp.eq.f32.partialorder %v3128, inf
    %v3189 = vsel %vm3188, %v3128, %v3187
    %vm3190 = vcmp.eq.f32.partialorder %v3128, 0.0
    %v3191 = vand.u32 %v3128, 2147483648
    %v3192 = vsel %vm3190, %v3191, %v3189
    %v3193 = vrsqrt.pop %v3129
    %v3194 = vmul.f32 %v3129, %v3193
    %vm3195 = vcmp.eq.f32.partialorder %v3129, inf
    %v3196 = vsel %vm3195, %v3129, %v3194
    %vm3197 = vcmp.eq.f32.partialorder %v3129, 0.0
    %v3198 = vand.u32 %v3129, 2147483648
    %v3199 = vsel %vm3197, %v3198, %v3196
    %v3200 = vrsqrt.pop %v3130
    %v3201 = vmul.f32 %v3130, %v3200
    %vm3202 = vcmp.eq.f32.partialorder %v3130, inf
    %v3203 = vsel %vm3202, %v3130, %v3201
    %vm3204 = vcmp.eq.f32.partialorder %v3130, 0.0
    %v3205 = vand.u32 %v3130, 2147483648
    %v3206 = vsel %vm3204, %v3205, %v3203
    %v3207 = vrsqrt.pop %v3131
    %v3208 = vmul.f32 %v3131, %v3207
    %vm3209 = vcmp.eq.f32.partialorder %v3131, inf
    %v3210 = vsel %vm3209, %v3131, %v3208
    %vm3211 = vcmp.eq.f32.partialorder %v3131, 0.0
    %v3212 = vand.u32 %v3131, 2147483648
    %v3213 = vsel %vm3211, %v3212, %v3210
    %v3214 = vrsqrt.pop %v3132
    %v3215 = vmul.f32 %v3132, %v3214
    %vm3216 = vcmp.eq.f32.partialorder %v3132, inf
    %v3217 = vsel %vm3216, %v3132, %v3215
    %vm3218 = vcmp.eq.f32.partialorder %v3132, 0.0
    %v3219 = vand.u32 %v3132, 2147483648
    %v3220 = vsel %vm3218, %v3219, %v3217
    %v3221 = vrsqrt.pop %v3133
    %v3222 = vmul.f32 %v3133, %v3221
    %vm3223 = vcmp.eq.f32.partialorder %v3133, inf
    %v3224 = vsel %vm3223, %v3133, %v3222
    %vm3225 = vcmp.eq.f32.partialorder %v3133, 0.0
    %v3226 = vand.u32 %v3133, 2147483648
    %v3227 = vsel %vm3225, %v3226, %v3224
    %v3228 = vrsqrt.pop %v3134
    %v3229 = vmul.f32 %v3134, %v3228
    %vm3230 = vcmp.eq.f32.partialorder %v3134, inf
    %v3231 = vsel %vm3230, %v3134, %v3229
    %vm3232 = vcmp.eq.f32.partialorder %v3134, 0.0
    %v3233 = vand.u32 %v3134, 2147483648
    %v3234 = vsel %vm3232, %v3233, %v3231
    %v3235 = vrsqrt.pop %v3135
    %v3236 = vmul.f32 %v3135, %v3235
    %vm3237 = vcmp.eq.f32.partialorder %v3135, inf
    %v3238 = vsel %vm3237, %v3135, %v3236
    %vm3239 = vcmp.eq.f32.partialorder %v3135, 0.0
    %v3240 = vand.u32 %v3135, 2147483648
    %v3241 = vsel %vm3239, %v3240, %v3238
    %v3242 = vrsqrt.pop %v3136
    %v3243 = vmul.f32 %v3136, %v3242
    %vm3244 = vcmp.eq.f32.partialorder %v3136, inf
    %v3245 = vsel %vm3244, %v3136, %v3243
    %vm3246 = vcmp.eq.f32.partialorder %v3136, 0.0
    %v3247 = vand.u32 %v3136, 2147483648
    %v3248 = vsel %vm3246, %v3247, %v3245
    %v3249 = vld [vmem:[%s8] sm:$0xff]
    %v3250 = vld [vmem:[%s8 + $0x8] sm:$0xff]
    %v3251 = vld [vmem:[%s8 + $0x10] sm:$0xff]
    %v3252 = vld [vmem:[%s8 + $0x18] sm:$0xff]
    %s3253 = scalar_lea.vmem %s8, 32
    %v3254 = vld [vmem:[%s3253] sm:$0xff]
    %v3255 = vld [vmem:[%s3253 + $0x8] sm:$0xff]
    %v3256 = vld [vmem:[%s3253 + $0x10] sm:$0xff]
    %v3257 = vld [vmem:[%s3253 + $0x18] sm:$0xff]
    %v3258 = vld [vmem:[%s9] sm:$0x1]
    %s3259 = scalar_lea.vmem %s9, 1
    %v3260 = vld [vmem:[%s3259] sm:$0x1]
    %v3261 = vld [vmem:[%s10] sm:$0xff]
    %v3262 = vld [vmem:[%s10 + $0x8] sm:$0xff]
    %v3263 = vld [vmem:[%s10 + $0x10] sm:$0xff]
    %v3264 = vld [vmem:[%s10 + $0x18] sm:$0xff]
    %v3266 = vlaneseq
    %v3267 = vshrl.u32 %v3266, 7
    %v3268 = vsub.s32 0, %v3267
    %v3269 = vrot.slane %v3258, %v3268
    %v3272 = vsel %vm1097, %v2834, 0
    %v3275 = vsel %vm1097, %v2839, 0
    %v3278 = vsel %vm1097, %v2844, 0
    %v3281 = vsel %vm1097, %v2849, 0
    %v3284 = vsel %vm1097, %v2854, 0
    %v3287 = vsel %vm1097, %v2859, 0
    %v3290 = vsel %vm1097, %v2864, 0
    %v3293 = vsel %vm1097, %v2869, 0
    %v3296 = vsel %vm1097, %v2874, 0
    %v3299 = vsel %vm1097, %v2879, 0
    %v3302 = vsel %vm1097, %v2884, 0
    %v3305 = vsel %vm1097, %v2889, 0
    %v3308 = vsel %vm1097, %v2894, 0
    %v3311 = vsel %vm1097, %v2899, 0
    %v3314 = vsel %vm1097, %v2904, 0
    %v3317 = vsel %vm1097, %v2909, 0
    %3319 = vmatprep.subr.mxu0 0.0
    %3320 = vmatpush1.msra.mxu0 0.0
    %3321 = vmatprep.subr.mxu0 0.0
    %3322 = vmatpush1.msra.mxu0 0.0
    %3323 = vmatprep.subr.mxu0 0.0
    %3324 = vmatpush1.msra.mxu0 0.0
    %3325 = vmatprep.subr.mxu0 0.0
    %3326 = vmatpush1.msra.mxu0 0.0
    %3327 = vmatprep.subr.mxu0 0.0
    %3328 = vmatpush1.msra.mxu0 0.0
    %3329 = vmatprep.subr.mxu0 0.0
    %3330 = vmatpush1.msra.mxu0 0.0
    %3331 = vmatprep.subr.mxu0 0.0
    %3332 = vmatpush1.msra.mxu0 0.0
    %3333 = vmatprep.subr.mxu0 0.0
    %3334 = vmatpush1.msra.mxu0 0.0
    %3335 = vmatprep.subr.mxu0 0.0
    %3336 = vmatpush1.msra.mxu0 0.0
    %3337 = vmatprep.subr.mxu0 0.0
    %3338 = vmatpush1.msra.mxu0 0.0
    %3339 = vmatprep.subr.mxu0 0.0
    %3340 = vmatpush1.msra.mxu0 0.0
    %3341 = vmatprep.subr.mxu0 0.0
    %3342 = vmatpush1.msra.mxu0 0.0
    %3343 = vmatprep.subr.mxu0 0.0
    %3344 = vmatpush1.msra.mxu0 %v3252
    %3345 = vmatprep.subr.mxu0 0.0
    %3346 = vmatpush1.msra.mxu0 %v3251
    %3347 = vmatprep.subr.mxu0 0.0
    %3348 = vmatpush1.msra.mxu0 %v3250
    %3349 = vmatprep.subr.mxu0 0.0
    %3350 = vmatpush1.msra.mxu0 %v3249
    %3351 = vmatprep.subr.mxu0 0.0
    %3352 = vmatpush2.msra.mxu0 0.0
    %3353 = vmatprep.subr.mxu0 0.0
    %3354 = vmatpush2.msra.mxu0 0.0
    %3355 = vmatprep.subr.mxu0 0.0
    %3356 = vmatpush2.msra.mxu0 0.0
    %3357 = vmatprep.subr.mxu0 0.0
    %3358 = vmatpush2.msra.mxu0 0.0
    %3359 = vmatprep.subr.mxu0 0.0
    %3360 = vmatpush2.msra.mxu0 0.0
    %3361 = vmatprep.subr.mxu0 0.0
    %3362 = vmatpush2.msra.mxu0 0.0
    %3363 = vmatprep.subr.mxu0 0.0
    %3364 = vmatpush2.msra.mxu0 0.0
    %3365 = vmatprep.subr.mxu0 0.0
    %3366 = vmatpush2.msra.mxu0 0.0
    %3367 = vmatprep.subr.mxu0 0.0
    %3368 = vmatpush2.msra.mxu0 0.0
    %3369 = vmatprep.subr.mxu0 0.0
    %3370 = vmatpush2.msra.mxu0 0.0
    %3371 = vmatprep.subr.mxu0 0.0
    %3372 = vmatpush2.msra.mxu0 0.0
    %3373 = vmatprep.subr.mxu0 0.0
    %3374 = vmatpush2.msra.mxu0 0.0
    %3375 = vmatprep.subr.mxu0 0.0
    %3376 = vmatpush2.msra.mxu0 0.0
    %3377 = vmatprep.subr.mxu0 0.0
    %3378 = vmatpush2.msra.mxu0 0.0
    %3379 = vmatprep.subr.mxu0 0.0
    %3380 = vmatpush2.msra.mxu0 0.0
    %3381 = vmatprep.subr.mxu0 0.0
    %3382 = vmatpush2.msra.mxu0 0.0
    %3383 = vmatprep.mubr.f32.mxu0 0.0
    %3384 = vmatmul.mubr.f32.gmra.mxu0 %v3272
    %v3385 = vpop.f32.mrf.mxu0
    %v3386 = vadd.f32 %v3269, %v3385
    %v3387 = vpop.f32.mrf.mxu0
    %3388 = vmatprep.mubr.f32.mxu0 0.0
    %3389 = vmatmul.mubr.f32.gmra.mxu0 %v3275
    %v3390 = vpop.f32.mrf.mxu0
    %v3391 = vadd.f32 %v3269, %v3390
    %v3392 = vpop.f32.mrf.mxu0
    %3393 = vmatprep.mubr.f32.mxu0 0.0
    %3394 = vmatmul.mubr.f32.gmra.mxu0 %v3278
    %v3395 = vpop.f32.mrf.mxu0
    %v3396 = vadd.f32 %v3269, %v3395
    %v3397 = vpop.f32.mrf.mxu0
    %3398 = vmatprep.mubr.f32.mxu0 0.0
    %3399 = vmatmul.mubr.f32.gmra.mxu0 %v3281
    %v3400 = vpop.f32.mrf.mxu0
    %v3401 = vadd.f32 %v3269, %v3400
    %v3402 = vpop.f32.mrf.mxu0
    %3403 = vmatprep.mubr.f32.mxu0 0.0
    %3404 = vmatmul.mubr.f32.gmra.mxu0 %v3284
    %v3405 = vpop.f32.mrf.mxu0
    %v3406 = vadd.f32 %v3269, %v3405
    %v3407 = vpop.f32.mrf.mxu0
    %3408 = vmatprep.mubr.f32.mxu0 0.0
    %3409 = vmatmul.mubr.f32.gmra.mxu0 %v3287
    %v3410 = vpop.f32.mrf.mxu0
    %v3411 = vadd.f32 %v3269, %v3410
    %v3412 = vpop.f32.mrf.mxu0
    %3413 = vmatprep.mubr.f32.mxu0 0.0
    %3414 = vmatmul.mubr.f32.gmra.mxu0 %v3290
    %v3415 = vpop.f32.mrf.mxu0
    %v3416 = vadd.f32 %v3269, %v3415
    %v3417 = vpop.f32.mrf.mxu0
    %3418 = vmatprep.mubr.f32.mxu0 0.0
    %3419 = vmatmul.mubr.f32.gmra.mxu0 %v3293
    %v3420 = vpop.f32.mrf.mxu0
    %v3421 = vadd.f32 %v3269, %v3420
    %v3422 = vpop.f32.mrf.mxu0
    %3423 = vmatprep.mubr.f32.mxu0 0.0
    %3424 = vmatmul.mubr.f32.gmra.mxu0 %v3296
    %v3425 = vpop.f32.mrf.mxu0
    %v3426 = vadd.f32 %v3269, %v3425
    %v3427 = vpop.f32.mrf.mxu0
    %3428 = vmatprep.mubr.f32.mxu0 0.0
    %3429 = vmatmul.mubr.f32.gmra.mxu0 %v3299
    %v3430 = vpop.f32.mrf.mxu0
    %v3431 = vadd.f32 %v3269, %v3430
    %v3432 = vpop.f32.mrf.mxu0
    %3433 = vmatprep.mubr.f32.mxu0 0.0
    %3434 = vmatmul.mubr.f32.gmra.mxu0 %v3302
    %v3435 = vpop.f32.mrf.mxu0
    %v3436 = vadd.f32 %v3269, %v3435
    %v3437 = vpop.f32.mrf.mxu0
    %3438 = vmatprep.mubr.f32.mxu0 0.0
    %3439 = vmatmul.mubr.f32.gmra.mxu0 %v3305
    %v3440 = vpop.f32.mrf.mxu0
    %v3441 = vadd.f32 %v3269, %v3440
    %v3442 = vpop.f32.mrf.mxu0
    %3443 = vmatprep.mubr.f32.mxu0 0.0
    %3444 = vmatmul.mubr.f32.gmra.mxu0 %v3308
    %v3445 = vpop.f32.mrf.mxu0
    %v3446 = vadd.f32 %v3269, %v3445
    %v3447 = vpop.f32.mrf.mxu0
    %3448 = vmatprep.mubr.f32.mxu0 0.0
    %3449 = vmatmul.mubr.f32.gmra.mxu0 %v3311
    %v3450 = vpop.f32.mrf.mxu0
    %v3451 = vadd.f32 %v3269, %v3450
    %v3452 = vpop.f32.mrf.mxu0
    %3453 = vmatprep.mubr.f32.mxu0 0.0
    %3454 = vmatmul.mubr.f32.gmra.mxu0 %v3314
    %v3455 = vpop.f32.mrf.mxu0
    %v3456 = vadd.f32 %v3269, %v3455
    %v3457 = vpop.f32.mrf.mxu0
    %3458 = vmatprep.mubr.f32.mxu0 0.0
    %3459 = vmatmul.mubr.f32.gmra.mxu0 %v3317
    %v3460 = vpop.f32.mrf.mxu0
    %v3461 = vadd.f32 %v3269, %v3460
    %v3462 = vpop.f32.mrf.mxu0
    %3463 = vdwg.mxu0
    %v3464 = vmul.f32 %v3143, %v3143
    %v3465 = vmul.f32 %v3150, %v3150
    %v3466 = vmul.f32 %v3157, %v3157
    %v3467 = vmul.f32 %v3164, %v3164
    %v3468 = vmul.f32 %v3171, %v3171
    %v3469 = vmul.f32 %v3178, %v3178
    %v3470 = vmul.f32 %v3185, %v3185
    %v3471 = vmul.f32 %v3192, %v3192
    %v3472 = vmul.f32 %v3199, %v3199
    %v3473 = vmul.f32 %v3206, %v3206
    %v3474 = vmul.f32 %v3213, %v3213
    %v3475 = vmul.f32 %v3220, %v3220
    %v3476 = vmul.f32 %v3227, %v3227
    %v3477 = vmul.f32 %v3234, %v3234
    %v3478 = vmul.f32 %v3241, %v3241
    %v3479 = vmul.f32 %v3248, %v3248
    %v3481 = vsel %vm1097, %v3464, 0
    %v3484 = vsel %vm1097, %v3465, 0
    %v3487 = vsel %vm1097, %v3466, 0
    %v3490 = vsel %vm1097, %v3467, 0
    %v3493 = vsel %vm1097, %v3468, 0
    %v3496 = vsel %vm1097, %v3469, 0
    %v3499 = vsel %vm1097, %v3470, 0
    %v3502 = vsel %vm1097, %v3471, 0
    %v3505 = vsel %vm1097, %v3472, 0
    %v3508 = vsel %vm1097, %v3473, 0
    %v3511 = vsel %vm1097, %v3474, 0
    %v3514 = vsel %vm1097, %v3475, 0
    %v3517 = vsel %vm1097, %v3476, 0
    %v3520 = vsel %vm1097, %v3477, 0
    %v3523 = vsel %vm1097, %v3478, 0
    %v3526 = vsel %vm1097, %v3479, 0
    %3528 = vmatprep.subr.mxu0 0.0
    %3529 = vmatpush1.msra.mxu0 0.0
    %3530 = vmatprep.subr.mxu0 0.0
    %3531 = vmatpush1.msra.mxu0 0.0
    %3532 = vmatprep.subr.mxu0 0.0
    %3533 = vmatpush1.msra.mxu0 0.0
    %3534 = vmatprep.subr.mxu0 0.0
    %3535 = vmatpush1.msra.mxu0 0.0
    %3536 = vmatprep.subr.mxu0 0.0
    %3537 = vmatpush1.msra.mxu0 0.0
    %3538 = vmatprep.subr.mxu0 0.0
    %3539 = vmatpush1.msra.mxu0 0.0
    %3540 = vmatprep.subr.mxu0 0.0
    %3541 = vmatpush1.msra.mxu0 0.0
    %3542 = vmatprep.subr.mxu0 0.0
    %3543 = vmatpush1.msra.mxu0 0.0
    %3544 = vmatprep.subr.mxu0 0.0
    %3545 = vmatpush1.msra.mxu0 0.0
    %3546 = vmatprep.subr.mxu0 0.0
    %3547 = vmatpush1.msra.mxu0 0.0
    %3548 = vmatprep.subr.mxu0 0.0
    %3549 = vmatpush1.msra.mxu0 0.0
    %3550 = vmatprep.subr.mxu0 0.0
    %3551 = vmatpush1.msra.mxu0 0.0
    %3552 = vmatprep.subr.mxu0 0.0
    %3553 = vmatpush1.msra.mxu0 %v3257
    %3554 = vmatprep.subr.mxu0 0.0
    %3555 = vmatpush1.msra.mxu0 %v3256
    %3556 = vmatprep.subr.mxu0 0.0
    %3557 = vmatpush1.msra.mxu0 %v3255
    %3558 = vmatprep.subr.mxu0 0.0
    %3559 = vmatpush1.msra.mxu0 %v3254
    %3560 = vmatprep.subr.mxu0 0.0
    %3561 = vmatpush2.msra.mxu0 0.0
    %3562 = vmatprep.subr.mxu0 0.0
    %3563 = vmatpush2.msra.mxu0 0.0
    %3564 = vmatprep.subr.mxu0 0.0
    %3565 = vmatpush2.msra.mxu0 0.0
    %3566 = vmatprep.subr.mxu0 0.0
    %3567 = vmatpush2.msra.mxu0 0.0
    %3568 = vmatprep.subr.mxu0 0.0
    %3569 = vmatpush2.msra.mxu0 0.0
    %3570 = vmatprep.subr.mxu0 0.0
    %3571 = vmatpush2.msra.mxu0 0.0
    %3572 = vmatprep.subr.mxu0 0.0
    %3573 = vmatpush2.msra.mxu0 0.0
    %3574 = vmatprep.subr.mxu0 0.0
    %3575 = vmatpush2.msra.mxu0 0.0
    %3576 = vmatprep.subr.mxu0 0.0
    %3577 = vmatpush2.msra.mxu0 0.0
    %3578 = vmatprep.subr.mxu0 0.0
    %3579 = vmatpush2.msra.mxu0 0.0
    %3580 = vmatprep.subr.mxu0 0.0
    %3581 = vmatpush2.msra.mxu0 0.0
    %3582 = vmatprep.subr.mxu0 0.0
    %3583 = vmatpush2.msra.mxu0 0.0
    %3584 = vmatprep.subr.mxu0 0.0
    %3585 = vmatpush2.msra.mxu0 0.0
    %3586 = vmatprep.subr.mxu0 0.0
    %3587 = vmatpush2.msra.mxu0 0.0
    %3588 = vmatprep.subr.mxu0 0.0
    %3589 = vmatpush2.msra.mxu0 0.0
    %3590 = vmatprep.subr.mxu0 0.0
    %3591 = vmatpush2.msra.mxu0 0.0
    %3592 = vmatprep.mubr.f32.mxu0 0.0
    %3593 = vmatmul.mubr.f32.gmra.mxu0 %v3481
    %v3594 = vpop.f32.mrf.mxu0
    %v3595 = vadd.f32 0.0, %v3594
    %v3596 = vpop.f32.mrf.mxu0
    %3597 = vmatprep.mubr.f32.mxu0 0.0
    %3598 = vmatmul.mubr.f32.gmra.mxu0 %v3484
    %v3599 = vpop.f32.mrf.mxu0
    %v3600 = vadd.f32 0.0, %v3599
    %v3601 = vpop.f32.mrf.mxu0
    %3602 = vmatprep.mubr.f32.mxu0 0.0
    %3603 = vmatmul.mubr.f32.gmra.mxu0 %v3487
    %v3604 = vpop.f32.mrf.mxu0
    %v3605 = vadd.f32 0.0, %v3604
    %v3606 = vpop.f32.mrf.mxu0
    %3607 = vmatprep.mubr.f32.mxu0 0.0
    %3608 = vmatmul.mubr.f32.gmra.mxu0 %v3490
    %v3609 = vpop.f32.mrf.mxu0
    %v3610 = vadd.f32 0.0, %v3609
    %v3611 = vpop.f32.mrf.mxu0
    %3612 = vmatprep.mubr.f32.mxu0 0.0
    %3613 = vmatmul.mubr.f32.gmra.mxu0 %v3493
    %v3614 = vpop.f32.mrf.mxu0
    %v3615 = vadd.f32 0.0, %v3614
    %v3616 = vpop.f32.mrf.mxu0
    %3617 = vmatprep.mubr.f32.mxu0 0.0
    %3618 = vmatmul.mubr.f32.gmra.mxu0 %v3496
    %v3619 = vpop.f32.mrf.mxu0
    %v3620 = vadd.f32 0.0, %v3619
    %v3621 = vpop.f32.mrf.mxu0
    %3622 = vmatprep.mubr.f32.mxu0 0.0
    %3623 = vmatmul.mubr.f32.gmra.mxu0 %v3499
    %v3624 = vpop.f32.mrf.mxu0
    %v3625 = vadd.f32 0.0, %v3624
    %v3626 = vpop.f32.mrf.mxu0
    %3627 = vmatprep.mubr.f32.mxu0 0.0
    %3628 = vmatmul.mubr.f32.gmra.mxu0 %v3502
    %v3629 = vpop.f32.mrf.mxu0
    %v3630 = vadd.f32 0.0, %v3629
    %v3631 = vpop.f32.mrf.mxu0
    %3632 = vmatprep.mubr.f32.mxu0 0.0
    %3633 = vmatmul.mubr.f32.gmra.mxu0 %v3505
    %v3634 = vpop.f32.mrf.mxu0
    %v3635 = vadd.f32 0.0, %v3634
    %v3636 = vpop.f32.mrf.mxu0
    %3637 = vmatprep.mubr.f32.mxu0 0.0
    %3638 = vmatmul.mubr.f32.gmra.mxu0 %v3508
    %v3639 = vpop.f32.mrf.mxu0
    %v3640 = vadd.f32 0.0, %v3639
    %v3641 = vpop.f32.mrf.mxu0
    %3642 = vmatprep.mubr.f32.mxu0 0.0
    %3643 = vmatmul.mubr.f32.gmra.mxu0 %v3511
    %v3644 = vpop.f32.mrf.mxu0
    %v3645 = vadd.f32 0.0, %v3644
    %v3646 = vpop.f32.mrf.mxu0
    %3647 = vmatprep.mubr.f32.mxu0 0.0
    %3648 = vmatmul.mubr.f32.gmra.mxu0 %v3514
    %v3649 = vpop.f32.mrf.mxu0
    %v3650 = vadd.f32 0.0, %v3649
    %v3651 = vpop.f32.mrf.mxu0
    %3652 = vmatprep.mubr.f32.mxu0 0.0
    %3653 = vmatmul.mubr.f32.gmra.mxu0 %v3517
    %v3654 = vpop.f32.mrf.mxu0
    %v3655 = vadd.f32 0.0, %v3654
    %v3656 = vpop.f32.mrf.mxu0
    %3657 = vmatprep.mubr.f32.mxu0 0.0
    %3658 = vmatmul.mubr.f32.gmra.mxu0 %v3520
    %v3659 = vpop.f32.mrf.mxu0
    %v3660 = vadd.f32 0.0, %v3659
    %v3661 = vpop.f32.mrf.mxu0
    %3662 = vmatprep.mubr.f32.mxu0 0.0
    %3663 = vmatmul.mubr.f32.gmra.mxu0 %v3523
    %v3664 = vpop.f32.mrf.mxu0
    %v3665 = vadd.f32 0.0, %v3664
    %v3666 = vpop.f32.mrf.mxu0
    %3667 = vmatprep.mubr.f32.mxu0 0.0
    %3668 = vmatmul.mubr.f32.gmra.mxu0 %v3526
    %v3669 = vpop.f32.mrf.mxu0
    %v3670 = vadd.f32 0.0, %v3669
    %v3671 = vpop.f32.mrf.mxu0
    %3672 = vdwg.mxu0
    %v3673 = vmax.f32 %v3595, 1e-07
    %v3674 = vmax.f32 %v3600, 1e-07
    %v3675 = vmax.f32 %v3605, 1e-07
    %v3676 = vmax.f32 %v3610, 1e-07
    %v3677 = vmax.f32 %v3615, 1e-07
    %v3678 = vmax.f32 %v3620, 1e-07
    %v3679 = vmax.f32 %v3625, 1e-07
    %v3680 = vmax.f32 %v3630, 1e-07
    %v3681 = vmax.f32 %v3635, 1e-07
    %v3682 = vmax.f32 %v3640, 1e-07
    %v3683 = vmax.f32 %v3645, 1e-07
    %v3684 = vmax.f32 %v3650, 1e-07
    %v3685 = vmax.f32 %v3655, 1e-07
    %v3686 = vmax.f32 %v3660, 1e-07
    %v3687 = vmax.f32 %v3665, 1e-07
    %v3688 = vmax.f32 %v3670, 1e-07
    %v3689 = vrsqrt.pop %v3673
    %v3690 = vmul.f32 %v3673, %v3689
    %vm3691 = vcmp.eq.f32.partialorder %v3673, inf
    %v3692 = vsel %vm3691, %v3673, %v3690
    %vm3693 = vcmp.eq.f32.partialorder %v3673, 0.0
    %v3694 = vand.u32 %v3673, 2147483648
    %v3695 = vsel %vm3693, %v3694, %v3692
    %v3696 = vrsqrt.pop %v3674
    %v3697 = vmul.f32 %v3674, %v3696
    %vm3698 = vcmp.eq.f32.partialorder %v3674, inf
    %v3699 = vsel %vm3698, %v3674, %v3697
    %vm3700 = vcmp.eq.f32.partialorder %v3674, 0.0
    %v3701 = vand.u32 %v3674, 2147483648
    %v3702 = vsel %vm3700, %v3701, %v3699
    %v3703 = vrsqrt.pop %v3675
    %v3704 = vmul.f32 %v3675, %v3703
    %vm3705 = vcmp.eq.f32.partialorder %v3675, inf
    %v3706 = vsel %vm3705, %v3675, %v3704
    %vm3707 = vcmp.eq.f32.partialorder %v3675, 0.0
    %v3708 = vand.u32 %v3675, 2147483648
    %v3709 = vsel %vm3707, %v3708, %v3706
    %v3710 = vrsqrt.pop %v3676
    %v3711 = vmul.f32 %v3676, %v3710
    %vm3712 = vcmp.eq.f32.partialorder %v3676, inf
    %v3713 = vsel %vm3712, %v3676, %v3711
    %vm3714 = vcmp.eq.f32.partialorder %v3676, 0.0
    %v3715 = vand.u32 %v3676, 2147483648
    %v3716 = vsel %vm3714, %v3715, %v3713
    %v3717 = vrsqrt.pop %v3677
    %v3718 = vmul.f32 %v3677, %v3717
    %vm3719 = vcmp.eq.f32.partialorder %v3677, inf
    %v3720 = vsel %vm3719, %v3677, %v3718
    %vm3721 = vcmp.eq.f32.partialorder %v3677, 0.0
    %v3722 = vand.u32 %v3677, 2147483648
    %v3723 = vsel %vm3721, %v3722, %v3720
    %v3724 = vrsqrt.pop %v3678
    %v3725 = vmul.f32 %v3678, %v3724
    %vm3726 = vcmp.eq.f32.partialorder %v3678, inf
    %v3727 = vsel %vm3726, %v3678, %v3725
    %vm3728 = vcmp.eq.f32.partialorder %v3678, 0.0
    %v3729 = vand.u32 %v3678, 2147483648
    %v3730 = vsel %vm3728, %v3729, %v3727
    %v3731 = vrsqrt.pop %v3679
    %v3732 = vmul.f32 %v3679, %v3731
    %vm3733 = vcmp.eq.f32.partialorder %v3679, inf
    %v3734 = vsel %vm3733, %v3679, %v3732
    %vm3735 = vcmp.eq.f32.partialorder %v3679, 0.0
    %v3736 = vand.u32 %v3679, 2147483648
    %v3737 = vsel %vm3735, %v3736, %v3734
    %v3738 = vrsqrt.pop %v3680
    %v3739 = vmul.f32 %v3680, %v3738
    %vm3740 = vcmp.eq.f32.partialorder %v3680, inf
    %v3741 = vsel %vm3740, %v3680, %v3739
    %vm3742 = vcmp.eq.f32.partialorder %v3680, 0.0
    %v3743 = vand.u32 %v3680, 2147483648
    %v3744 = vsel %vm3742, %v3743, %v3741
    %v3745 = vrsqrt.pop %v3681
    %v3746 = vmul.f32 %v3681, %v3745
    %vm3747 = vcmp.eq.f32.partialorder %v3681, inf
    %v3748 = vsel %vm3747, %v3681, %v3746
    %vm3749 = vcmp.eq.f32.partialorder %v3681, 0.0
    %v3750 = vand.u32 %v3681, 2147483648
    %v3751 = vsel %vm3749, %v3750, %v3748
    %v3752 = vrsqrt.pop %v3682
    %v3753 = vmul.f32 %v3682, %v3752
    %vm3754 = vcmp.eq.f32.partialorder %v3682, inf
    %v3755 = vsel %vm3754, %v3682, %v3753
    %vm3756 = vcmp.eq.f32.partialorder %v3682, 0.0
    %v3757 = vand.u32 %v3682, 2147483648
    %v3758 = vsel %vm3756, %v3757, %v3755
    %v3759 = vrsqrt.pop %v3683
    %v3760 = vmul.f32 %v3683, %v3759
    %vm3761 = vcmp.eq.f32.partialorder %v3683, inf
    %v3762 = vsel %vm3761, %v3683, %v3760
    %vm3763 = vcmp.eq.f32.partialorder %v3683, 0.0
    %v3764 = vand.u32 %v3683, 2147483648
    %v3765 = vsel %vm3763, %v3764, %v3762
    %v3766 = vrsqrt.pop %v3684
    %v3767 = vmul.f32 %v3684, %v3766
    %vm3768 = vcmp.eq.f32.partialorder %v3684, inf
    %v3769 = vsel %vm3768, %v3684, %v3767
    %vm3770 = vcmp.eq.f32.partialorder %v3684, 0.0
    %v3771 = vand.u32 %v3684, 2147483648
    %v3772 = vsel %vm3770, %v3771, %v3769
    %v3773 = vrsqrt.pop %v3685
    %v3774 = vmul.f32 %v3685, %v3773
    %vm3775 = vcmp.eq.f32.partialorder %v3685, inf
    %v3776 = vsel %vm3775, %v3685, %v3774
    %vm3777 = vcmp.eq.f32.partialorder %v3685, 0.0
    %v3778 = vand.u32 %v3685, 2147483648
    %v3779 = vsel %vm3777, %v3778, %v3776
    %v3780 = vrsqrt.pop %v3686
    %v3781 = vmul.f32 %v3686, %v3780
    %vm3782 = vcmp.eq.f32.partialorder %v3686, inf
    %v3783 = vsel %vm3782, %v3686, %v3781
    %vm3784 = vcmp.eq.f32.partialorder %v3686, 0.0
    %v3785 = vand.u32 %v3686, 2147483648
    %v3786 = vsel %vm3784, %v3785, %v3783
    %v3787 = vrsqrt.pop %v3687
    %v3788 = vmul.f32 %v3687, %v3787
    %vm3789 = vcmp.eq.f32.partialorder %v3687, inf
    %v3790 = vsel %vm3789, %v3687, %v3788
    %vm3791 = vcmp.eq.f32.partialorder %v3687, 0.0
    %v3792 = vand.u32 %v3687, 2147483648
    %v3793 = vsel %vm3791, %v3792, %v3790
    %v3794 = vrsqrt.pop %v3688
    %v3795 = vmul.f32 %v3688, %v3794
    %vm3796 = vcmp.eq.f32.partialorder %v3688, inf
    %v3797 = vsel %vm3796, %v3688, %v3795
    %vm3798 = vcmp.eq.f32.partialorder %v3688, 0.0
    %v3799 = vand.u32 %v3688, 2147483648
    %v3800 = vsel %vm3798, %v3799, %v3797
    %v3801 = vadd.f32 %v3695, 1e-06
    %v3802 = vadd.f32 %v3702, 1e-06
    %v3803 = vadd.f32 %v3709, 1e-06
    %v3804 = vadd.f32 %v3716, 1e-06
    %v3805 = vadd.f32 %v3723, 1e-06
    %v3806 = vadd.f32 %v3730, 1e-06
    %v3807 = vadd.f32 %v3737, 1e-06
    %v3808 = vadd.f32 %v3744, 1e-06
    %v3809 = vadd.f32 %v3751, 1e-06
    %v3810 = vadd.f32 %v3758, 1e-06
    %v3811 = vadd.f32 %v3765, 1e-06
    %v3812 = vadd.f32 %v3772, 1e-06
    %v3813 = vadd.f32 %v3779, 1e-06
    %v3814 = vadd.f32 %v3786, 1e-06
    %v3815 = vadd.f32 %v3793, 1e-06
    %v3816 = vadd.f32 %v3800, 1e-06
    %v3817 = vrcp.pop %v3801
    %v3818 = vmul.f32 %v3386, %v3817
    %v3819 = vrcp.pop %v3802
    %v3820 = vmul.f32 %v3391, %v3819
    %v3821 = vrcp.pop %v3803
    %v3822 = vmul.f32 %v3396, %v3821
    %v3823 = vrcp.pop %v3804
    %v3824 = vmul.f32 %v3401, %v3823
    %v3825 = vrcp.pop %v3805
    %v3826 = vmul.f32 %v3406, %v3825
    %v3827 = vrcp.pop %v3806
    %v3828 = vmul.f32 %v3411, %v3827
    %v3829 = vrcp.pop %v3807
    %v3830 = vmul.f32 %v3416, %v3829
    %v3831 = vrcp.pop %v3808
    %v3832 = vmul.f32 %v3421, %v3831
    %v3833 = vrcp.pop %v3809
    %v3834 = vmul.f32 %v3426, %v3833
    %v3835 = vrcp.pop %v3810
    %v3836 = vmul.f32 %v3431, %v3835
    %v3837 = vrcp.pop %v3811
    %v3838 = vmul.f32 %v3436, %v3837
    %v3839 = vrcp.pop %v3812
    %v3840 = vmul.f32 %v3441, %v3839
    %v3841 = vrcp.pop %v3813
    %v3842 = vmul.f32 %v3446, %v3841
    %v3843 = vrcp.pop %v3814
    %v3844 = vmul.f32 %v3451, %v3843
    %v3845 = vrcp.pop %v3815
    %v3846 = vmul.f32 %v3456, %v3845
    %v3847 = vrcp.pop %v3816
    %v3848 = vmul.f32 %v3461, %v3847
    %v3849 = vmul.f32 %v3818, 0.70710677
    %v3850 = vmul.f32 %v3820, 0.70710677
    %v3851 = vmul.f32 %v3822, 0.70710677
    %v3852 = vmul.f32 %v3824, 0.70710677
    %v3853 = vmul.f32 %v3826, 0.70710677
    %v3854 = vmul.f32 %v3828, 0.70710677
    %v3855 = vmul.f32 %v3830, 0.70710677
    %v3856 = vmul.f32 %v3832, 0.70710677
    %v3857 = vmul.f32 %v3834, 0.70710677
    %v3858 = vmul.f32 %v3836, 0.70710677
    %v3859 = vmul.f32 %v3838, 0.70710677
    %v3860 = vmul.f32 %v3840, 0.70710677
    %v3861 = vmul.f32 %v3842, 0.70710677
    %v3862 = vmul.f32 %v3844, 0.70710677
    %v3863 = vmul.f32 %v3846, 0.70710677
    %v3864 = vmul.f32 %v3848, 0.70710677
    %v3865 = verf.f32.pop %v3849
    %v3866 = verf.f32.pop %v3850
    %v3867 = verf.f32.pop %v3851
    %v3868 = verf.f32.pop %v3852
    %v3869 = verf.f32.pop %v3853
    %v3870 = verf.f32.pop %v3854
    %v3871 = verf.f32.pop %v3855
    %v3872 = verf.f32.pop %v3856
    %v3873 = verf.f32.pop %v3857
    %v3874 = verf.f32.pop %v3858
    %v3875 = verf.f32.pop %v3859
    %v3876 = verf.f32.pop %v3860
    %v3877 = verf.f32.pop %v3861
    %v3878 = verf.f32.pop %v3862
    %v3879 = verf.f32.pop %v3863
    %v3880 = verf.f32.pop %v3864
    %v3881 = vadd.f32 %v3865, 1.0
    %v3882 = vadd.f32 %v3866, 1.0
    %v3883 = vadd.f32 %v3867, 1.0
    %v3884 = vadd.f32 %v3868, 1.0
    %v3885 = vadd.f32 %v3869, 1.0
    %v3886 = vadd.f32 %v3870, 1.0
    %v3887 = vadd.f32 %v3871, 1.0
    %v3888 = vadd.f32 %v3872, 1.0
    %v3889 = vadd.f32 %v3873, 1.0
    %v3890 = vadd.f32 %v3874, 1.0
    %v3891 = vadd.f32 %v3875, 1.0
    %v3892 = vadd.f32 %v3876, 1.0
    %v3893 = vadd.f32 %v3877, 1.0
    %v3894 = vadd.f32 %v3878, 1.0
    %v3895 = vadd.f32 %v3879, 1.0
    %v3896 = vadd.f32 %v3880, 1.0
    %v3897 = vmul.f32 %v3881, 0.5
    %v3898 = vmul.f32 %v3882, 0.5
    %v3899 = vmul.f32 %v3883, 0.5
    %v3900 = vmul.f32 %v3884, 0.5
    %v3901 = vmul.f32 %v3885, 0.5
    %v3902 = vmul.f32 %v3886, 0.5
    %v3903 = vmul.f32 %v3887, 0.5
    %v3904 = vmul.f32 %v3888, 0.5
    %v3905 = vmul.f32 %v3889, 0.5
    %v3906 = vmul.f32 %v3890, 0.5
    %v3907 = vmul.f32 %v3891, 0.5
    %v3908 = vmul.f32 %v3892, 0.5
    %v3909 = vmul.f32 %v3893, 0.5
    %v3910 = vmul.f32 %v3894, 0.5
    %v3911 = vmul.f32 %v3895, 0.5
    %v3912 = vmul.f32 %v3896, 0.5
    %v3913 = vmul.f32 %v3818, -0.5
    %v3914 = vmul.f32 %v3820, -0.5
    %v3915 = vmul.f32 %v3822, -0.5
    %v3916 = vmul.f32 %v3824, -0.5
    %v3917 = vmul.f32 %v3826, -0.5
    %v3918 = vmul.f32 %v3828, -0.5
    %v3919 = vmul.f32 %v3830, -0.5
    %v3920 = vmul.f32 %v3832, -0.5
    %v3921 = vmul.f32 %v3834, -0.5
    %v3922 = vmul.f32 %v3836, -0.5
    %v3923 = vmul.f32 %v3838, -0.5
    %v3924 = vmul.f32 %v3840, -0.5
    %v3925 = vmul.f32 %v3842, -0.5
    %v3926 = vmul.f32 %v3844, -0.5
    %v3927 = vmul.f32 %v3846, -0.5
    %v3928 = vmul.f32 %v3848, -0.5
    %v3929 = vmul.f32 %v3913, %v3818
    %v3930 = vmul.f32 %v3914, %v3820
    %v3931 = vmul.f32 %v3915, %v3822
    %v3932 = vmul.f32 %v3916, %v3824
    %v3933 = vmul.f32 %v3917, %v3826
    %v3934 = vmul.f32 %v3918, %v3828
    %v3935 = vmul.f32 %v3919, %v3830
    %v3936 = vmul.f32 %v3920, %v3832
    %v3937 = vmul.f32 %v3921, %v3834
    %v3938 = vmul.f32 %v3922, %v3836
    %v3939 = vmul.f32 %v3923, %v3838
    %v3940 = vmul.f32 %v3924, %v3840
    %v3941 = vmul.f32 %v3925, %v3842
    %v3942 = vmul.f32 %v3926, %v3844
    %v3943 = vmul.f32 %v3927, %v3846
    %v3944 = vmul.f32 %v3928, %v3848
    %v3945 = vmul.f32 %v3929, 1.442695
    %v3946 = vpow.pop %v3945
    %v3947 = vmul.f32 %v3930, 1.442695
    %v3948 = vpow.pop %v3947
    %v3949 = vmul.f32 %v3931, 1.442695
    %v3950 = vpow.pop %v3949
    %v3951 = vmul.f32 %v3932, 1.442695
    %v3952 = vpow.pop %v3951
    %v3953 = vmul.f32 %v3933, 1.442695
    %v3954 = vpow.pop %v3953
    %v3955 = vmul.f32 %v3934, 1.442695
    %v3956 = vpow.pop %v3955
    %v3957 = vmul.f32 %v3935, 1.442695
    %v3958 = vpow.pop %v3957
    %v3959 = vmul.f32 %v3936, 1.442695
    %v3960 = vpow.pop %v3959
    %v3961 = vmul.f32 %v3937, 1.442695
    %v3962 = vpow.pop %v3961
    %v3963 = vmul.f32 %v3938, 1.442695
    %v3964 = vpow.pop %v3963
    %v3965 = vmul.f32 %v3939, 1.442695
    %v3966 = vpow.pop %v3965
    %v3967 = vmul.f32 %v3940, 1.442695
    %v3968 = vpow.pop %v3967
    %v3969 = vmul.f32 %v3941, 1.442695
    %v3970 = vpow.pop %v3969
    %v3971 = vmul.f32 %v3942, 1.442695
    %v3972 = vpow.pop %v3971
    %v3973 = vmul.f32 %v3943, 1.442695
    %v3974 = vpow.pop %v3973
    %v3975 = vmul.f32 %v3944, 1.442695
    %v3976 = vpow.pop %v3975
    %v3977 = vmul.f32 %v3946, 0.3989423
    %v3978 = vmul.f32 %v3948, 0.3989423
    %v3979 = vmul.f32 %v3950, 0.3989423
    %v3980 = vmul.f32 %v3952, 0.3989423
    %v3981 = vmul.f32 %v3954, 0.3989423
    %v3982 = vmul.f32 %v3956, 0.3989423
    %v3983 = vmul.f32 %v3958, 0.3989423
    %v3984 = vmul.f32 %v3960, 0.3989423
    %v3985 = vmul.f32 %v3962, 0.3989423
    %v3986 = vmul.f32 %v3964, 0.3989423
    %v3987 = vmul.f32 %v3966, 0.3989423
    %v3988 = vmul.f32 %v3968, 0.3989423
    %v3989 = vmul.f32 %v3970, 0.3989423
    %v3990 = vmul.f32 %v3972, 0.3989423
    %v3991 = vmul.f32 %v3974, 0.3989423
    %v3992 = vmul.f32 %v3976, 0.3989423
    %v3993 = vmul.f32 %v3386, %v3897
    %v3994 = vmul.f32 %v3391, %v3898
    %v3995 = vmul.f32 %v3396, %v3899
    %v3996 = vmul.f32 %v3401, %v3900
    %v3997 = vmul.f32 %v3406, %v3901
    %v3998 = vmul.f32 %v3411, %v3902
    %v3999 = vmul.f32 %v3416, %v3903
    %v4000 = vmul.f32 %v3421, %v3904
    %v4001 = vmul.f32 %v3426, %v3905
    %v4002 = vmul.f32 %v3431, %v3906
    %v4003 = vmul.f32 %v3436, %v3907
    %v4004 = vmul.f32 %v3441, %v3908
    %v4005 = vmul.f32 %v3446, %v3909
    %v4006 = vmul.f32 %v3451, %v3910
    %v4007 = vmul.f32 %v3456, %v3911
    %v4008 = vmul.f32 %v3461, %v3912
    %v4009 = vmul.f32 %v3801, %v3977
    %v4010 = vmul.f32 %v3802, %v3978
    %v4011 = vmul.f32 %v3803, %v3979
    %v4012 = vmul.f32 %v3804, %v3980
    %v4013 = vmul.f32 %v3805, %v3981
    %v4014 = vmul.f32 %v3806, %v3982
    %v4015 = vmul.f32 %v3807, %v3983
    %v4016 = vmul.f32 %v3808, %v3984
    %v4017 = vmul.f32 %v3809, %v3985
    %v4018 = vmul.f32 %v3810, %v3986
    %v4019 = vmul.f32 %v3811, %v3987
    %v4020 = vmul.f32 %v3812, %v3988
    %v4021 = vmul.f32 %v3813, %v3989
    %v4022 = vmul.f32 %v3814, %v3990
    %v4023 = vmul.f32 %v3815, %v3991
    %v4024 = vmul.f32 %v3816, %v3992
    %v4025 = vadd.f32 %v3993, %v4009
    %v4026 = vadd.f32 %v3994, %v4010
    %v4027 = vadd.f32 %v3995, %v4011
    %v4028 = vadd.f32 %v3996, %v4012
    %v4029 = vadd.f32 %v3997, %v4013
    %v4030 = vadd.f32 %v3998, %v4014
    %v4031 = vadd.f32 %v3999, %v4015
    %v4032 = vadd.f32 %v4000, %v4016
    %v4033 = vadd.f32 %v4001, %v4017
    %v4034 = vadd.f32 %v4002, %v4018
    %v4035 = vadd.f32 %v4003, %v4019
    %v4036 = vadd.f32 %v4004, %v4020
    %v4037 = vadd.f32 %v4005, %v4021
    %v4038 = vadd.f32 %v4006, %v4022
    %v4039 = vadd.f32 %v4007, %v4023
    %v4040 = vadd.f32 %v4008, %v4024
    %v4042 = vlaneseq
    %v4043 = vshrl.u32 %v4042, 7
    %v4044 = vsub.s32 0, %v4043
    %v4045 = vrot.slane %v3260, %v4044
    %v4048 = vsel %vm1097, %v4025, 0
    %v4051 = vsel %vm1097, %v4026, 0
    %v4054 = vsel %vm1097, %v4027, 0
    %v4057 = vsel %vm1097, %v4028, 0
    %v4060 = vsel %vm1097, %v4029, 0
    %v4063 = vsel %vm1097, %v4030, 0
    %v4066 = vsel %vm1097, %v4031, 0
    %v4069 = vsel %vm1097, %v4032, 0
    %v4072 = vsel %vm1097, %v4033, 0
    %v4075 = vsel %vm1097, %v4034, 0
    %v4078 = vsel %vm1097, %v4035, 0
    %v4081 = vsel %vm1097, %v4036, 0
    %v4084 = vsel %vm1097, %v4037, 0
    %v4087 = vsel %vm1097, %v4038, 0
    %v4090 = vsel %vm1097, %v4039, 0
    %v4093 = vsel %vm1097, %v4040, 0
    %4095 = vmatprep.subr.mxu0 0.0
    %4096 = vmatpush1.msra.mxu0 0.0
    %4097 = vmatprep.subr.mxu0 0.0
    %4098 = vmatpush1.msra.mxu0 0.0
    %4099 = vmatprep.subr.mxu0 0.0
    %4100 = vmatpush1.msra.mxu0 0.0
    %4101 = vmatprep.subr.mxu0 0.0
    %4102 = vmatpush1.msra.mxu0 0.0
    %4103 = vmatprep.subr.mxu0 0.0
    %4104 = vmatpush1.msra.mxu0 0.0
    %4105 = vmatprep.subr.mxu0 0.0
    %4106 = vmatpush1.msra.mxu0 0.0
    %4107 = vmatprep.subr.mxu0 0.0
    %4108 = vmatpush1.msra.mxu0 0.0
    %4109 = vmatprep.subr.mxu0 0.0
    %4110 = vmatpush1.msra.mxu0 0.0
    %4111 = vmatprep.subr.mxu0 0.0
    %4112 = vmatpush1.msra.mxu0 0.0
    %4113 = vmatprep.subr.mxu0 0.0
    %4114 = vmatpush1.msra.mxu0 0.0
    %4115 = vmatprep.subr.mxu0 0.0
    %4116 = vmatpush1.msra.mxu0 0.0
    %4117 = vmatprep.subr.mxu0 0.0
    %4118 = vmatpush1.msra.mxu0 0.0
    %4119 = vmatprep.subr.mxu0 0.0
    %4120 = vmatpush1.msra.mxu0 %v3264
    %4121 = vmatprep.subr.mxu0 0.0
    %4122 = vmatpush1.msra.mxu0 %v3263
    %4123 = vmatprep.subr.mxu0 0.0
    %4124 = vmatpush1.msra.mxu0 %v3262
    %4125 = vmatprep.subr.mxu0 0.0
    %4126 = vmatpush1.msra.mxu0 %v3261
    %4127 = vmatprep.subr.mxu0 0.0
    %4128 = vmatpush2.msra.mxu0 0.0
    %4129 = vmatprep.subr.mxu0 0.0
    %4130 = vmatpush2.msra.mxu0 0.0
    %4131 = vmatprep.subr.mxu0 0.0
    %4132 = vmatpush2.msra.mxu0 0.0
    %4133 = vmatprep.subr.mxu0 0.0
    %4134 = vmatpush2.msra.mxu0 0.0
    %4135 = vmatprep.subr.mxu0 0.0
    %4136 = vmatpush2.msra.mxu0 0.0
    %4137 = vmatprep.subr.mxu0 0.0
    %4138 = vmatpush2.msra.mxu0 0.0
    %4139 = vmatprep.subr.mxu0 0.0
    %4140 = vmatpush2.msra.mxu0 0.0
    %4141 = vmatprep.subr.mxu0 0.0
    %4142 = vmatpush2.msra.mxu0 0.0
    %4143 = vmatprep.subr.mxu0 0.0
    %4144 = vmatpush2.msra.mxu0 0.0
    %4145 = vmatprep.subr.mxu0 0.0
    %4146 = vmatpush2.msra.mxu0 0.0
    %4147 = vmatprep.subr.mxu0 0.0
    %4148 = vmatpush2.msra.mxu0 0.0
    %4149 = vmatprep.subr.mxu0 0.0
    %4150 = vmatpush2.msra.mxu0 0.0
    %4151 = vmatprep.subr.mxu0 0.0
    %4152 = vmatpush2.msra.mxu0 0.0
    %4153 = vmatprep.subr.mxu0 0.0
    %4154 = vmatpush2.msra.mxu0 0.0
    %4155 = vmatprep.subr.mxu0 0.0
    %4156 = vmatpush2.msra.mxu0 0.0
    %4157 = vmatprep.subr.mxu0 0.0
    %4158 = vmatpush2.msra.mxu0 0.0
    %4159 = vmatprep.mubr.f32.mxu0 0.0
    %4160 = vmatmul.mubr.f32.gmra.mxu0 %v4048
    %v4161 = vpop.f32.mrf.mxu0
    %v4162 = vadd.f32 %v4045, %v4161
    %v4163 = vpop.f32.mrf.mxu0
    %4164 = vmatprep.mubr.f32.mxu0 0.0
    %4165 = vmatmul.mubr.f32.gmra.mxu0 %v4051
    %v4166 = vpop.f32.mrf.mxu0
    %v4167 = vadd.f32 %v4045, %v4166
    %v4168 = vpop.f32.mrf.mxu0
    %4169 = vmatprep.mubr.f32.mxu0 0.0
    %4170 = vmatmul.mubr.f32.gmra.mxu0 %v4054
    %v4171 = vpop.f32.mrf.mxu0
    %v4172 = vadd.f32 %v4045, %v4171
    %v4173 = vpop.f32.mrf.mxu0
    %4174 = vmatprep.mubr.f32.mxu0 0.0
    %4175 = vmatmul.mubr.f32.gmra.mxu0 %v4057
    %v4176 = vpop.f32.mrf.mxu0
    %v4177 = vadd.f32 %v4045, %v4176
    %v4178 = vpop.f32.mrf.mxu0
    %4179 = vmatprep.mubr.f32.mxu0 0.0
    %4180 = vmatmul.mubr.f32.gmra.mxu0 %v4060
    %v4181 = vpop.f32.mrf.mxu0
    %v4182 = vadd.f32 %v4045, %v4181
    %v4183 = vpop.f32.mrf.mxu0
    %4184 = vmatprep.mubr.f32.mxu0 0.0
    %4185 = vmatmul.mubr.f32.gmra.mxu0 %v4063
    %v4186 = vpop.f32.mrf.mxu0
    %v4187 = vadd.f32 %v4045, %v4186
    %v4188 = vpop.f32.mrf.mxu0
    %4189 = vmatprep.mubr.f32.mxu0 0.0
    %4190 = vmatmul.mubr.f32.gmra.mxu0 %v4066
    %v4191 = vpop.f32.mrf.mxu0
    %v4192 = vadd.f32 %v4045, %v4191
    %v4193 = vpop.f32.mrf.mxu0
    %4194 = vmatprep.mubr.f32.mxu0 0.0
    %4195 = vmatmul.mubr.f32.gmra.mxu0 %v4069
    %v4196 = vpop.f32.mrf.mxu0
    %v4197 = vadd.f32 %v4045, %v4196
    %v4198 = vpop.f32.mrf.mxu0
    %4199 = vmatprep.mubr.f32.mxu0 0.0
    %4200 = vmatmul.mubr.f32.gmra.mxu0 %v4072
    %v4201 = vpop.f32.mrf.mxu0
    %v4202 = vadd.f32 %v4045, %v4201
    %v4203 = vpop.f32.mrf.mxu0
    %4204 = vmatprep.mubr.f32.mxu0 0.0
    %4205 = vmatmul.mubr.f32.gmra.mxu0 %v4075
    %v4206 = vpop.f32.mrf.mxu0
    %v4207 = vadd.f32 %v4045, %v4206
    %v4208 = vpop.f32.mrf.mxu0
    %4209 = vmatprep.mubr.f32.mxu0 0.0
    %4210 = vmatmul.mubr.f32.gmra.mxu0 %v4078
    %v4211 = vpop.f32.mrf.mxu0
    %v4212 = vadd.f32 %v4045, %v4211
    %v4213 = vpop.f32.mrf.mxu0
    %4214 = vmatprep.mubr.f32.mxu0 0.0
    %4215 = vmatmul.mubr.f32.gmra.mxu0 %v4081
    %v4216 = vpop.f32.mrf.mxu0
    %v4217 = vadd.f32 %v4045, %v4216
    %v4218 = vpop.f32.mrf.mxu0
    %4219 = vmatprep.mubr.f32.mxu0 0.0
    %4220 = vmatmul.mubr.f32.gmra.mxu0 %v4084
    %v4221 = vpop.f32.mrf.mxu0
    %v4222 = vadd.f32 %v4045, %v4221
    %v4223 = vpop.f32.mrf.mxu0
    %4224 = vmatprep.mubr.f32.mxu0 0.0
    %4225 = vmatmul.mubr.f32.gmra.mxu0 %v4087
    %v4226 = vpop.f32.mrf.mxu0
    %v4227 = vadd.f32 %v4045, %v4226
    %v4228 = vpop.f32.mrf.mxu0
    %4229 = vmatprep.mubr.f32.mxu0 0.0
    %4230 = vmatmul.mubr.f32.gmra.mxu0 %v4090
    %v4231 = vpop.f32.mrf.mxu0
    %v4232 = vadd.f32 %v4045, %v4231
    %v4233 = vpop.f32.mrf.mxu0
    %4234 = vmatprep.mubr.f32.mxu0 0.0
    %4235 = vmatmul.mubr.f32.gmra.mxu0 %v4093
    %v4236 = vpop.f32.mrf.mxu0
    %v4237 = vadd.f32 %v4045, %v4236
    %v4238 = vpop.f32.mrf.mxu0
    %4239 = vdwg.mxu0
    %v4240 = vsel %vm1097, %v4162, 0.0
    %v4241 = vsel %vm1097, %v4167, 0.0
    %v4242 = vadd.f32 %v4240, %v4241
    %v4243 = vsel %vm1097, %v4172, 0.0
    %v4244 = vadd.f32 %v4242, %v4243
    %v4245 = vsel %vm1097, %v4177, 0.0
    %v4246 = vadd.f32 %v4244, %v4245
    %v4247 = vsel %vm1097, %v4182, 0.0
    %v4248 = vadd.f32 %v4246, %v4247
    %v4249 = vsel %vm1097, %v4187, 0.0
    %v4250 = vadd.f32 %v4248, %v4249
    %v4251 = vsel %vm1097, %v4192, 0.0
    %v4252 = vadd.f32 %v4250, %v4251
    %v4253 = vsel %vm1097, %v4197, 0.0
    %v4254 = vadd.f32 %v4252, %v4253
    %v4255 = vrot.slane %v4254, 4
    %v4256 = vadd.f32 %v4254, %v4255
    %v4257 = vrot.slane %v4256, 2
    %v4258 = vadd.f32 %v4256, %v4257
    %v4259 = vrot.slane %v4258, 1
    %v4260 = vadd.f32 %v4258, %v4259
    %v4261 = vsel %vm1097, %v4202, 0.0
    %v4262 = vsel %vm1097, %v4207, 0.0
    %v4263 = vadd.f32 %v4261, %v4262
    %v4264 = vsel %vm1097, %v4212, 0.0
    %v4265 = vadd.f32 %v4263, %v4264
    %v4266 = vsel %vm1097, %v4217, 0.0
    %v4267 = vadd.f32 %v4265, %v4266
    %v4268 = vsel %vm1097, %v4222, 0.0
    %v4269 = vadd.f32 %v4267, %v4268
    %v4270 = vsel %vm1097, %v4227, 0.0
    %v4271 = vadd.f32 %v4269, %v4270
    %v4272 = vsel %vm1097, %v4232, 0.0
    %v4273 = vadd.f32 %v4271, %v4272
    %v4274 = vsel %vm1097, %v4237, 0.0
    %v4275 = vadd.f32 %v4273, %v4274
    %v4276 = vrot.slane %v4275, 4
    %v4277 = vadd.f32 %v4275, %v4276
    %v4278 = vrot.slane %v4277, 2
    %v4279 = vadd.f32 %v4277, %v4278
    %v4280 = vrot.slane %v4279, 1
    %v4281 = vadd.f32 %v4279, %v4280
    %v4282 = vmul.f32 %v4260, 0.015625
    %v4283 = vmul.f32 %v4281, 0.015625
    %v4284 = vld [vmem:[%s11] sm:$0xff]
    %v4285 = vld [vmem:[%s11 + $0x8] sm:$0xff]
    %v4286 = vld [vmem:[%s11 + $0x10] sm:$0xff]
    %v4287 = vld [vmem:[%s11 + $0x18] sm:$0xff]
    %v4288 = vld [vmem:[%s12] sm:$0x1]
    %v4290 = vlaneseq
    %v4291 = vshrl.u32 %v4290, 7
    %v4292 = vsub.s32 0, %v4291
    %v4293 = vrot.slane %v4288, %v4292
    %vm4297 = vcmask 1041409
    %v4298 = vsel %vm4297, %v4283, %v4282
    %v4299 = vsel %vm1097, %v4298, 0
    %4301 = vmatprep.subr.mxu0 0.0
    %4302 = vmatpush1.msra.mxu0 0.0
    %4303 = vmatprep.subr.mxu0 0.0
    %4304 = vmatpush1.msra.mxu0 0.0
    %4305 = vmatprep.subr.mxu0 0.0
    %4306 = vmatpush1.msra.mxu0 0.0
    %4307 = vmatprep.subr.mxu0 0.0
    %4308 = vmatpush1.msra.mxu0 0.0
    %4309 = vmatprep.subr.mxu0 0.0
    %4310 = vmatpush1.msra.mxu0 0.0
    %4311 = vmatprep.subr.mxu0 0.0
    %4312 = vmatpush1.msra.mxu0 0.0
    %4313 = vmatprep.subr.mxu0 0.0
    %4314 = vmatpush1.msra.mxu0 0.0
    %4315 = vmatprep.subr.mxu0 0.0
    %4316 = vmatpush1.msra.mxu0 0.0
    %4317 = vmatprep.subr.mxu0 0.0
    %4318 = vmatpush1.msra.mxu0 0.0
    %4319 = vmatprep.subr.mxu0 0.0
    %4320 = vmatpush1.msra.mxu0 0.0
    %4321 = vmatprep.subr.mxu0 0.0
    %4322 = vmatpush1.msra.mxu0 0.0
    %4323 = vmatprep.subr.mxu0 0.0
    %4324 = vmatpush1.msra.mxu0 0.0
    %4325 = vmatprep.subr.mxu0 0.0
    %4326 = vmatpush1.msra.mxu0 %v4287
    %4327 = vmatprep.subr.mxu0 0.0
    %4328 = vmatpush1.msra.mxu0 %v4286
    %4329 = vmatprep.subr.mxu0 0.0
    %4330 = vmatpush1.msra.mxu0 %v4285
    %4331 = vmatprep.subr.mxu0 0.0
    %4332 = vmatpush1.msra.mxu0 %v4284
    %4333 = vmatprep.subr.mxu0 0.0
    %4334 = vmatpush2.msra.mxu0 0.0
    %4335 = vmatprep.subr.mxu0 0.0
    %4336 = vmatpush2.msra.mxu0 0.0
    %4337 = vmatprep.subr.mxu0 0.0
    %4338 = vmatpush2.msra.mxu0 0.0
    %4339 = vmatprep.subr.mxu0 0.0
    %4340 = vmatpush2.msra.mxu0 0.0
    %4341 = vmatprep.subr.mxu0 0.0
    %4342 = vmatpush2.msra.mxu0 0.0
    %4343 = vmatprep.subr.mxu0 0.0
    %4344 = vmatpush2.msra.mxu0 0.0
    %4345 = vmatprep.subr.mxu0 0.0
    %4346 = vmatpush2.msra.mxu0 0.0
    %4347 = vmatprep.subr.mxu0 0.0
    %4348 = vmatpush2.msra.mxu0 0.0
    %4349 = vmatprep.subr.mxu0 0.0
    %4350 = vmatpush2.msra.mxu0 0.0
    %4351 = vmatprep.subr.mxu0 0.0
    %4352 = vmatpush2.msra.mxu0 0.0
    %4353 = vmatprep.subr.mxu0 0.0
    %4354 = vmatpush2.msra.mxu0 0.0
    %4355 = vmatprep.subr.mxu0 0.0
    %4356 = vmatpush2.msra.mxu0 0.0
    %4357 = vmatprep.subr.mxu0 0.0
    %4358 = vmatpush2.msra.mxu0 0.0
    %4359 = vmatprep.subr.mxu0 0.0
    %4360 = vmatpush2.msra.mxu0 0.0
    %4361 = vmatprep.subr.mxu0 0.0
    %4362 = vmatpush2.msra.mxu0 0.0
    %4363 = vmatprep.subr.mxu0 0.0
    %4364 = vmatpush2.msra.mxu0 0.0
    %4365 = vmatprep.mubr.f32.mxu0 0.0
    %4366 = vmatmul.mubr.f32.gmra.mxu0 %v4299
    %v4367 = vpop.f32.mrf.mxu0
    %v4368 = vadd.f32 %v4293, %v4367
    %v4369 = vpop.f32.mrf.mxu0
    %4370 = vdwg.mxu0
    %vm4371 = vcmask 74752
    %4372 = vst.msk [vmem:[#allocation3] sm:$0x3] %vm4371, %v4368
    // Predicated region
    $region54: #{pncnn_forward.1} parent=1 // pred_check
      _
    $region55: #{pncnn_forward.1} parent=1 // pred_check_branch
      %4374 = sbr.rel (0) target = $region57
    $region56: #{pncnn_forward.1} parent=1 // pred_region
      %s4376 = ssub.s32 32, 32
      %4377 = vsyncadd [#allocation4], %s4376
      %s4379 = sshll.u32 [#allocation3], 4
      %s4380 = int_to_ptr.vmem [resolvable:$true] %s4379
      %4382 = dma.vmem_to_hbm [thread:$0]  %s4380, 32, %s13, [#allocation4]
    $region57: #{pncnn_forward.1} parent=1 // pred_fallthru
      _
    // Predicated region
    $region58: #{pncnn_forward.1} parent=1 // pred_check
      _
    $region59: #{pncnn_forward.1} parent=1 // pred_check_branch
      %4384 = sbr.rel (0) target = $region61
    $region60: #{pncnn_forward.1} parent=1 // pred_region
      %4385 = dma.done [#allocation4], 32
    $region61: #{pncnn_forward.1} parent=1 // pred_fallthru
      _
    %4386 = vsyncpa [#allocation4], 1

</llo_original>
